<compile_context>
chip_gen: v6e
topology: v6e:2x2x1
jax: 0.10.0
libtpu: 0.0.40
codegen_flags: <defaults>
</compile_context>

<pallas_src>
import functools

import jax
import jax.numpy as jnp
from jax.experimental import pallas as pl
from jax.experimental.pallas import tpu as pltpu

# ----------------------------- scaled-down config -----------------------------
IMG = 64            # image size (original: 224)
PATCH = 16          # patch size (same as original)
IN_CHANS = 3
DIM = 256           # embed dim (original: 768) -- multiple of 128 => lane-dense
DEPTH = 2           # blocks (original: 12)
HEADS = 4           # heads (original: 12); head_dim = 64 preserved
HEAD_DIM = DIM // HEADS
MLP_HIDDEN = 4 * DIM
LN_EPS = 1e-12      # HF ViTConfig default layer_norm_eps

GRID_HW = IMG // PATCH
NUM_PATCHES = GRID_HW * GRID_HW
SEQ = 1 + NUM_PATCHES                     # cls + patches
SEQ_PAD = ((SEQ + 7) // 8) * 8            # sublane-aligned token count per batch element
CPP = IN_CHANS * PATCH * PATCH            # flattened patch length (768, lane-dense)

_INV_SQRT2 = 0.7071067811865476


# --------------------------------- kernels ------------------------------------
def _layernorm(x, g, b):
    mu = jnp.mean(x, axis=-1, keepdims=True)
    var = jnp.mean((x - mu) ** 2, axis=-1, keepdims=True)
    return (x - mu) * jax.lax.rsqrt(var + LN_EPS) * g + b


def _embed_kernel(p_ref, w_ref, add_ref, o_ref):
    """One batch element per grid step.

    p_ref  : (1, SEQ_PAD, CPP) bf16 -- row 0 and padding rows are zero
    add_ref: (SEQ_PAD, D) f32      -- row 0 = cls+pos0, patch rows = bias+pos, pad rows = 0
    Single full-tile matmul + ONE unmasked full-block store (no partial sublane writes).
    """
    o_ref[0] = jnp.dot(p_ref[0], w_ref[...],
                       preferred_element_type=jnp.float32) + add_ref[...]


def _vit_blocks_kernel(x_ref,
                       ln1g_ref, ln1b_ref, qkvw_ref, qkvb_ref, projw_ref, projb_ref,
                       ln2g_ref, ln2b_ref, fc1w_ref, fc1b_ref, fc2w_ref, fc2b_ref,
                       lnfg_ref, lnfb_ref,
                       o_ref,
                       xres_ref, hmerge_ref,
                       *, seq, heads, head_dim, depth):
    """Fused transformer stack.  Grid = (B, DEPTH); the residual stream for the current
    batch element stays resident in VMEM scratch `xres_ref` across all depth steps."""
    l = pl.program_id(1)

    @pl.when(l == 0)
    def _():
        xres_ref[...] = x_ref[0]          # load residual stream once per batch element

    x = xres_ref[...]                     # (S_pad, D) f32, VMEM-resident
    s_pad, d = x.shape

    # ---------------- attention branch: LN1 -> fused QKV -> MHSA -> proj -> +residual
    xn = _layernorm(x, ln1g_ref[0], ln1b_ref[0])
    qkv = jnp.dot(xn.astype(jnp.bfloat16), qkvw_ref[0],
                  preferred_element_type=jnp.float32) + qkvb_ref[0]          # (S_pad, 3D)

    # additive mask removing padded key positions (padded rows never affect valid rows)
    col = jax.lax.broadcasted_iota(jnp.int32, (s_pad, s_pad), 1)
    kmask = jnp.where(col < seq, 0.0, -1e30).astype(jnp.float32)

    scale = float(head_dim) ** -0.5
    for h in range(heads):
        lo = h * head_dim
        hi = lo + head_dim
        q = (qkv[:, lo:hi] * scale).astype(jnp.bfloat16)   # scale folded into q
        k = qkv[:, d + lo:d + hi].astype(jnp.bfloat16)
        v = qkv[:, 2 * d + lo:2 * d + hi].astype(jnp.bfloat16)

        s = jax.lax.dot_general(q, k, (((1,), (1,)), ((), ())),
                                preferred_element_type=jnp.float32) + kmask
        s = s - jnp.max(s, axis=-1, keepdims=True)
        p = jnp.exp(s)
        # NOTE: approx reciprocal (EUP) -- use approx=False for strict f32 parity.
        p = p * pl.reciprocal(jnp.sum(p, axis=-1, keepdims=True), approx=True)
        # head merge: write this head's output into its lane slab of the VMEM scratch
        hmerge_ref[:, lo:hi] = jnp.dot(p.astype(jnp.bfloat16), v,
                                       preferred_element_type=jnp.float32)

    # ONE full-K (K = D) output projection instead of `heads` K=64 dots
    attn = jnp.dot(hmerge_ref[...].astype(jnp.bfloat16), projw_ref[0],
                   preferred_element_type=jnp.float32) + projb_ref[0]
    x = x + attn                                            # residual add (f32)

    # ---------------- MLP branch: LN2 -> fc1 -> exact GELU -> fc2 -> +residual
    xn2 = _layernorm(x, ln2g_ref[0], ln2b_ref[0])
    h1 = jnp.dot(xn2.astype(jnp.bfloat16), fc1w_ref[0],
                 preferred_element_type=jnp.float32) + fc1b_ref[0]           # (S_pad, 4D)
    h1 = 0.5 * h1 * (1.0 + jax.lax.erf(h1 * _INV_SQRT2))   # exact GELU (HF "gelu"), f32
    y = jnp.dot(h1.astype(jnp.bfloat16), fc2w_ref[0],
                preferred_element_type=jnp.float32) + fc2b_ref[0]            # (S_pad, D)
    x = x + y

    xres_ref[...] = x                     # keep residual stream resident for next layer

    # final LayerNorm fused into the last depth step; only write the output there
    @pl.when(l == depth - 1)
    def _():
        o_ref[0] = _layernorm(x, lnfg_ref[...], lnfb_ref[...])


# ------------------------------ pallas wrappers --------------------------------
def pallas_embed(patches_pad, patch_w, row_add):
    B, s_pad, cpp = patches_pad.shape
    d = patch_w.shape[1]
    return pl.pallas_call(
        _embed_kernel,
        out_shape=jax.ShapeDtypeStruct((B, s_pad, d), jnp.float32),
        grid=(B,),
        in_specs=[
            pl.BlockSpec((1, s_pad, cpp), lambda i: (i, 0, 0)),
            pl.BlockSpec((cpp, d), lambda i: (0, 0)),
            pl.BlockSpec((s_pad, d), lambda i: (0, 0)),
        ],
        out_specs=pl.BlockSpec((1, s_pad, d), lambda i: (i, 0, 0)),
        compiler_params=pltpu.CompilerParams(
            dimension_semantics=("parallel",)),
    )(patches_pad, patch_w, row_add)


def pallas_vit_blocks(x, p, *, seq):
    """All DEPTH transformer blocks + final LayerNorm in one pallas_call."""
    B, s_pad, d = x.shape
    hidden = p["fc1_w"].shape[-1]
    depth = p["qkv_w"].shape[0]

    tok_spec = pl.BlockSpec((1, s_pad, d), lambda b, l: (b, 0, 0))

    def per_layer(*shape):          # weight/bias stacked along leading DEPTH axis
        return pl.BlockSpec((1,) + shape, lambda b, l: (l,) + (0,) * len(shape))

    def const2(r, c):               # final-LN params: constant index, fetched once
        return pl.BlockSpec((r, c), lambda b, l: (0, 0))

    kern = functools.partial(_vit_blocks_kernel, seq=seq, heads=HEADS,
                             head_dim=HEAD_DIM, depth=depth)
    return pl.pallas_call(
        kern,
        out_shape=jax.ShapeDtypeStruct((B, s_pad, d), jnp.float32),
        grid=(B, depth),
        in_specs=[
            tok_spec,                                        # residual stream (read at l==0)
            per_layer(1, d), per_layer(1, d),                # ln1 gamma/beta
            per_layer(d, 3 * d), per_layer(1, 3 * d),        # fused qkv w/b
            per_layer(d, d), per_layer(1, d),                # out-proj w/b
            per_layer(1, d), per_layer(1, d),                # ln2 gamma/beta
            per_layer(d, hidden), per_layer(1, hidden),      # fc1 w/b
            per_layer(hidden, d), per_layer(1, d),           # fc2 w/b
            const2(1, d), const2(1, d),                      # final LN gamma/beta
        ],
        out_specs=tok_spec,
        scratch_shapes=[
            pltpu.VMEM((s_pad, d), jnp.float32),             # residual stream (depth-resident)
            pltpu.VMEM((s_pad, d), jnp.float32),             # merged head outputs
        ],
        compiler_params=pltpu.CompilerParams(
            dimension_semantics=("parallel", "arbitrary"),
            # ~4 MiB used at this scale; re-derive for ViT-B on v7x (64 MiB VMEM).
            vmem_limit_bytes=48 * 1024 * 1024),
    )(x,
      p["ln1_g"], p["ln1_b"], p["qkv_w"], p["qkv_b"], p["proj_w"], p["proj_b"],
      p["ln2_g"], p["ln2_b"], p["fc1_w"], p["fc1_b"], p["fc2_w"], p["fc2_b"],
      p["normf_g"], p["normf_b"])


# --------------------------------- parameters ----------------------------------
def init_params(key):
    keys = iter(jax.random.split(key, 16))

    def nrm(shape, std=0.02, dtype=jnp.float32):
        return (std * jax.random.normal(next(keys), shape)).astype(dtype)

    # NOTE: weights stored bf16 (halves DMA/VMEM); against a real f32 checkpoint this
    # adds weight-quantization error on top of bf16-MXU error.
    return {
        # Conv2d(3, D, 16, stride 16) as matmul; rows flattened in (C, kh, kw) order
        "patch_w": nrm((CPP, DIM), dtype=jnp.bfloat16),
        "patch_b": jnp.zeros((1, DIM), jnp.float32),
        "cls_token": nrm((1, DIM)),
        "pos_embed": nrm((1, SEQ, DIM)),
        "normf_g": jnp.ones((1, DIM), jnp.float32),
        "normf_b": jnp.zeros((1, DIM), jnp.float32),
        # per-block weights stacked along a leading DEPTH axis (depth grid dimension)
        "ln1_g": jnp.ones((DEPTH, 1, DIM), jnp.float32),
        "ln1_b": jnp.zeros((DEPTH, 1, DIM), jnp.float32),
        # HF ViT has separate q/k/v linears; fused here as [q | k | v] columns
        "qkv_w": nrm((DEPTH, DIM, 3 * DIM), dtype=jnp.bfloat16),
        "qkv_b": jnp.zeros((DEPTH, 1, 3 * DIM), jnp.float32),
        "proj_w": nrm((DEPTH, DIM, DIM), dtype=jnp.bfloat16),
        "proj_b": jnp.zeros((DEPTH, 1, DIM), jnp.float32),
        "ln2_g": jnp.ones((DEPTH, 1, DIM), jnp.float32),
        "ln2_b": jnp.zeros((DEPTH, 1, DIM), jnp.float32),
        "fc1_w": nrm((DEPTH, DIM, MLP_HIDDEN), dtype=jnp.bfloat16),
        "fc1_b": jnp.zeros((DEPTH, 1, MLP_HIDDEN), jnp.float32),
        "fc2_w": nrm((DEPTH, MLP_HIDDEN, DIM), dtype=jnp.bfloat16),
        "fc2_b": jnp.zeros((DEPTH, 1, DIM), jnp.float32),
    }


# --------------------------------- forward -------------------------------------
def phikon_forward(params, img):
    # img: (B, C, H, W) float32, NCHW like the PyTorch module
    B, C, H, W = img.shape
    gh, gw = H // PATCH, W // PATCH
    n = gh * gw
    seq = 1 + n
    seq_pad = ((seq + 7) // 8) * 8
    cpp = C * PATCH * PATCH

    # patchify (glue): NCHW -> (B, N, C*p*p); same token order / flatten order as
    # Conv2d(kernel=16, stride=16) + flatten(2).transpose(1, 2).  Cast to bf16 here
    # (halves the DMA payload) and pad rows: row 0 reserved for CLS, tail rows = padding.
    patches = img.reshape(B, C, gh, PATCH, gw, PATCH)
    patches = patches.transpose(0, 2, 4, 1, 3, 5).reshape(B, n, cpp)
    patches_pad = jnp.zeros((B, seq_pad, cpp), jnp.bfloat16)
    patches_pad = patches_pad.at[:, 1:1 + n, :].set(patches.astype(jnp.bfloat16))

    # per-row additive term (f32): row 0 = cls + pos[0]; patch rows = bias + pos[1:];
    # padding rows = 0  ->  the embed kernel does one matmul and one full-block store.
    row_add = jnp.zeros((seq_pad, DIM), jnp.float32)
    row_add = row_add.at[0].set(params["cls_token"][0] + params["pos_embed"][0, 0])
    row_add = row_add.at[1:1 + n].set(params["patch_b"] + params["pos_embed"][0, 1:seq])

    # fused: patch-embed matmul + CLS + position embedding + sublane padding
    x = pallas_embed(patches_pad, params["patch_w"], row_add)       # (B, SEQ_PAD, D) f32

    # all DEPTH transformer blocks + final LayerNorm, residual stream resident in VMEM
    x = pallas_vit_blocks(x, params, seq=seq)                        # (B, SEQ_PAD, D) f32

    feats = x[:, :seq]                                               # drop padded rows
    return {"cls_token": feats[:, :1, :], "patch_token": feats[:, 1:, :]}


# ----------------------------------- main ---------------------------------------
if __name__ == "__main__":
    key = jax.random.PRNGKey(0)
    pkey, xkey = jax.random.split(key)
    params = init_params(pkey)
    img = jax.random.normal(xkey, (2, IN_CHANS, IMG, IMG), dtype=jnp.float32)

    out = jax.jit(phikon_forward)(params, img)
    jax.block_until_ready(out)

    assert out["cls_token"].shape == (2, 1, DIM)
    assert out["patch_token"].shape == (2, NUM_PATCHES, DIM)
    print("KERNEL_OK")
</pallas_src>

<mosaic_0001>
module attributes {stable_mosaic.version = 11 : i64} {
  func.func @_vit_blocks_kernel(%arg0: i32, %arg1: i32, %arg2: memref<1x24x256xf32, #tpu.memory_space<vmem>>, %arg3: memref<1x1x256xf32, #tpu.memory_space<vmem>>, %arg4: memref<1x1x256xf32, #tpu.memory_space<vmem>>, %arg5: memref<1x256x768xbf16, #tpu.memory_space<vmem>>, %arg6: memref<1x1x768xf32, #tpu.memory_space<vmem>>, %arg7: memref<1x256x256xbf16, #tpu.memory_space<vmem>>, %arg8: memref<1x1x256xf32, #tpu.memory_space<vmem>>, %arg9: memref<1x1x256xf32, #tpu.memory_space<vmem>>, %arg10: memref<1x1x256xf32, #tpu.memory_space<vmem>>, %arg11: memref<1x256x1024xbf16, #tpu.memory_space<vmem>>, %arg12: memref<1x1x1024xf32, #tpu.memory_space<vmem>>, %arg13: memref<1x1024x256xbf16, #tpu.memory_space<vmem>>, %arg14: memref<1x1x256xf32, #tpu.memory_space<vmem>>, %arg15: memref<1x256xf32, #tpu.memory_space<vmem>>, %arg16: memref<1x256xf32, #tpu.memory_space<vmem>>, %arg17: memref<1x24x256xf32, #tpu.memory_space<vmem>>, %arg18: memref<24x256xf32, #tpu.memory_space<vmem>>, %arg19: memref<24x256xf32, #tpu.memory_space<vmem>>) attributes {dimension_semantics = [#tpu.dimension_semantics<parallel>, #tpu.dimension_semantics<arbitrary>], iteration_bounds = array<i64: 2, 2>, scalar_prefetch = 0 : i64, scratch_operands = 2 : i64, tpu.core_type = #tpu.core_type<tc>, window_params = [{transform_indices = @transform_0, window_bounds = array<i64: 1, 24, 256>}, {transform_indices = @transform_1, window_bounds = array<i64: 1, 1, 256>}, {transform_indices = @transform_2, window_bounds = array<i64: 1, 1, 256>}, {transform_indices = @transform_3, window_bounds = array<i64: 1, 256, 768>}, {transform_indices = @transform_4, window_bounds = array<i64: 1, 1, 768>}, {transform_indices = @transform_5, window_bounds = array<i64: 1, 256, 256>}, {transform_indices = @transform_6, window_bounds = array<i64: 1, 1, 256>}, {transform_indices = @transform_7, window_bounds = array<i64: 1, 1, 256>}, {transform_indices = @transform_8, window_bounds = array<i64: 1, 1, 256>}, {transform_indices = @transform_9, window_bounds = array<i64: 1, 256, 1024>}, {transform_indices = @transform_10, window_bounds = array<i64: 1, 1, 1024>}, {transform_indices = @transform_11, window_bounds = array<i64: 1, 1024, 256>}, {transform_indices = @transform_12, window_bounds = array<i64: 1, 1, 256>}, {pipeline_mode = #tpu.pipeline_mode<synchronous>, transform_indices = @transform_13, window_bounds = array<i64: 1, 256>}, {pipeline_mode = #tpu.pipeline_mode<synchronous>, transform_indices = @transform_14, window_bounds = array<i64: 1, 256>}, {transform_indices = @transform_15, window_bounds = array<i64: 1, 24, 256>}]} {
    %c0_i32 = arith.constant 0 : i32
    %0 = arith.cmpi eq, %arg1, %c0_i32 : i32
    %1 = arith.extui %0 : i1 to i32
    %c0_i32_0 = arith.constant 0 : i32
    %2 = arith.cmpi ne, %1, %c0_i32_0 : i32
    scf.if %2 {
      %c0_86 = arith.constant 0 : index
      %c0_87 = arith.constant 0 : index
      %c0_88 = arith.constant 0 : index
      %201 = vector.load %arg2[%c0_86, %c0_87, %c0_88] : memref<1x24x256xf32, #tpu.memory_space<vmem>>, vector<1x24x256xf32>
      %202 = vector.shape_cast %201 : vector<1x24x256xf32> to vector<24x256xf32>
      %c0_89 = arith.constant 0 : index
      %c0_90 = arith.constant 0 : index
      %203 = vector.load %arg18[%c0_89, %c0_90] : memref<24x256xf32, #tpu.memory_space<vmem>>, vector<24x256xf32>
      tpu.vector_store %arg18[%c0_89, %c0_90], %202 {strides = array<i32>} : memref<24x256xf32, #tpu.memory_space<vmem>>, vector<24x256xf32>,
    } else {
    }
    %c0 = arith.constant 0 : index
    %c0_1 = arith.constant 0 : index
    %3 = vector.load %arg18[%c0, %c0_1] : memref<24x256xf32, #tpu.memory_space<vmem>>, vector<24x256xf32>
    %c0_2 = arith.constant 0 : index
    %c0_3 = arith.constant 0 : index
    %c0_4 = arith.constant 0 : index
    %4 = vector.load %arg3[%c0_2, %c0_3, %c0_4] : memref<1x1x256xf32, #tpu.memory_space<vmem>>, vector<1x1x256xf32>
    %5 = vector.shape_cast %4 : vector<1x1x256xf32> to vector<1x256xf32>
    %c0_5 = arith.constant 0 : index
    %c0_6 = arith.constant 0 : index
    %c0_7 = arith.constant 0 : index
    %6 = vector.load %arg4[%c0_5, %c0_6, %c0_7] : memref<1x1x256xf32, #tpu.memory_space<vmem>>, vector<1x1x256xf32>
    %7 = vector.shape_cast %6 : vector<1x1x256xf32> to vector<1x256xf32>
    %cst = arith.constant dense<0.000000e+00> : vector<24xf32>
    %8 = vector.multi_reduction <add>, %3, %cst [1] : vector<24x256xf32> to vector<24xf32>
    %9 = vector.shape_cast %8 : vector<24xf32> to vector<24x1xf32>
    %cst_8 = arith.constant 2.560000e+02 : f32
    %10 = vector.broadcast %cst_8 : f32 to vector<24x1xf32>
    %11 = arith.divf %9, %10 : vector<24x1xf32>
    %12 = vector.broadcast %11 : vector<24x1xf32> to vector<24x256xf32>
    %13 = arith.subf %3, %12 : vector<24x256xf32>
    %14 = arith.mulf %13, %13 : vector<24x256xf32>
    %cst_9 = arith.constant dense<0.000000e+00> : vector<24xf32>
    %15 = vector.multi_reduction <add>, %14, %cst_9 [1] : vector<24x256xf32> to vector<24xf32>
    %16 = vector.shape_cast %15 : vector<24xf32> to vector<24x1xf32>
    %cst_10 = arith.constant 2.560000e+02 : f32
    %17 = vector.broadcast %cst_10 : f32 to vector<24x1xf32>
    %18 = arith.divf %16, %17 : vector<24x1xf32>
    %19 = vector.broadcast %11 : vector<24x1xf32> to vector<24x256xf32>
    %20 = arith.subf %3, %19 : vector<24x256xf32>
    %cst_11 = arith.constant 9.99999996E-13 : f32
    %21 = vector.broadcast %cst_11 : f32 to vector<24x1xf32>
    %22 = arith.addf %18, %21 : vector<24x1xf32>
    %23 = math.rsqrt %22 : vector<24x1xf32>
    %24 = vector.broadcast %23 : vector<24x1xf32> to vector<24x256xf32>
    %25 = arith.mulf %20, %24 : vector<24x256xf32>
    %26 = vector.broadcast %5 : vector<1x256xf32> to vector<24x256xf32>
    %27 = arith.mulf %25, %26 : vector<24x256xf32>
    %28 = vector.broadcast %7 : vector<1x256xf32> to vector<24x256xf32>
    %29 = arith.addf %27, %28 : vector<24x256xf32>
    %30 = arith.truncf %29 : vector<24x256xf32> to vector<24x256xbf16>
    %c0_12 = arith.constant 0 : index
    %c0_13 = arith.constant 0 : index
    %c0_14 = arith.constant 0 : index
    %31 = vector.load %arg5[%c0_12, %c0_13, %c0_14] : memref<1x256x768xbf16, #tpu.memory_space<vmem>>, vector<1x256x768xbf16>
    %32 = vector.shape_cast %31 : vector<1x256x768xbf16> to vector<256x768xbf16>
    %cst_15 = arith.constant dense<0.000000e+00> : vector<24x768xf32>
    %33 = tpu.matmul %30, %32, %cst_15 {dimension_numbers = #tpu.dot_dimension_numbers<[1], [0], [0], [1], [0, 0, 1, 1], [], []>} : vector<24x256xbf16>, vector<256x768xbf16>, vector<24x768xf32> -> vector<24x768xf32>
    %c0_16 = arith.constant 0 : index
    %c0_17 = arith.constant 0 : index
    %c0_18 = arith.constant 0 : index
    %34 = vector.load %arg6[%c0_16, %c0_17, %c0_18] : memref<1x1x768xf32, #tpu.memory_space<vmem>>, vector<1x1x768xf32>
    %35 = vector.shape_cast %34 : vector<1x1x768xf32> to vector<1x768xf32>
    %36 = vector.broadcast %35 : vector<1x768xf32> to vector<24x768xf32>
    %37 = arith.addf %33, %36 : vector<24x768xf32>
    %38 = tpu.iota {dimensions = array<i32: 1>} : vector<24x24xi32>
    %c17_i32 = arith.constant 17 : i32
    %39 = vector.broadcast %c17_i32 : i32 to vector<24x24xi32>
    %40 = arith.cmpi slt, %38, %39 : vector<24x24xi32>
    %cst_19 = arith.constant 0.000000e+00 : f32
    %cst_20 = arith.constant -1.000000e+30 : f32
    %41 = vector.broadcast %cst_19 : f32 to vector<24x24xf32>
    %42 = vector.broadcast %cst_20 : f32 to vector<24x24xf32>
    %43 = arith.select %40, %41, %42 : vector<24x24xi1>, vector<24x24xf32>
    %44 = vector.extract_strided_slice %37 {offsets = [0, 0], sizes = [24, 64], strides = [1, 1]} : vector<24x768xf32> to vector<24x64xf32>
    %cst_21 = arith.constant 1.250000e-01 : f32
    %45 = vector.broadcast %cst_21 : f32 to vector<24x64xf32>
    %46 = arith.mulf %44, %45 : vector<24x64xf32>
    %47 = arith.truncf %46 : vector<24x64xf32> to vector<24x64xbf16>
    %48 = vector.extract_strided_slice %37 {offsets = [0, 256], sizes = [24, 64], strides = [1, 1]} : vector<24x768xf32> to vector<24x64xf32>
    %49 = arith.truncf %48 : vector<24x64xf32> to vector<24x64xbf16>
    %50 = vector.extract_strided_slice %37 {offsets = [0, 512], sizes = [24, 64], strides = [1, 1]} : vector<24x768xf32> to vector<24x64xf32>
    %51 = arith.truncf %50 : vector<24x64xf32> to vector<24x64xbf16>
    %cst_22 = arith.constant dense<0.000000e+00> : vector<24x24xf32>
    %52 = tpu.matmul %47, %49, %cst_22 {dimension_numbers = #tpu.dot_dimension_numbers<[1], [1], [0], [0], [0, 0, 1, 0], [], []>} : vector<24x64xbf16>, vector<24x64xbf16>, vector<24x24xf32> -> vector<24x24xf32>
    %53 = arith.addf %52, %43 : vector<24x24xf32>
    %cst_23 = arith.constant dense<0xFF800000> : vector<24xf32>
    %54 = vector.multi_reduction <maximumf>, %53, %cst_23 [1] : vector<24x24xf32> to vector<24xf32>
    %55 = vector.shape_cast %54 : vector<24xf32> to vector<24x1xf32>
    %56 = vector.broadcast %55 : vector<24x1xf32> to vector<24x24xf32>
    %57 = arith.subf %53, %56 : vector<24x24xf32>
    %58 = math.exp %57 : vector<24x24xf32>
    %cst_24 = arith.constant dense<0.000000e+00> : vector<24xf32>
    %59 = vector.multi_reduction <add>, %58, %cst_24 [1] : vector<24x24xf32> to vector<24xf32>
    %60 = vector.shape_cast %59 : vector<24xf32> to vector<24x1xf32>
    %61 = tpu.reciprocal %60 {approx = true} : vector<24x1xf32> -> vector<24x1xf32>
    %62 = vector.broadcast %61 : vector<24x1xf32> to vector<24x24xf32>
    %63 = arith.mulf %58, %62 : vector<24x24xf32>
    %64 = arith.truncf %63 : vector<24x24xf32> to vector<24x24xbf16>
    %cst_25 = arith.constant dense<0.000000e+00> : vector<24x64xf32>
    %65 = tpu.matmul %64, %51, %cst_25 {dimension_numbers = #tpu.dot_dimension_numbers<[1], [0], [0], [1], [0, 0, 1, 1], [], []>} : vector<24x24xbf16>, vector<24x64xbf16>, vector<24x64xf32> -> vector<24x64xf32>
    %c0_26 = arith.constant 0 : index
    %c0_27 = arith.constant 0 : index
    %66 = vector.load %arg19[%c0_26, %c0_27] : memref<24x256xf32, #tpu.memory_space<vmem>>, vector<24x64xf32>
    tpu.vector_store %arg19[%c0_26, %c0_27], %65 {strides = array<i32>} : memref<24x256xf32, #tpu.memory_space<vmem>>, vector<24x64xf32>,
    %67 = vector.extract_strided_slice %37 {offsets = [0, 64], sizes = [24, 64], strides = [1, 1]} : vector<24x768xf32> to vector<24x64xf32>
    %cst_28 = arith.constant 1.250000e-01 : f32
    %68 = vector.broadcast %cst_28 : f32 to vector<24x64xf32>
    %69 = arith.mulf %67, %68 : vector<24x64xf32>
    %70 = arith.truncf %69 : vector<24x64xf32> to vector<24x64xbf16>
    %71 = vector.extract_strided_slice %37 {offsets = [0, 320], sizes = [24, 64], strides = [1, 1]} : vector<24x768xf32> to vector<24x64xf32>
    %72 = arith.truncf %71 : vector<24x64xf32> to vector<24x64xbf16>
    %73 = vector.extract_strided_slice %37 {offsets = [0, 576], sizes = [24, 64], strides = [1, 1]} : vector<24x768xf32> to vector<24x64xf32>
    %74 = arith.truncf %73 : vector<24x64xf32> to vector<24x64xbf16>
    %cst_29 = arith.constant dense<0.000000e+00> : vector<24x24xf32>
    %75 = tpu.matmul %70, %72, %cst_29 {dimension_numbers = #tpu.dot_dimension_numbers<[1], [1], [0], [0], [0, 0, 1, 0], [], []>} : vector<24x64xbf16>, vector<24x64xbf16>, vector<24x24xf32> -> vector<24x24xf32>
    %76 = arith.addf %75, %43 : vector<24x24xf32>
    %cst_30 = arith.constant dense<0xFF800000> : vector<24xf32>
    %77 = vector.multi_reduction <maximumf>, %76, %cst_30 [1] : vector<24x24xf32> to vector<24xf32>
    %78 = vector.shape_cast %77 : vector<24xf32> to vector<24x1xf32>
    %79 = vector.broadcast %78 : vector<24x1xf32> to vector<24x24xf32>
    %80 = arith.subf %76, %79 : vector<24x24xf32>
    %81 = math.exp %80 : vector<24x24xf32>
    %cst_31 = arith.constant dense<0.000000e+00> : vector<24xf32>
    %82 = vector.multi_reduction <add>, %81, %cst_31 [1] : vector<24x24xf32> to vector<24xf32>
    %83 = vector.shape_cast %82 : vector<24xf32> to vector<24x1xf32>
    %84 = tpu.reciprocal %83 {approx = true} : vector<24x1xf32> -> vector<24x1xf32>
    %85 = vector.broadcast %84 : vector<24x1xf32> to vector<24x24xf32>
    %86 = arith.mulf %81, %85 : vector<24x24xf32>
    %87 = arith.truncf %86 : vector<24x24xf32> to vector<24x24xbf16>
    %cst_32 = arith.constant dense<0.000000e+00> : vector<24x64xf32>
    %88 = tpu.matmul %87, %74, %cst_32 {dimension_numbers = #tpu.dot_dimension_numbers<[1], [0], [0], [1], [0, 0, 1, 1], [], []>} : vector<24x24xbf16>, vector<24x64xbf16>, vector<24x64xf32> -> vector<24x64xf32>
    %c0_33 = arith.constant 0 : index
    %c64 = arith.constant 64 : index
    %89 = vector.load %arg19[%c0_33, %c64] : memref<24x256xf32, #tpu.memory_space<vmem>>, vector<24x64xf32>
    tpu.vector_store %arg19[%c0_33, %c64], %88 {strides = array<i32>} : memref<24x256xf32, #tpu.memory_space<vmem>>, vector<24x64xf32>,
    %90 = vector.extract_strided_slice %37 {offsets = [0, 128], sizes = [24, 64], strides = [1, 1]} : vector<24x768xf32> to vector<24x64xf32>
    %cst_34 = arith.constant 1.250000e-01 : f32
    %91 = vector.broadcast %cst_34 : f32 to vector<24x64xf32>
    %92 = arith.mulf %90, %91 : vector<24x64xf32>
    %93 = arith.truncf %92 : vector<24x64xf32> to vector<24x64xbf16>
    %94 = vector.extract_strided_slice %37 {offsets = [0, 384], sizes = [24, 64], strides = [1, 1]} : vector<24x768xf32> to vector<24x64xf32>
    %95 = arith.truncf %94 : vector<24x64xf32> to vector<24x64xbf16>
    %96 = vector.extract_strided_slice %37 {offsets = [0, 640], sizes = [24, 64], strides = [1, 1]} : vector<24x768xf32> to vector<24x64xf32>
    %97 = arith.truncf %96 : vector<24x64xf32> to vector<24x64xbf16>
    %cst_35 = arith.constant dense<0.000000e+00> : vector<24x24xf32>
    %98 = tpu.matmul %93, %95, %cst_35 {dimension_numbers = #tpu.dot_dimension_numbers<[1], [1], [0], [0], [0, 0, 1, 0], [], []>} : vector<24x64xbf16>, vector<24x64xbf16>, vector<24x24xf32> -> vector<24x24xf32>
    %99 = arith.addf %98, %43 : vector<24x24xf32>
    %cst_36 = arith.constant dense<0xFF800000> : vector<24xf32>
    %100 = vector.multi_reduction <maximumf>, %99, %cst_36 [1] : vector<24x24xf32> to vector<24xf32>
    %101 = vector.shape_cast %100 : vector<24xf32> to vector<24x1xf32>
    %102 = vector.broadcast %101 : vector<24x1xf32> to vector<24x24xf32>
    %103 = arith.subf %99, %102 : vector<24x24xf32>
    %104 = math.exp %103 : vector<24x24xf32>
    %cst_37 = arith.constant dense<0.000000e+00> : vector<24xf32>
    %105 = vector.multi_reduction <add>, %104, %cst_37 [1] : vector<24x24xf32> to vector<24xf32>
    %106 = vector.shape_cast %105 : vector<24xf32> to vector<24x1xf32>
    %107 = tpu.reciprocal %106 {approx = true} : vector<24x1xf32> -> vector<24x1xf32>
    %108 = vector.broadcast %107 : vector<24x1xf32> to vector<24x24xf32>
    %109 = arith.mulf %104, %108 : vector<24x24xf32>
    %110 = arith.truncf %109 : vector<24x24xf32> to vector<24x24xbf16>
    %cst_38 = arith.constant dense<0.000000e+00> : vector<24x64xf32>
    %111 = tpu.matmul %110, %97, %cst_38 {dimension_numbers = #tpu.dot_dimension_numbers<[1], [0], [0], [1], [0, 0, 1, 1], [], []>} : vector<24x24xbf16>, vector<24x64xbf16>, vector<24x64xf32> -> vector<24x64xf32>
    %c0_39 = arith.constant 0 : index
    %c128 = arith.constant 128 : index
    %112 = vector.load %arg19[%c0_39, %c128] : memref<24x256xf32, #tpu.memory_space<vmem>>, vector<24x64xf32>
    tpu.vector_store %arg19[%c0_39, %c128], %111 {strides = array<i32>} : memref<24x256xf32, #tpu.memory_space<vmem>>, vector<24x64xf32>,
    %113 = vector.extract_strided_slice %37 {offsets = [0, 192], sizes = [24, 64], strides = [1, 1]} : vector<24x768xf32> to vector<24x64xf32>
    %cst_40 = arith.constant 1.250000e-01 : f32
    %114 = vector.broadcast %cst_40 : f32 to vector<24x64xf32>
    %115 = arith.mulf %113, %114 : vector<24x64xf32>
    %116 = arith.truncf %115 : vector<24x64xf32> to vector<24x64xbf16>
    %117 = vector.extract_strided_slice %37 {offsets = [0, 448], sizes = [24, 64], strides = [1, 1]} : vector<24x768xf32> to vector<24x64xf32>
    %118 = arith.truncf %117 : vector<24x64xf32> to vector<24x64xbf16>
    %119 = vector.extract_strided_slice %37 {offsets = [0, 704], sizes = [24, 64], strides = [1, 1]} : vector<24x768xf32> to vector<24x64xf32>
    %120 = arith.truncf %119 : vector<24x64xf32> to vector<24x64xbf16>
    %cst_41 = arith.constant dense<0.000000e+00> : vector<24x24xf32>
    %121 = tpu.matmul %116, %118, %cst_41 {dimension_numbers = #tpu.dot_dimension_numbers<[1], [1], [0], [0], [0, 0, 1, 0], [], []>} : vector<24x64xbf16>, vector<24x64xbf16>, vector<24x24xf32> -> vector<24x24xf32>
    %122 = arith.addf %121, %43 : vector<24x24xf32>
    %cst_42 = arith.constant dense<0xFF800000> : vector<24xf32>
    %123 = vector.multi_reduction <maximumf>, %122, %cst_42 [1] : vector<24x24xf32> to vector<24xf32>
    %124 = vector.shape_cast %123 : vector<24xf32> to vector<24x1xf32>
    %125 = vector.broadcast %124 : vector<24x1xf32> to vector<24x24xf32>
    %126 = arith.subf %122, %125 : vector<24x24xf32>
    %127 = math.exp %126 : vector<24x24xf32>
    %cst_43 = arith.constant dense<0.000000e+00> : vector<24xf32>
    %128 = vector.multi_reduction <add>, %127, %cst_43 [1] : vector<24x24xf32> to vector<24xf32>
    %129 = vector.shape_cast %128 : vector<24xf32> to vector<24x1xf32>
    %130 = tpu.reciprocal %129 {approx = true} : vector<24x1xf32> -> vector<24x1xf32>
    %131 = vector.broadcast %130 : vector<24x1xf32> to vector<24x24xf32>
    %132 = arith.mulf %127, %131 : vector<24x24xf32>
    %133 = arith.truncf %132 : vector<24x24xf32> to vector<24x24xbf16>
    %cst_44 = arith.constant dense<0.000000e+00> : vector<24x64xf32>
    %134 = tpu.matmul %133, %120, %cst_44 {dimension_numbers = #tpu.dot_dimension_numbers<[1], [0], [0], [1], [0, 0, 1, 1], [], []>} : vector<24x24xbf16>, vector<24x64xbf16>, vector<24x64xf32> -> vector<24x64xf32>
    %c0_45 = arith.constant 0 : index
    %c192 = arith.constant 192 : index
    %135 = vector.load %arg19[%c0_45, %c192] : memref<24x256xf32, #tpu.memory_space<vmem>>, vector<24x64xf32>
    tpu.vector_store %arg19[%c0_45, %c192], %134 {strides = array<i32>} : memref<24x256xf32, #tpu.memory_space<vmem>>, vector<24x64xf32>,
    %c0_46 = arith.constant 0 : index
    %c0_47 = arith.constant 0 : index
    %136 = vector.load %arg19[%c0_46, %c0_47] : memref<24x256xf32, #tpu.memory_space<vmem>>, vector<24x256xf32>
    %137 = arith.truncf %136 : vector<24x256xf32> to vector<24x256xbf16>
    %c0_48 = arith.constant 0 : index
    %c0_49 = arith.constant 0 : index
    %c0_50 = arith.constant 0 : index
    %138 = vector.load %arg7[%c0_48, %c0_49, %c0_50] : memref<1x256x256xbf16, #tpu.memory_space<vmem>>, vector<1x256x256xbf16>
    %139 = vector.shape_cast %138 : vector<1x256x256xbf16> to vector<256x256xbf16>
    %cst_51 = arith.constant dense<0.000000e+00> : vector<24x256xf32>
    %140 = tpu.matmul %137, %139, %cst_51 {dimension_numbers = #tpu.dot_dimension_numbers<[1], [0], [0], [1], [0, 0, 1, 1], [], []>} : vector<24x256xbf16>, vector<256x256xbf16>, vector<24x256xf32> -> vector<24x256xf32>
    %c0_52 = arith.constant 0 : index
    %c0_53 = arith.constant 0 : index
    %c0_54 = arith.constant 0 : index
    %141 = vector.load %arg8[%c0_52, %c0_53, %c0_54] : memref<1x1x256xf32, #tpu.memory_space<vmem>>, vector<1x1x256xf32>
    %142 = vector.shape_cast %141 : vector<1x1x256xf32> to vector<1x256xf32>
    %143 = vector.broadcast %142 : vector<1x256xf32> to vector<24x256xf32>
    %144 = arith.addf %140, %143 : vector<24x256xf32>
    %145 = arith.addf %3, %144 : vector<24x256xf32>
    %c0_55 = arith.constant 0 : index
    %c0_56 = arith.constant 0 : index
    %c0_57 = arith.constant 0 : index
    %146 = vector.load %arg9[%c0_55, %c0_56, %c0_57] : memref<1x1x256xf32, #tpu.memory_space<vmem>>, vector<1x1x256xf32>
    %147 = vector.shape_cast %146 : vector<1x1x256xf32> to vector<1x256xf32>
    %c0_58 = arith.constant 0 : index
    %c0_59 = arith.constant 0 : index
    %c0_60 = arith.constant 0 : index
    %148 = vector.load %arg10[%c0_58, %c0_59, %c0_60] : memref<1x1x256xf32, #tpu.memory_space<vmem>>, vector<1x1x256xf32>
    %149 = vector.shape_cast %148 : vector<1x1x256xf32> to vector<1x256xf32>
    %cst_61 = arith.constant dense<0.000000e+00> : vector<24xf32>
    %150 = vector.multi_reduction <add>, %145, %cst_61 [1] : vector<24x256xf32> to vector<24xf32>
    %151 = vector.shape_cast %150 : vector<24xf32> to vector<24x1xf32>
    %cst_62 = arith.constant 2.560000e+02 : f32
    %152 = vector.broadcast %cst_62 : f32 to vector<24x1xf32>
    %153 = arith.divf %151, %152 : vector<24x1xf32>
    %154 = vector.broadcast %153 : vector<24x1xf32> to vector<24x256xf32>
    %155 = arith.subf %145, %154 : vector<24x256xf32>
    %156 = arith.mulf %155, %155 : vector<24x256xf32>
    %cst_63 = arith.constant dense<0.000000e+00> : vector<24xf32>
    %157 = vector.multi_reduction <add>, %156, %cst_63 [1] : vector<24x256xf32> to vector<24xf32>
    %158 = vector.shape_cast %157 : vector<24xf32> to vector<24x1xf32>
    %cst_64 = arith.constant 2.560000e+02 : f32
    %159 = vector.broadcast %cst_64 : f32 to vector<24x1xf32>
    %160 = arith.divf %158, %159 : vector<24x1xf32>
    %161 = vector.broadcast %153 : vector<24x1xf32> to vector<24x256xf32>
    %162 = arith.subf %145, %161 : vector<24x256xf32>
    %cst_65 = arith.constant 9.99999996E-13 : f32
    %163 = vector.broadcast %cst_65 : f32 to vector<24x1xf32>
    %164 = arith.addf %160, %163 : vector<24x1xf32>
    %165 = math.rsqrt %164 : vector<24x1xf32>
    %166 = vector.broadcast %165 : vector<24x1xf32> to vector<24x256xf32>
    %167 = arith.mulf %162, %166 : vector<24x256xf32>
    %168 = vector.broadcast %147 : vector<1x256xf32> to vector<24x256xf32>
    %169 = arith.mulf %167, %168 : vector<24x256xf32>
    %170 = vector.broadcast %149 : vector<1x256xf32> to vector<24x256xf32>
    %171 = arith.addf %169, %170 : vector<24x256xf32>
    %172 = arith.truncf %171 : vector<24x256xf32> to vector<24x256xbf16>
    %c0_66 = arith.constant 0 : index
    %c0_67 = arith.constant 0 : index
    %c0_68 = arith.constant 0 : index
    %173 = vector.load %arg11[%c0_66, %c0_67, %c0_68] : memref<1x256x1024xbf16, #tpu.memory_space<vmem>>, vector<1x256x1024xbf16>
    %174 = vector.shape_cast %173 : vector<1x256x1024xbf16> to vector<256x1024xbf16>
    %cst_69 = arith.constant dense<0.000000e+00> : vector<24x1024xf32>
    %175 = tpu.matmul %172, %174, %cst_69 {dimension_numbers = #tpu.dot_dimension_numbers<[1], [0], [0], [1], [0, 0, 1, 1], [], []>} : vector<24x256xbf16>, vector<256x1024xbf16>, vector<24x1024xf32> -> vector<24x1024xf32>
    %c0_70 = arith.constant 0 : index
    %c0_71 = arith.constant 0 : index
    %c0_72 = arith.constant 0 : index
    %176 = vector.load %arg12[%c0_70, %c0_71, %c0_72] : memref<1x1x1024xf32, #tpu.memory_space<vmem>>, vector<1x1x1024xf32>
    %177 = vector.shape_cast %176 : vector<1x1x1024xf32> to vector<1x1024xf32>
    %178 = vector.broadcast %177 : vector<1x1024xf32> to vector<24x1024xf32>
    %179 = arith.addf %175, %178 : vector<24x1024xf32>
    %cst_73 = arith.constant 5.000000e-01 : f32
    %180 = vector.broadcast %cst_73 : f32 to vector<24x1024xf32>
    %181 = arith.mulf %180, %179 : vector<24x1024xf32>
    %cst_74 = arith.constant 0.707106769 : f32
    %182 = vector.broadcast %cst_74 : f32 to vector<24x1024xf32>
    %183 = arith.mulf %179, %182 : vector<24x1024xf32>
    %184 = math.erf %183 : vector<24x1024xf32>
    %cst_75 = arith.constant 1.000000e+00 : f32
    %185 = vector.broadcast %cst_75 : f32 to vector<24x1024xf32>
    %186 = arith.addf %185, %184 : vector<24x1024xf32>
    %187 = arith.mulf %181, %186 : vector<24x1024xf32>
    %188 = arith.truncf %187 : vector<24x1024xf32> to vector<24x1024xbf16>
    %c0_76 = arith.constant 0 : index
    %c0_77 = arith.constant 0 : index
    %c0_78 = arith.constant 0 : index
    %189 = vector.load %arg13[%c0_76, %c0_77, %c0_78] : memref<1x1024x256xbf16, #tpu.memory_space<vmem>>, vector<1x1024x256xbf16>
    %190 = vector.shape_cast %189 : vector<1x1024x256xbf16> to vector<1024x256xbf16>
    %cst_79 = arith.constant dense<0.000000e+00> : vector<24x256xf32>
    %191 = tpu.matmul %188, %190, %cst_79 {dimension_numbers = #tpu.dot_dimension_numbers<[1], [0], [0], [1], [0, 0, 1, 1], [], []>} : vector<24x1024xbf16>, vector<1024x256xbf16>, vector<24x256xf32> -> vector<24x256xf32>
    %c0_80 = arith.constant 0 : index
    %c0_81 = arith.constant 0 : index
    %c0_82 = arith.constant 0 : index
    %192 = vector.load %arg14[%c0_80, %c0_81, %c0_82] : memref<1x1x256xf32, #tpu.memory_space<vmem>>, vector<1x1x256xf32>
    %193 = vector.shape_cast %192 : vector<1x1x256xf32> to vector<1x256xf32>
    %194 = vector.broadcast %193 : vector<1x256xf32> to vector<24x256xf32>
    %195 = arith.addf %191, %194 : vector<24x256xf32>
    %196 = arith.addf %145, %195 : vector<24x256xf32>
    %c0_83 = arith.constant 0 : index
    %c0_84 = arith.constant 0 : index
    %197 = vector.load %arg18[%c0_83, %c0_84] : memref<24x256xf32, #tpu.memory_space<vmem>>, vector<24x256xf32>
    tpu.vector_store %arg18[%c0_83, %c0_84], %196 {strides = array<i32>} : memref<24x256xf32, #tpu.memory_space<vmem>>, vector<24x256xf32>,
    %c1_i32 = arith.constant 1 : i32
    %198 = arith.cmpi eq, %arg1, %c1_i32 : i32
    %199 = arith.extui %198 : i1 to i32
    %c0_i32_85 = arith.constant 0 : i32
    %200 = arith.cmpi ne, %199, %c0_i32_85 : i32
    scf.if %200 {
      %c0_86 = arith.constant 0 : index
      %c0_87 = arith.constant 0 : index
      %201 = vector.load %arg15[%c0_86, %c0_87] : memref<1x256xf32, #tpu.memory_space<vmem>>, vector<1x256xf32>
      %c0_88 = arith.constant 0 : index
      %c0_89 = arith.constant 0 : index
      %202 = vector.load %arg16[%c0_88, %c0_89] : memref<1x256xf32, #tpu.memory_space<vmem>>, vector<1x256xf32>
      %cst_90 = arith.constant dense<0.000000e+00> : vector<24xf32>
      %203 = vector.multi_reduction <add>, %196, %cst_90 [1] : vector<24x256xf32> to vector<24xf32>
      %204 = vector.shape_cast %203 : vector<24xf32> to vector<24x1xf32>
      %cst_91 = arith.constant 2.560000e+02 : f32
      %205 = vector.broadcast %cst_91 : f32 to vector<24x1xf32>
      %206 = arith.divf %204, %205 : vector<24x1xf32>
      %207 = vector.broadcast %206 : vector<24x1xf32> to vector<24x256xf32>
      %208 = arith.subf %196, %207 : vector<24x256xf32>
      %209 = arith.mulf %208, %208 : vector<24x256xf32>
      %cst_92 = arith.constant dense<0.000000e+00> : vector<24xf32>
      %210 = vector.multi_reduction <add>, %209, %cst_92 [1] : vector<24x256xf32> to vector<24xf32>
      %211 = vector.shape_cast %210 : vector<24xf32> to vector<24x1xf32>
      %cst_93 = arith.constant 2.560000e+02 : f32
      %212 = vector.broadcast %cst_93 : f32 to vector<24x1xf32>
      %213 = arith.divf %211, %212 : vector<24x1xf32>
      %214 = vector.broadcast %206 : vector<24x1xf32> to vector<24x256xf32>
      %215 = arith.subf %196, %214 : vector<24x256xf32>
      %cst_94 = arith.constant 9.99999996E-13 : f32
      %216 = vector.broadcast %cst_94 : f32 to vector<24x1xf32>
      %217 = arith.addf %213, %216 : vector<24x1xf32>
      %218 = math.rsqrt %217 : vector<24x1xf32>
      %219 = vector.broadcast %218 : vector<24x1xf32> to vector<24x256xf32>
      %220 = arith.mulf %215, %219 : vector<24x256xf32>
      %221 = vector.broadcast %201 : vector<1x256xf32> to vector<24x256xf32>
      %222 = arith.mulf %220, %221 : vector<24x256xf32>
      %223 = vector.broadcast %202 : vector<1x256xf32> to vector<24x256xf32>
      %224 = arith.addf %222, %223 : vector<24x256xf32>
      %c0_95 = arith.constant 0 : index
      %c0_96 = arith.constant 0 : index
      %c0_97 = arith.constant 0 : index
      %225 = vector.load %arg17[%c0_95, %c0_96, %c0_97] : memref<1x24x256xf32, #tpu.memory_space<vmem>>, vector<1x24x256xf32>
      %226 = vector.shape_cast %225 : vector<1x24x256xf32> to vector<24x256xf32>
      %227 = vector.shape_cast %224 : vector<24x256xf32> to vector<1x24x256xf32>
      tpu.vector_store %arg17[%c0_95, %c0_96, %c0_97], %227 {strides = array<i32>} : memref<1x24x256xf32, #tpu.memory_space<vmem>>, vector<1x24x256xf32>,
    } else {
    }
    return
  }
  func.func @transform_0(%arg0: i32, %arg1: i32) -> (i32, i32, i32) {
    %c0_i32 = arith.constant 0 : i32
    %c0_i32_0 = arith.constant 0 : i32
    %c0_i32_1 = arith.constant 0 : i32
    return %arg0, %c0_i32, %c0_i32_0 : i32, i32, i32
  }
  func.func @transform_1(%arg0: i32, %arg1: i32) -> (i32, i32, i32) {
    %c0_i32 = arith.constant 0 : i32
    %c0_i32_0 = arith.constant 0 : i32
    %c0_i32_1 = arith.constant 0 : i32
    return %arg1, %c0_i32, %c0_i32_0 : i32, i32, i32
  }
  func.func @transform_2(%arg0: i32, %arg1: i32) -> (i32, i32, i32) {
    %c0_i32 = arith.constant 0 : i32
    %c0_i32_0 = arith.constant 0 : i32
    %c0_i32_1 = arith.constant 0 : i32
    return %arg1, %c0_i32, %c0_i32_0 : i32, i32, i32
  }
  func.func @transform_3(%arg0: i32, %arg1: i32) -> (i32, i32, i32) {
    %c0_i32 = arith.constant 0 : i32
    %c0_i32_0 = arith.constant 0 : i32
    %c0_i32_1 = arith.constant 0 : i32
    return %arg1, %c0_i32, %c0_i32_0 : i32, i32, i32
  }
  func.func @transform_4(%arg0: i32, %arg1: i32) -> (i32, i32, i32) {
    %c0_i32 = arith.constant 0 : i32
    %c0_i32_0 = arith.constant 0 : i32
    %c0_i32_1 = arith.constant 0 : i32
    return %arg1, %c0_i32, %c0_i32_0 : i32, i32, i32
  }
  func.func @transform_5(%arg0: i32, %arg1: i32) -> (i32, i32, i32) {
    %c0_i32 = arith.constant 0 : i32
    %c0_i32_0 = arith.constant 0 : i32
    %c0_i32_1 = arith.constant 0 : i32
    return %arg1, %c0_i32, %c0_i32_0 : i32, i32, i32
  }
  func.func @transform_6(%arg0: i32, %arg1: i32) -> (i32, i32, i32) {
    %c0_i32 = arith.constant 0 : i32
    %c0_i32_0 = arith.constant 0 : i32
    %c0_i32_1 = arith.constant 0 : i32
    return %arg1, %c0_i32, %c0_i32_0 : i32, i32, i32
  }
  func.func @transform_7(%arg0: i32, %arg1: i32) -> (i32, i32, i32) {
    %c0_i32 = arith.constant 0 : i32
    %c0_i32_0 = arith.constant 0 : i32
    %c0_i32_1 = arith.constant 0 : i32
    return %arg1, %c0_i32, %c0_i32_0 : i32, i32, i32
  }
  func.func @transform_8(%arg0: i32, %arg1: i32) -> (i32, i32, i32) {
    %c0_i32 = arith.constant 0 : i32
    %c0_i32_0 = arith.constant 0 : i32
    %c0_i32_1 = arith.constant 0 : i32
    return %arg1, %c0_i32, %c0_i32_0 : i32, i32, i32
  }
  func.func @transform_9(%arg0: i32, %arg1: i32) -> (i32, i32, i32) {
    %c0_i32 = arith.constant 0 : i32
    %c0_i32_0 = arith.constant 0 : i32
    %c0_i32_1 = arith.constant 0 : i32
    return %arg1, %c0_i32, %c0_i32_0 : i32, i32, i32
  }
  func.func @transform_10(%arg0: i32, %arg1: i32) -> (i32, i32, i32) {
    %c0_i32 = arith.constant 0 : i32
    %c0_i32_0 = arith.constant 0 : i32
    %c0_i32_1 = arith.constant 0 : i32
    return %arg1, %c0_i32, %c0_i32_0 : i32, i32, i32
  }
  func.func @transform_11(%arg0: i32, %arg1: i32) -> (i32, i32, i32) {
    %c0_i32 = arith.constant 0 : i32
    %c0_i32_0 = arith.constant 0 : i32
    %c0_i32_1 = arith.constant 0 : i32
    return %arg1, %c0_i32, %c0_i32_0 : i32, i32, i32
  }
  func.func @transform_12(%arg0: i32, %arg1: i32) -> (i32, i32, i32) {
    %c0_i32 = arith.constant 0 : i32
    %c0_i32_0 = arith.constant 0 : i32
    %c0_i32_1 = arith.constant 0 : i32
    return %arg1, %c0_i32, %c0_i32_0 : i32, i32, i32
  }
  func.func @transform_13(%arg0: i32, %arg1: i32) -> (i32, i32) {
    %c0_i32 = arith.constant 0 : i32
    %c0_i32_0 = arith.constant 0 : i32
    %c0_i32_1 = arith.constant 0 : i32
    return %c0_i32, %c0_i32_0 : i32, i32
  }
  func.func @transform_14(%arg0: i32, %arg1: i32) -> (i32, i32) {
    %c0_i32 = arith.constant 0 : i32
    %c0_i32_0 = arith.constant 0 : i32
    %c0_i32_1 = arith.constant 0 : i32
    return %c0_i32, %c0_i32_0 : i32, i32
  }
  func.func @transform_15(%arg0: i32, %arg1: i32) -> (i32, i32, i32) {
    %c0_i32 = arith.constant 0 : i32
    %c0_i32_0 = arith.constant 0 : i32
    %c0_i32_1 = arith.constant 0 : i32
    return %arg0, %c0_i32, %c0_i32_0 : i32, i32, i32
  }
}

module attributes {stable_mosaic.version = 11 : i64} {
  func.func @_embed_kernel(%arg0: i32, %arg1: memref<1x24x768xbf16, #tpu.memory_space<vmem>>, %arg2: memref<768x256xbf16, #tpu.memory_space<vmem>>, %arg3: memref<24x256xf32, #tpu.memory_space<vmem>>, %arg4: memref<1x24x256xf32, #tpu.memory_space<vmem>>) attributes {dimension_semantics = [#tpu.dimension_semantics<parallel>], iteration_bounds = array<i64: 2>, scalar_prefetch = 0 : i64, scratch_operands = 0 : i64, tpu.core_type = #tpu.core_type<tc>, window_params = [{transform_indices = @transform_0, window_bounds = array<i64: 1, 24, 768>}, {pipeline_mode = #tpu.pipeline_mode<synchronous>, transform_indices = @transform_1, window_bounds = array<i64: 768, 256>}, {pipeline_mode = #tpu.pipeline_mode<synchronous>, transform_indices = @transform_2, window_bounds = array<i64: 24, 256>}, {transform_indices = @transform_3, window_bounds = array<i64: 1, 24, 256>}]} {
    %c0 = arith.constant 0 : index
    %c0_0 = arith.constant 0 : index
    %c0_1 = arith.constant 0 : index
    %0 = vector.load %arg1[%c0, %c0_0, %c0_1] : memref<1x24x768xbf16, #tpu.memory_space<vmem>>, vector<1x24x768xbf16>
    %1 = vector.shape_cast %0 : vector<1x24x768xbf16> to vector<24x768xbf16>
    %c0_2 = arith.constant 0 : index
    %c0_3 = arith.constant 0 : index
    %2 = vector.load %arg2[%c0_2, %c0_3] : memref<768x256xbf16, #tpu.memory_space<vmem>>, vector<768x256xbf16>
    %cst = arith.constant dense<0.000000e+00> : vector<24x256xf32>
    %3 = tpu.matmul %1, %2, %cst {dimension_numbers = #tpu.dot_dimension_numbers<[1], [0], [0], [1], [0, 0, 1, 1], [], []>} : vector<24x768xbf16>, vector<768x256xbf16>, vector<24x256xf32> -> vector<24x256xf32>
    %c0_4 = arith.constant 0 : index
    %c0_5 = arith.constant 0 : index
    %4 = vector.load %arg3[%c0_4, %c0_5] : memref<24x256xf32, #tpu.memory_space<vmem>>, vector<24x256xf32>
    %5 = arith.addf %3, %4 : vector<24x256xf32>
    %c0_6 = arith.constant 0 : index
    %c0_7 = arith.constant 0 : index
    %c0_8 = arith.constant 0 : index
    %6 = vector.load %arg4[%c0_6, %c0_7, %c0_8] : memref<1x24x256xf32, #tpu.memory_space<vmem>>, vector<1x24x256xf32>
    %7 = vector.shape_cast %6 : vector<1x24x256xf32> to vector<24x256xf32>
    %8 = vector.shape_cast %5 : vector<24x256xf32> to vector<1x24x256xf32>
    tpu.vector_store %arg4[%c0_6, %c0_7, %c0_8], %8 {strides = array<i32>} : memref<1x24x256xf32, #tpu.memory_space<vmem>>, vector<1x24x256xf32>,
    return
  }
  func.func @transform_0(%arg0: i32) -> (i32, i32, i32) {
    %c0_i32 = arith.constant 0 : i32
    %c0_i32_0 = arith.constant 0 : i32
    %c0_i32_1 = arith.constant 0 : i32
    return %arg0, %c0_i32, %c0_i32_0 : i32, i32, i32
  }
  func.func @transform_1(%arg0: i32) -> (i32, i32) {
    %c0_i32 = arith.constant 0 : i32
    %c0_i32_0 = arith.constant 0 : i32
    %c0_i32_1 = arith.constant 0 : i32
    return %c0_i32, %c0_i32_0 : i32, i32
  }
  func.func @transform_2(%arg0: i32) -> (i32, i32) {
    %c0_i32 = arith.constant 0 : i32
    %c0_i32_0 = arith.constant 0 : i32
    %c0_i32_1 = arith.constant 0 : i32
    return %c0_i32, %c0_i32_0 : i32, i32
  }
  func.func @transform_3(%arg0: i32) -> (i32, i32, i32) {
    %c0_i32 = arith.constant 0 : i32
    %c0_i32_0 = arith.constant 0 : i32
    %c0_i32_1 = arith.constant 0 : i32
    return %arg0, %c0_i32, %c0_i32_0 : i32, i32, i32
  }
}

</mosaic_0001>

<llo_original>
// kernel: phikon_forward.2
$region0: #{phikon_forward.2}
  #allocation0 [shape = 'u32[]', space=smem, size = 0x4, offset = 0x4, fixed_abs, tag = 'smem constant byte address 0x4 - core index']
  #allocation1 [shape = 'u32[144,128]{1,0:T(1,128)}', space=vmem, size = 0x12000, scoped, tag = 'internal scratch']
  %s0 = inlined_call_operand.vmem [shape: bf16[2,24,768], index: 0, kind: input, shape index: {}]
  %s1 = inlined_call_operand.vmem [shape: bf16[768,256], index: 1, kind: input, shape index: {}]
  %s2 = inlined_call_operand.vmem [shape: f32[24,256], index: 2, kind: input, shape index: {}]
  %s3 = inlined_call_operand.vmem [shape: f32[2,24,256], index: 3, kind: output, shape index: {}]
  %s4 = sld [smem:[#allocation0]]
  $region45: #{phikon_forward.2} parent=0
    _
  %s6 = ssub.s32 1, %s4
  %s7 = scalar_select 0, %s6, %s4
  loop: start=0, step=1, limit=4
  $region2: #{phikon_forward.2} parent=0 // loop_pre_header
    _
  $region3: #{phikon_forward.2} parent=0 // loop_header
    %s9 = sphi 0, %s13
    %p10 = scmp.ge.s32.totalorder %s9, 4
    %s19 = sphi 0, %s21
    %s22 = sphi 0, %s19
    %s23 = sphi 0, %s22
    %s39 = sphi 0, %s23
    %s43 = sphi 0, %s43
    %s45 = sphi 0, %s43
    %s46 = sphi 0, %s45
    %s60 = sphi 0, %s46
    %s64 = sphi 0, %s64
    %s66 = sphi 0, %s64
    %s67 = sphi 0, %s66
    %s81 = sphi 0, %s67
    %s87 = sphi 0, %s89
    %s90 = sphi 0, %s87
    %s91 = sphi 0, %s90
    %s107 = sphi 0, %s91
  $region4: #{phikon_forward.2} parent=0 // loop_header_branch
    %12 = sbr.rel (%p10) target = $region8
  $region5: #{phikon_forward.2} parent=0 // loop_body
    %s14 = ssub.s32 %s9, 1
    %s15 = ssub.s32 %s9, 2
    %s16 = sadd.s32 %s9, 1
    %s17 = ssub.s32 %s9, %s16
    %p18 = scmp.eq.s32.totalorder %s17, 0
    %s20 = sadd.s32 %s19, 1
    %s21 = scalar_select %p18, %s19, %s20
    %p24 = pneg %p18
    %p25 = scmp.eq.s32.totalorder %s9, 1
    %p26 = por %p24, %p25
    %p27 = scmp.ne.s32.totalorder %s19, %s22
    %p28 = scmp.eq.s32.totalorder %s9, 0
    %p29 = por %p27, %p28
    %p30 = scmp.ne.s32.totalorder %s19, %s22
    %p31 = scmp.eq.s32.totalorder %s14, 1
    %p32 = por %p30, %p31
    %p33 = scmp.ne.s32.totalorder %s22, %s23
    %p34 = scmp.eq.s32.totalorder %s14, 0
    %p35 = por %p33, %p34
    %p36 = scmp.ne.s32.totalorder %s22, %s23
    %p37 = scmp.eq.s32.totalorder %s15, 1
    %p38 = por %p36, %p37
    %p40 = scmp.ne.s32.totalorder %s23, %s39
    %p41 = scmp.eq.s32.totalorder %s15, 0
    %p42 = por %p40, %p41
    %s44 = sadd.s32 %s43, 1
    %p47 = scmp.eq.s32.totalorder %s9, 1
    %p48 = scmp.ne.s32.totalorder %s43, %s45
    %p49 = scmp.eq.s32.totalorder %s9, 0
    %p50 = por %p48, %p49
    %p51 = scmp.ne.s32.totalorder %s43, %s45
    %p52 = scmp.eq.s32.totalorder %s14, 1
    %p53 = por %p51, %p52
    %p54 = scmp.ne.s32.totalorder %s45, %s46
    %p55 = scmp.eq.s32.totalorder %s14, 0
    %p56 = por %p54, %p55
    %p57 = scmp.ne.s32.totalorder %s45, %s46
    %p58 = scmp.eq.s32.totalorder %s15, 1
    %p59 = por %p57, %p58
    %p61 = scmp.ne.s32.totalorder %s46, %s60
    %p62 = scmp.eq.s32.totalorder %s15, 0
    %p63 = por %p61, %p62
    %s65 = sadd.s32 %s64, 1
    %p68 = scmp.eq.s32.totalorder %s9, 1
    %p69 = scmp.ne.s32.totalorder %s64, %s66
    %p70 = scmp.eq.s32.totalorder %s9, 0
    %p71 = por %p69, %p70
    %p72 = scmp.ne.s32.totalorder %s64, %s66
    %p73 = scmp.eq.s32.totalorder %s14, 1
    %p74 = por %p72, %p73
    %p75 = scmp.ne.s32.totalorder %s66, %s67
    %p76 = scmp.eq.s32.totalorder %s14, 0
    %p77 = por %p75, %p76
    %p78 = scmp.ne.s32.totalorder %s66, %s67
    %p79 = scmp.eq.s32.totalorder %s15, 1
    %p80 = por %p78, %p79
    %p82 = scmp.ne.s32.totalorder %s67, %s81
    %p83 = scmp.eq.s32.totalorder %s15, 0
    %p84 = por %p82, %p83
    %s85 = ssub.s32 %s9, %s16
    %p86 = scmp.eq.s32.totalorder %s85, 0
    %s88 = sadd.s32 %s87, 1
    %s89 = scalar_select %p86, %s87, %s88
    %p92 = pneg %p86
    %p93 = scmp.eq.s32.totalorder %s9, 1
    %p94 = por %p92, %p93
    %p95 = scmp.ne.s32.totalorder %s87, %s90
    %p96 = scmp.eq.s32.totalorder %s9, 0
    %p97 = por %p95, %p96
    %p98 = scmp.ne.s32.totalorder %s87, %s90
    %p99 = scmp.eq.s32.totalorder %s14, 1
    %p100 = por %p98, %p99
    %p101 = scmp.ne.s32.totalorder %s90, %s91
    %p102 = scmp.eq.s32.totalorder %s14, 0
    %p103 = por %p101, %p102
    %p104 = scmp.ne.s32.totalorder %s90, %s91
    %p105 = scmp.eq.s32.totalorder %s15, 1
    %p106 = por %p104, %p105
    %p108 = scmp.ne.s32.totalorder %s91, %s107
    %p109 = scmp.eq.s32.totalorder %s15, 0
    %p110 = por %p108, %p109
    %p111 = scmp.le.s32.totalorder 1, %s9
    %p112 = scmp.lt.s32.totalorder %s9, 3
    %p113 = pnand %p111, %p112
    %p114 = pneg %p113
    // Predicated region
    $region9: #{phikon_forward.2} parent=5 // pred_check
      _
    $region10: #{phikon_forward.2} parent=5 // pred_check_branch
      %116 = sbr.rel (%p113) target = $region12
    $region11: #{phikon_forward.2} parent=5 // pred_region
      %s117 = ssub.s32 %s9, 1
      // Predicated region
      $region13: #{phikon_forward.2} parent=11 // pred_check
        %p118 = pneg %p56
      $region14: #{phikon_forward.2} parent=11 // pred_check_branch
        %120 = sbr.rel (%p118) target = $region16
      $region15: #{phikon_forward.2} parent=11 // pred_region
        _
      $region16: #{phikon_forward.2} parent=11 // pred_fallthru
        _
      // Predicated region
      $region17: #{phikon_forward.2} parent=11 // pred_check
        %p121 = pneg %p77
      $region18: #{phikon_forward.2} parent=11 // pred_check_branch
        %123 = sbr.rel (%p121) target = $region20
      $region19: #{phikon_forward.2} parent=11 // pred_region
        _
      $region20: #{phikon_forward.2} parent=11 // pred_fallthru
        _
    $region12: #{phikon_forward.2} parent=5 // pred_fallthru
      _
    %p124 = scmp.lt.s32.totalorder %s9, 2
    // Predicated region
    $region21: #{phikon_forward.2} parent=5 // pred_check
      %p125 = pneg %p124
    $region22: #{phikon_forward.2} parent=5 // pred_check_branch
      %127 = sbr.rel (%p125) target = $region24
    $region23: #{phikon_forward.2} parent=5 // pred_region
      // Predicated region
      $region25: #{phikon_forward.2} parent=23 // pred_check
        %p128 = pneg %p29
      $region26: #{phikon_forward.2} parent=23 // pred_check_branch
        %130 = sbr.rel (%p128) target = $region28
      $region27: #{phikon_forward.2} parent=23 // pred_region
        %p131 = scmp.lt.s32.totalorder %s9, 1
        %s132 = scalar_select %p131, %s9, 1
        %s133 = smul.addr %s132, 18
        %s134 = smul.addr %s133, 4
        %s135 = scalar_lea.vmem %s0, %s134
      $region28: #{phikon_forward.2} parent=23 // pred_fallthru
        _
    $region24: #{phikon_forward.2} parent=5 // pred_fallthru
      _
    %p136 = scmp.le.s32.totalorder 1, %s9
    %p137 = scmp.lt.s32.totalorder %s9, 3
    %p138 = pnand %p136, %p137
    %p139 = pneg %p138
    // Predicated region
    $region29: #{phikon_forward.2} parent=5 // pred_check
      _
    $region30: #{phikon_forward.2} parent=5 // pred_check_branch
      %141 = sbr.rel (%p138) target = $region32
    $region31: #{phikon_forward.2} parent=5 // pred_region
      %s142 = ssub.s32 %s9, 1
      %p143 = scmp.lt.s32.totalorder %s14, 1
      %s144 = scalar_select %p143, %s14, 1
      %s145 = smul.addr %s144, 18
      %s146 = smul.addr %s145, 4
      %s147 = scalar_lea.vmem %s0, %s146
      %p148 = pneg %p35
      %p149 = pneg %p32
      %p150 = pneg %p56
      %p151 = pneg %p53
      %p152 = pneg %p77
      %p153 = pneg %p74
      %p154 = pneg %p103
      %p155 = pneg %p100
      %p156 = scmp.lt.s32.totalorder %s14, 1
      %s157 = scalar_select %p156, %s14, 1
      %s158 = smul.addr %s157, 6
      %s159 = smul.addr %s158, 8
      %s160 = scalar_lea.vmem %s3, %s159
      %p161 = scmp.lt.s32.totalorder %s14, 1
      %s162 = scalar_select %p161, %s14, 1
      %s163 = smul.addr %s162, 18
      %s164 = smul.addr %s163, 4
      %s165 = scalar_lea.vmem %s0, %s164
      %p166 = scmp.lt.s32.totalorder %s14, 1
      %s167 = scalar_select %p166, %s14, 1
      %s168 = smul.addr %s167, 6
      %s169 = smul.addr %s168, 8
      %s170 = scalar_lea.vmem %s3, %s169
      %v171 = vld [vmem:[%s165] sm:$0xff]
      %v172 = vld [vmem:[%s165 + $0x8] sm:$0xff]
      %v173 = vld [vmem:[%s165 + $0x10] sm:$0xff]
      %v174 = vld [vmem:[%s165 + $0x18] sm:$0xff]
      %v175 = vld [vmem:[%s165 + $0x20] sm:$0xff]
      %v176 = vld [vmem:[%s165 + $0x28] sm:$0xff]
      %v177 = vld [vmem:[%s165 + $0x30] sm:$0xff]
      %v178 = vld [vmem:[%s165 + $0x38] sm:$0xff]
      %v179 = vld [vmem:[%s165 + $0x40] sm:$0xff]
      %v180 = vld [vmem:[%s1] sm:$0xff]
      %v181 = vld [vmem:[%s1 + $0x8] sm:$0xff]
      %v182 = vld [vmem:[%s1 + $0x10] sm:$0xff]
      %v183 = vld [vmem:[%s1 + $0x18] sm:$0xff]
      %v184 = vld [vmem:[%s1 + $0x20] sm:$0xff]
      %v185 = vld [vmem:[%s1 + $0x28] sm:$0xff]
      %v186 = vld [vmem:[%s1 + $0x30] sm:$0xff]
      %v187 = vld [vmem:[%s1 + $0x38] sm:$0xff]
      %v188 = vld [vmem:[%s1 + $0x40] sm:$0xff]
      %v189 = vld [vmem:[%s1 + $0x48] sm:$0xff]
      %v190 = vld [vmem:[%s1 + $0x50] sm:$0xff]
      %v191 = vld [vmem:[%s1 + $0x58] sm:$0xff]
      %v192 = vld [vmem:[%s1 + $0x60] sm:$0xff]
      %v193 = vld [vmem:[%s1 + $0x68] sm:$0xff]
      %v194 = vld [vmem:[%s1 + $0x70] sm:$0xff]
      %v195 = vld [vmem:[%s1 + $0x78] sm:$0xff]
      %v196 = vld [vmem:[%s1 + $0x80] sm:$0xff]
      %v197 = vld [vmem:[%s1 + $0x88] sm:$0xff]
      %v198 = vld [vmem:[%s1 + $0x90] sm:$0xff]
      %v199 = vld [vmem:[%s1 + $0x98] sm:$0xff]
      %v200 = vld [vmem:[%s1 + $0xa0] sm:$0xff]
      %v201 = vld [vmem:[%s1 + $0xa8] sm:$0xff]
      %v202 = vld [vmem:[%s1 + $0xb0] sm:$0xff]
      %v203 = vld [vmem:[%s1 + $0xb8] sm:$0xff]
      %v204 = vld [vmem:[%s1 + $0xc0] sm:$0xff]
      %v205 = vld [vmem:[%s1 + $0xc8] sm:$0xff]
      %v206 = vld [vmem:[%s1 + $0xd0] sm:$0xff]
      %v207 = vld [vmem:[%s1 + $0xd8] sm:$0xff]
      %v208 = vld [vmem:[%s1 + $0xe0] sm:$0xff]
      %v209 = vld [vmem:[%s1 + $0xe8] sm:$0xff]
      %v210 = vld [vmem:[%s1 + $0xf0] sm:$0xff]
      %v211 = vld [vmem:[%s1 + $0xf8] sm:$0xff]
      %v212 = vld [vmem:[%s1 + $0x100] sm:$0xff]
      %v213 = vld [vmem:[%s1 + $0x108] sm:$0xff]
      %v214 = vld [vmem:[%s1 + $0x110] sm:$0xff]
      %v215 = vld [vmem:[%s1 + $0x118] sm:$0xff]
      %v216 = vld [vmem:[%s1 + $0x120] sm:$0xff]
      %v217 = vld [vmem:[%s1 + $0x128] sm:$0xff]
      %v218 = vld [vmem:[%s1 + $0x130] sm:$0xff]
      %v219 = vld [vmem:[%s1 + $0x138] sm:$0xff]
      %v220 = vld [vmem:[%s1 + $0x140] sm:$0xff]
      %v221 = vld [vmem:[%s1 + $0x148] sm:$0xff]
      %v222 = vld [vmem:[%s1 + $0x150] sm:$0xff]
      %v223 = vld [vmem:[%s1 + $0x158] sm:$0xff]
      %v224 = vld [vmem:[%s1 + $0x160] sm:$0xff]
      %v225 = vld [vmem:[%s1 + $0x168] sm:$0xff]
      %v226 = vld [vmem:[%s1 + $0x170] sm:$0xff]
      %v227 = vld [vmem:[%s1 + $0x178] sm:$0xff]
      %v228 = vld [vmem:[%s1 + $0x180] sm:$0xff]
      %v229 = vld [vmem:[%s1 + $0x188] sm:$0xff]
      %v230 = vld [vmem:[%s1 + $0x190] sm:$0xff]
      %v231 = vld [vmem:[%s1 + $0x198] sm:$0xff]
      %v232 = vld [vmem:[%s1 + $0x1a0] sm:$0xff]
      %v233 = vld [vmem:[%s1 + $0x1a8] sm:$0xff]
      %v234 = vld [vmem:[%s1 + $0x1b0] sm:$0xff]
      %v235 = vld [vmem:[%s1 + $0x1b8] sm:$0xff]
      %v236 = vld [vmem:[%s1 + $0x1c0] sm:$0xff]
      %v237 = vld [vmem:[%s1 + $0x1c8] sm:$0xff]
      %v238 = vld [vmem:[%s1 + $0x1d0] sm:$0xff]
      %v239 = vld [vmem:[%s1 + $0x1d8] sm:$0xff]
      %v240 = vld [vmem:[%s1 + $0x1e0] sm:$0xff]
      %v241 = vld [vmem:[%s1 + $0x1e8] sm:$0xff]
      %v242 = vld [vmem:[%s1 + $0x1f0] sm:$0xff]
      %v243 = vld [vmem:[%s1 + $0x1f8] sm:$0xff]
      %v244 = vld [vmem:[%s1 + $0x200] sm:$0xff]
      %v245 = vld [vmem:[%s1 + $0x208] sm:$0xff]
      %v246 = vld [vmem:[%s1 + $0x210] sm:$0xff]
      %v247 = vld [vmem:[%s1 + $0x218] sm:$0xff]
      %v248 = vld [vmem:[%s1 + $0x220] sm:$0xff]
      %v249 = vld [vmem:[%s1 + $0x228] sm:$0xff]
      %v250 = vld [vmem:[%s1 + $0x230] sm:$0xff]
      %v251 = vld [vmem:[%s1 + $0x238] sm:$0xff]
      %v252 = vld [vmem:[%s1 + $0x240] sm:$0xff]
      %v253 = vld [vmem:[%s1 + $0x248] sm:$0xff]
      %v254 = vld [vmem:[%s1 + $0x250] sm:$0xff]
      %v255 = vld [vmem:[%s1 + $0x258] sm:$0xff]
      %v256 = vld [vmem:[%s1 + $0x260] sm:$0xff]
      %v257 = vld [vmem:[%s1 + $0x268] sm:$0xff]
      %v258 = vld [vmem:[%s1 + $0x270] sm:$0xff]
      %v259 = vld [vmem:[%s1 + $0x278] sm:$0xff]
      %v260 = vld [vmem:[%s1 + $0x280] sm:$0xff]
      %v261 = vld [vmem:[%s1 + $0x288] sm:$0xff]
      %v262 = vld [vmem:[%s1 + $0x290] sm:$0xff]
      %v263 = vld [vmem:[%s1 + $0x298] sm:$0xff]
      %v264 = vld [vmem:[%s1 + $0x2a0] sm:$0xff]
      %v265 = vld [vmem:[%s1 + $0x2a8] sm:$0xff]
      %v266 = vld [vmem:[%s1 + $0x2b0] sm:$0xff]
      %v267 = vld [vmem:[%s1 + $0x2b8] sm:$0xff]
      %v268 = vld [vmem:[%s1 + $0x2c0] sm:$0xff]
      %v269 = vld [vmem:[%s1 + $0x2c8] sm:$0xff]
      %v270 = vld [vmem:[%s1 + $0x2d0] sm:$0xff]
      %v271 = vld [vmem:[%s1 + $0x2d8] sm:$0xff]
      %v272 = vld [vmem:[%s1 + $0x2e0] sm:$0xff]
      %v273 = vld [vmem:[%s1 + $0x2e8] sm:$0xff]
      %v274 = vld [vmem:[%s1 + $0x2f0] sm:$0xff]
      %v275 = vld [vmem:[%s1 + $0x2f8] sm:$0xff]
      %v276 = vld [vmem:[%s2] sm:$0xff]
      %v277 = vld [vmem:[%s2 + $0x8] sm:$0xff]
      %v278 = vld [vmem:[%s2 + $0x10] sm:$0xff]
      %v279 = vld [vmem:[%s2 + $0x18] sm:$0xff]
      %v280 = vld [vmem:[%s2 + $0x20] sm:$0xff]
      %v281 = vld [vmem:[%s2 + $0x28] sm:$0xff]
      %v291 = vunpack.c.l.b16 %v171
      %v292 = vunpack.c.h.b16 %v171
      %v293 = vunpack.c.l.b16 %v172
      %v294 = vunpack.c.h.b16 %v172
      %v295 = vunpack.c.l.b16 %v173
      %v296 = vunpack.c.h.b16 %v173
      %v297 = vunpack.c.l.b16 %v174
      %v298 = vunpack.c.h.b16 %v174
      %v299 = vunpack.c.l.b16 %v175
      %v300 = vunpack.c.h.b16 %v175
      %v301 = vunpack.c.l.b16 %v176
      %v302 = vunpack.c.h.b16 %v176
      %v303 = vunpack.c.l.b16 %v177
      %v304 = vunpack.c.h.b16 %v177
      %v305 = vunpack.c.l.b16 %v178
      %v306 = vunpack.c.h.b16 %v178
      %v307 = vunpack.c.l.b16 %v179
      %v308 = vunpack.c.h.b16 %v179
      %v309 = vpack.c.b16 %v297, %v291
      %v310 = vpack.c.b16 %v298, %v292
      %v311 = vpack.c.b16 %v299, %v293
      %v312 = vpack.c.b16 %v300, %v294
      %v313 = vpack.c.b16 %v301, %v295
      %v314 = vpack.c.b16 %v302, %v296
      %v315 = vpack.c.b16 %v303, %v303
      %v316 = vpack.c.b16 %v304, %v304
      %v317 = vpack.c.b16 %v305, %v305
      %v318 = vpack.c.b16 %v306, %v306
      %v319 = vpack.c.b16 %v307, %v307
      %v320 = vpack.c.b16 %v308, %v308
      %v429 = vunpack.c.l.b16 %v180
      %v430 = vunpack.c.h.b16 %v180
      %v431 = vunpack.c.l.b16 %v181
      %v432 = vunpack.c.h.b16 %v181
      %v433 = vunpack.c.l.b16 %v182
      %v434 = vunpack.c.h.b16 %v182
      %v435 = vunpack.c.l.b16 %v183
      %v436 = vunpack.c.h.b16 %v183
      %v437 = vunpack.c.l.b16 %v184
      %v438 = vunpack.c.h.b16 %v184
      %v439 = vunpack.c.l.b16 %v185
      %v440 = vunpack.c.h.b16 %v185
      %v441 = vunpack.c.l.b16 %v186
      %v442 = vunpack.c.h.b16 %v186
      %v443 = vunpack.c.l.b16 %v187
      %v444 = vunpack.c.h.b16 %v187
      %v445 = vunpack.c.l.b16 %v188
      %v446 = vunpack.c.h.b16 %v188
      %v447 = vunpack.c.l.b16 %v189
      %v448 = vunpack.c.h.b16 %v189
      %v449 = vunpack.c.l.b16 %v190
      %v450 = vunpack.c.h.b16 %v190
      %v451 = vunpack.c.l.b16 %v191
      %v452 = vunpack.c.h.b16 %v191
      %v453 = vunpack.c.l.b16 %v192
      %v454 = vunpack.c.h.b16 %v192
      %v455 = vunpack.c.l.b16 %v193
      %v456 = vunpack.c.h.b16 %v193
      %v457 = vunpack.c.l.b16 %v194
      %v458 = vunpack.c.h.b16 %v194
      %v459 = vunpack.c.l.b16 %v195
      %v460 = vunpack.c.h.b16 %v195
      %v461 = vunpack.c.l.b16 %v196
      %v462 = vunpack.c.h.b16 %v196
      %v463 = vunpack.c.l.b16 %v197
      %v464 = vunpack.c.h.b16 %v197
      %v465 = vunpack.c.l.b16 %v198
      %v466 = vunpack.c.h.b16 %v198
      %v467 = vunpack.c.l.b16 %v199
      %v468 = vunpack.c.h.b16 %v199
      %v469 = vunpack.c.l.b16 %v200
      %v470 = vunpack.c.h.b16 %v200
      %v471 = vunpack.c.l.b16 %v201
      %v472 = vunpack.c.h.b16 %v201
      %v473 = vunpack.c.l.b16 %v202
      %v474 = vunpack.c.h.b16 %v202
      %v475 = vunpack.c.l.b16 %v203
      %v476 = vunpack.c.h.b16 %v203
      %v477 = vunpack.c.l.b16 %v204
      %v478 = vunpack.c.h.b16 %v204
      %v479 = vunpack.c.l.b16 %v205
      %v480 = vunpack.c.h.b16 %v205
      %v481 = vunpack.c.l.b16 %v206
      %v482 = vunpack.c.h.b16 %v206
      %v483 = vunpack.c.l.b16 %v207
      %v484 = vunpack.c.h.b16 %v207
      %v485 = vunpack.c.l.b16 %v208
      %v486 = vunpack.c.h.b16 %v208
      %v487 = vunpack.c.l.b16 %v209
      %v488 = vunpack.c.h.b16 %v209
      %v489 = vunpack.c.l.b16 %v210
      %v490 = vunpack.c.h.b16 %v210
      %v491 = vunpack.c.l.b16 %v211
      %v492 = vunpack.c.h.b16 %v211
      %v493 = vunpack.c.l.b16 %v212
      %v494 = vunpack.c.h.b16 %v212
      %v495 = vunpack.c.l.b16 %v213
      %v496 = vunpack.c.h.b16 %v213
      %v497 = vunpack.c.l.b16 %v214
      %v498 = vunpack.c.h.b16 %v214
      %v499 = vunpack.c.l.b16 %v215
      %v500 = vunpack.c.h.b16 %v215
      %v501 = vunpack.c.l.b16 %v216
      %v502 = vunpack.c.h.b16 %v216
      %v503 = vunpack.c.l.b16 %v217
      %v504 = vunpack.c.h.b16 %v217
      %v505 = vunpack.c.l.b16 %v218
      %v506 = vunpack.c.h.b16 %v218
      %v507 = vunpack.c.l.b16 %v219
      %v508 = vunpack.c.h.b16 %v219
      %v509 = vunpack.c.l.b16 %v220
      %v510 = vunpack.c.h.b16 %v220
      %v511 = vunpack.c.l.b16 %v221
      %v512 = vunpack.c.h.b16 %v221
      %v513 = vunpack.c.l.b16 %v222
      %v514 = vunpack.c.h.b16 %v222
      %v515 = vunpack.c.l.b16 %v223
      %v516 = vunpack.c.h.b16 %v223
      %v517 = vunpack.c.l.b16 %v224
      %v518 = vunpack.c.h.b16 %v224
      %v519 = vunpack.c.l.b16 %v225
      %v520 = vunpack.c.h.b16 %v225
      %v521 = vunpack.c.l.b16 %v226
      %v522 = vunpack.c.h.b16 %v226
      %v523 = vunpack.c.l.b16 %v227
      %v524 = vunpack.c.h.b16 %v227
      %v525 = vunpack.c.l.b16 %v228
      %v526 = vunpack.c.h.b16 %v228
      %v527 = vunpack.c.l.b16 %v229
      %v528 = vunpack.c.h.b16 %v229
      %v529 = vunpack.c.l.b16 %v230
      %v530 = vunpack.c.h.b16 %v230
      %v531 = vunpack.c.l.b16 %v231
      %v532 = vunpack.c.h.b16 %v231
      %v533 = vunpack.c.l.b16 %v232
      %v534 = vunpack.c.h.b16 %v232
      %v535 = vunpack.c.l.b16 %v233
      %v536 = vunpack.c.h.b16 %v233
      %v537 = vunpack.c.l.b16 %v234
      %v538 = vunpack.c.h.b16 %v234
      %v539 = vunpack.c.l.b16 %v235
      %v540 = vunpack.c.h.b16 %v235
      %v541 = vunpack.c.l.b16 %v236
      %v542 = vunpack.c.h.b16 %v236
      %v543 = vunpack.c.l.b16 %v237
      %v544 = vunpack.c.h.b16 %v237
      %v545 = vunpack.c.l.b16 %v238
      %v546 = vunpack.c.h.b16 %v238
      %v547 = vunpack.c.l.b16 %v239
      %v548 = vunpack.c.h.b16 %v239
      %v549 = vunpack.c.l.b16 %v240
      %v550 = vunpack.c.h.b16 %v240
      %v551 = vunpack.c.l.b16 %v241
      %v552 = vunpack.c.h.b16 %v241
      %v553 = vunpack.c.l.b16 %v242
      %v554 = vunpack.c.h.b16 %v242
      %v555 = vunpack.c.l.b16 %v243
      %v556 = vunpack.c.h.b16 %v243
      %v557 = vunpack.c.l.b16 %v244
      %v558 = vunpack.c.h.b16 %v244
      %v559 = vunpack.c.l.b16 %v245
      %v560 = vunpack.c.h.b16 %v245
      %v561 = vunpack.c.l.b16 %v246
      %v562 = vunpack.c.h.b16 %v246
      %v563 = vunpack.c.l.b16 %v247
      %v564 = vunpack.c.h.b16 %v247
      %v565 = vunpack.c.l.b16 %v248
      %v566 = vunpack.c.h.b16 %v248
      %v567 = vunpack.c.l.b16 %v249
      %v568 = vunpack.c.h.b16 %v249
      %v569 = vunpack.c.l.b16 %v250
      %v570 = vunpack.c.h.b16 %v250
      %v571 = vunpack.c.l.b16 %v251
      %v572 = vunpack.c.h.b16 %v251
      %v573 = vunpack.c.l.b16 %v252
      %v574 = vunpack.c.h.b16 %v252
      %v575 = vunpack.c.l.b16 %v253
      %v576 = vunpack.c.h.b16 %v253
      %v577 = vunpack.c.l.b16 %v254
      %v578 = vunpack.c.h.b16 %v254
      %v579 = vunpack.c.l.b16 %v255
      %v580 = vunpack.c.h.b16 %v255
      %v581 = vunpack.c.l.b16 %v256
      %v582 = vunpack.c.h.b16 %v256
      %v583 = vunpack.c.l.b16 %v257
      %v584 = vunpack.c.h.b16 %v257
      %v585 = vunpack.c.l.b16 %v258
      %v586 = vunpack.c.h.b16 %v258
      %v587 = vunpack.c.l.b16 %v259
      %v588 = vunpack.c.h.b16 %v259
      %v589 = vunpack.c.l.b16 %v260
      %v590 = vunpack.c.h.b16 %v260
      %v591 = vunpack.c.l.b16 %v261
      %v592 = vunpack.c.h.b16 %v261
      %v593 = vunpack.c.l.b16 %v262
      %v594 = vunpack.c.h.b16 %v262
      %v595 = vunpack.c.l.b16 %v263
      %v596 = vunpack.c.h.b16 %v263
      %v597 = vunpack.c.l.b16 %v264
      %v598 = vunpack.c.h.b16 %v264
      %v599 = vunpack.c.l.b16 %v265
      %v600 = vunpack.c.h.b16 %v265
      %v601 = vunpack.c.l.b16 %v266
      %v602 = vunpack.c.h.b16 %v266
      %v603 = vunpack.c.l.b16 %v267
      %v604 = vunpack.c.h.b16 %v267
      %v605 = vunpack.c.l.b16 %v268
      %v606 = vunpack.c.h.b16 %v268
      %v607 = vunpack.c.l.b16 %v269
      %v608 = vunpack.c.h.b16 %v269
      %v609 = vunpack.c.l.b16 %v270
      %v610 = vunpack.c.h.b16 %v270
      %v611 = vunpack.c.l.b16 %v271
      %v612 = vunpack.c.h.b16 %v271
      %v613 = vunpack.c.l.b16 %v272
      %v614 = vunpack.c.h.b16 %v272
      %v615 = vunpack.c.l.b16 %v273
      %v616 = vunpack.c.h.b16 %v273
      %v617 = vunpack.c.l.b16 %v274
      %v618 = vunpack.c.h.b16 %v274
      %v619 = vunpack.c.l.b16 %v275
      %v620 = vunpack.c.h.b16 %v275
      %v621 = vpack.c.b16 %v431, %v429
      %v622 = vpack.c.b16 %v432, %v430
      %v623 = vpack.c.b16 %v435, %v433
      %v624 = vpack.c.b16 %v436, %v434
      %v625 = vpack.c.b16 %v439, %v437
      %v626 = vpack.c.b16 %v440, %v438
      %v627 = vpack.c.b16 %v443, %v441
      %v628 = vpack.c.b16 %v444, %v442
      %v629 = vpack.c.b16 %v447, %v445
      %v630 = vpack.c.b16 %v448, %v446
      %v631 = vpack.c.b16 %v451, %v449
      %v632 = vpack.c.b16 %v452, %v450
      %v633 = vpack.c.b16 %v455, %v453
      %v634 = vpack.c.b16 %v456, %v454
      %v635 = vpack.c.b16 %v459, %v457
      %v636 = vpack.c.b16 %v460, %v458
      %v637 = vpack.c.b16 %v463, %v461
      %v638 = vpack.c.b16 %v464, %v462
      %v639 = vpack.c.b16 %v467, %v465
      %v640 = vpack.c.b16 %v468, %v466
      %v641 = vpack.c.b16 %v471, %v469
      %v642 = vpack.c.b16 %v472, %v470
      %v643 = vpack.c.b16 %v475, %v473
      %v644 = vpack.c.b16 %v476, %v474
      %v645 = vpack.c.b16 %v479, %v477
      %v646 = vpack.c.b16 %v480, %v478
      %v647 = vpack.c.b16 %v483, %v481
      %v648 = vpack.c.b16 %v484, %v482
      %v649 = vpack.c.b16 %v487, %v485
      %v650 = vpack.c.b16 %v488, %v486
      %v651 = vpack.c.b16 %v491, %v489
      %v652 = vpack.c.b16 %v492, %v490
      %v653 = vpack.c.b16 %v495, %v493
      %v654 = vpack.c.b16 %v496, %v494
      %v655 = vpack.c.b16 %v499, %v497
      %v656 = vpack.c.b16 %v500, %v498
      %v657 = vpack.c.b16 %v503, %v501
      %v658 = vpack.c.b16 %v504, %v502
      %v659 = vpack.c.b16 %v507, %v505
      %v660 = vpack.c.b16 %v508, %v506
      %v661 = vpack.c.b16 %v511, %v509
      %v662 = vpack.c.b16 %v512, %v510
      %v663 = vpack.c.b16 %v515, %v513
      %v664 = vpack.c.b16 %v516, %v514
      %v665 = vpack.c.b16 %v519, %v517
      %v666 = vpack.c.b16 %v520, %v518
      %v667 = vpack.c.b16 %v523, %v521
      %v668 = vpack.c.b16 %v524, %v522
      %v669 = vpack.c.b16 %v527, %v525
      %v670 = vpack.c.b16 %v528, %v526
      %v671 = vpack.c.b16 %v531, %v529
      %v672 = vpack.c.b16 %v532, %v530
      %v673 = vpack.c.b16 %v535, %v533
      %v674 = vpack.c.b16 %v536, %v534
      %v675 = vpack.c.b16 %v539, %v537
      %v676 = vpack.c.b16 %v540, %v538
      %v677 = vpack.c.b16 %v543, %v541
      %v678 = vpack.c.b16 %v544, %v542
      %v679 = vpack.c.b16 %v547, %v545
      %v680 = vpack.c.b16 %v548, %v546
      %v681 = vpack.c.b16 %v551, %v549
      %v682 = vpack.c.b16 %v552, %v550
      %v683 = vpack.c.b16 %v555, %v553
      %v684 = vpack.c.b16 %v556, %v554
      %v685 = vpack.c.b16 %v559, %v557
      %v686 = vpack.c.b16 %v560, %v558
      %v687 = vpack.c.b16 %v563, %v561
      %v688 = vpack.c.b16 %v564, %v562
      %v689 = vpack.c.b16 %v567, %v565
      %v690 = vpack.c.b16 %v568, %v566
      %v691 = vpack.c.b16 %v571, %v569
      %v692 = vpack.c.b16 %v572, %v570
      %v693 = vpack.c.b16 %v575, %v573
      %v694 = vpack.c.b16 %v576, %v574
      %v695 = vpack.c.b16 %v579, %v577
      %v696 = vpack.c.b16 %v580, %v578
      %v697 = vpack.c.b16 %v583, %v581
      %v698 = vpack.c.b16 %v584, %v582
      %v699 = vpack.c.b16 %v587, %v585
      %v700 = vpack.c.b16 %v588, %v586
      %v701 = vpack.c.b16 %v591, %v589
      %v702 = vpack.c.b16 %v592, %v590
      %v703 = vpack.c.b16 %v595, %v593
      %v704 = vpack.c.b16 %v596, %v594
      %v705 = vpack.c.b16 %v599, %v597
      %v706 = vpack.c.b16 %v600, %v598
      %v707 = vpack.c.b16 %v603, %v601
      %v708 = vpack.c.b16 %v604, %v602
      %v709 = vpack.c.b16 %v607, %v605
      %v710 = vpack.c.b16 %v608, %v606
      %v711 = vpack.c.b16 %v611, %v609
      %v712 = vpack.c.b16 %v612, %v610
      %v713 = vpack.c.b16 %v615, %v613
      %v714 = vpack.c.b16 %v616, %v614
      %v715 = vpack.c.b16 %v619, %v617
      %v716 = vpack.c.b16 %v620, %v618
      %813 = vmatprep.subr.bf16.mxu0 %v636
      %814 = vmatpush1.bf16.msra.mxu0 %v635
      %815 = vmatprep.subr.bf16.mxu0 %v634
      %816 = vmatpush1.bf16.msra.mxu0 %v633
      %817 = vmatprep.subr.bf16.mxu0 %v632
      %818 = vmatpush1.bf16.msra.mxu0 %v631
      %819 = vmatprep.subr.bf16.mxu0 %v630
      %820 = vmatpush1.bf16.msra.mxu0 %v629
      %821 = vmatprep.subr.bf16.mxu0 %v628
      %822 = vmatpush1.bf16.msra.mxu0 %v627
      %823 = vmatprep.subr.bf16.mxu0 %v626
      %824 = vmatpush1.bf16.msra.mxu0 %v625
      %825 = vmatprep.subr.bf16.mxu0 %v624
      %826 = vmatpush1.bf16.msra.mxu0 %v623
      %827 = vmatprep.subr.bf16.mxu0 %v622
      %828 = vmatpush1.bf16.msra.mxu0 %v621
      %829 = vmatprep.subr.bf16.mxu0 %v652
      %830 = vmatpush2.bf16.msra.mxu0 %v651
      %831 = vmatprep.subr.bf16.mxu0 %v650
      %832 = vmatpush2.bf16.msra.mxu0 %v649
      %833 = vmatprep.subr.bf16.mxu0 %v648
      %834 = vmatpush2.bf16.msra.mxu0 %v647
      %835 = vmatprep.subr.bf16.mxu0 %v646
      %836 = vmatpush2.bf16.msra.mxu0 %v645
      %837 = vmatprep.subr.bf16.mxu0 %v644
      %838 = vmatpush2.bf16.msra.mxu0 %v643
      %839 = vmatprep.subr.bf16.mxu0 %v642
      %840 = vmatpush2.bf16.msra.mxu0 %v641
      %841 = vmatprep.subr.bf16.mxu0 %v640
      %842 = vmatpush2.bf16.msra.mxu0 %v639
      %843 = vmatprep.subr.bf16.mxu0 %v638
      %844 = vmatpush2.bf16.msra.mxu0 %v637
      %845 = vmatprep.mubr.bf16.mxu0 %v310
      %846 = vmatmul.mubr.bf16.gmra.mxu0 %v309
      %v847 = vpop.f32.mrf.mxu0
      %v848 = vadd.f32 %v276, %v847
      %v849 = vpop.f32.mrf.mxu0
      %v850 = vadd.f32 %v277, %v849
      %v851 = vpop.f32.mrf.mxu0
      %v852 = vadd.f32 %v278, %v851
      %v853 = vpop.f32.mrf.mxu0
      %v854 = vadd.f32 %v279, %v853
      %855 = vmatprep.mubr.bf16.mxu0 %v316
      %856 = vmatmul.mubr.bf16.gmra.mxu0 %v315
      %v857 = vpop.f32.mrf.mxu0
      %v858 = vadd.f32 %v280, %v857
      %v859 = vpop.f32.mrf.mxu0
      %v860 = vadd.f32 %v281, %v859
      %v861 = vpop.f32.mrf.mxu0
      %v862 = vpop.f32.mrf.mxu0
      %863 = vdwg.mxu0
      %864 = vmatprep.subr.bf16.mxu0 %v668
      %865 = vmatpush1.bf16.msra.mxu0 %v667
      %866 = vmatprep.subr.bf16.mxu0 %v666
      %867 = vmatpush1.bf16.msra.mxu0 %v665
      %868 = vmatprep.subr.bf16.mxu0 %v664
      %869 = vmatpush1.bf16.msra.mxu0 %v663
      %870 = vmatprep.subr.bf16.mxu0 %v662
      %871 = vmatpush1.bf16.msra.mxu0 %v661
      %872 = vmatprep.subr.bf16.mxu0 %v660
      %873 = vmatpush1.bf16.msra.mxu0 %v659
      %874 = vmatprep.subr.bf16.mxu0 %v658
      %875 = vmatpush1.bf16.msra.mxu0 %v657
      %876 = vmatprep.subr.bf16.mxu0 %v656
      %877 = vmatpush1.bf16.msra.mxu0 %v655
      %878 = vmatprep.subr.bf16.mxu0 %v654
      %879 = vmatpush1.bf16.msra.mxu0 %v653
      %880 = vmatprep.subr.bf16.mxu0 %v684
      %881 = vmatpush2.bf16.msra.mxu0 %v683
      %882 = vmatprep.subr.bf16.mxu0 %v682
      %883 = vmatpush2.bf16.msra.mxu0 %v681
      %884 = vmatprep.subr.bf16.mxu0 %v680
      %885 = vmatpush2.bf16.msra.mxu0 %v679
      %886 = vmatprep.subr.bf16.mxu0 %v678
      %887 = vmatpush2.bf16.msra.mxu0 %v677
      %888 = vmatprep.subr.bf16.mxu0 %v676
      %889 = vmatpush2.bf16.msra.mxu0 %v675
      %890 = vmatprep.subr.bf16.mxu0 %v674
      %891 = vmatpush2.bf16.msra.mxu0 %v673
      %892 = vmatprep.subr.bf16.mxu0 %v672
      %893 = vmatpush2.bf16.msra.mxu0 %v671
      %894 = vmatprep.subr.bf16.mxu0 %v670
      %895 = vmatpush2.bf16.msra.mxu0 %v669
      %896 = vmatprep.mubr.bf16.mxu0 %v312
      %897 = vmatmul.mubr.bf16.gmra.mxu0 %v311
      %v898 = vpop.f32.mrf.mxu0
      %v899 = vadd.f32 %v848, %v898
      %v900 = vpop.f32.mrf.mxu0
      %v901 = vadd.f32 %v850, %v900
      %v902 = vpop.f32.mrf.mxu0
      %v903 = vadd.f32 %v852, %v902
      %v904 = vpop.f32.mrf.mxu0
      %v905 = vadd.f32 %v854, %v904
      %906 = vmatprep.mubr.bf16.mxu0 %v318
      %907 = vmatmul.mubr.bf16.gmra.mxu0 %v317
      %v908 = vpop.f32.mrf.mxu0
      %v909 = vadd.f32 %v858, %v908
      %v910 = vpop.f32.mrf.mxu0
      %v911 = vadd.f32 %v860, %v910
      %v912 = vpop.f32.mrf.mxu0
      %v913 = vpop.f32.mrf.mxu0
      %914 = vdwg.mxu0
      %915 = vmatprep.subr.bf16.mxu0 %v700
      %916 = vmatpush1.bf16.msra.mxu0 %v699
      %917 = vmatprep.subr.bf16.mxu0 %v698
      %918 = vmatpush1.bf16.msra.mxu0 %v697
      %919 = vmatprep.subr.bf16.mxu0 %v696
      %920 = vmatpush1.bf16.msra.mxu0 %v695
      %921 = vmatprep.subr.bf16.mxu0 %v694
      %922 = vmatpush1.bf16.msra.mxu0 %v693
      %923 = vmatprep.subr.bf16.mxu0 %v692
      %924 = vmatpush1.bf16.msra.mxu0 %v691
      %925 = vmatprep.subr.bf16.mxu0 %v690
      %926 = vmatpush1.bf16.msra.mxu0 %v689
      %927 = vmatprep.subr.bf16.mxu0 %v688
      %928 = vmatpush1.bf16.msra.mxu0 %v687
      %929 = vmatprep.subr.bf16.mxu0 %v686
      %930 = vmatpush1.bf16.msra.mxu0 %v685
      %931 = vmatprep.subr.bf16.mxu0 %v716
      %932 = vmatpush2.bf16.msra.mxu0 %v715
      %933 = vmatprep.subr.bf16.mxu0 %v714
      %934 = vmatpush2.bf16.msra.mxu0 %v713
      %935 = vmatprep.subr.bf16.mxu0 %v712
      %936 = vmatpush2.bf16.msra.mxu0 %v711
      %937 = vmatprep.subr.bf16.mxu0 %v710
      %938 = vmatpush2.bf16.msra.mxu0 %v709
      %939 = vmatprep.subr.bf16.mxu0 %v708
      %940 = vmatpush2.bf16.msra.mxu0 %v707
      %941 = vmatprep.subr.bf16.mxu0 %v706
      %942 = vmatpush2.bf16.msra.mxu0 %v705
      %943 = vmatprep.subr.bf16.mxu0 %v704
      %944 = vmatpush2.bf16.msra.mxu0 %v703
      %945 = vmatprep.subr.bf16.mxu0 %v702
      %946 = vmatpush2.bf16.msra.mxu0 %v701
      %947 = vmatprep.mubr.bf16.mxu0 %v314
      %948 = vmatmul.mubr.bf16.gmra.mxu0 %v313
      %v949 = vpop.f32.mrf.mxu0
      %v950 = vadd.f32 %v899, %v949
      %v951 = vpop.f32.mrf.mxu0
      %v952 = vadd.f32 %v901, %v951
      %v953 = vpop.f32.mrf.mxu0
      %v954 = vadd.f32 %v903, %v953
      %v955 = vpop.f32.mrf.mxu0
      %v956 = vadd.f32 %v905, %v955
      %957 = vmatprep.mubr.bf16.mxu0 %v320
      %958 = vmatmul.mubr.bf16.gmra.mxu0 %v319
      %v959 = vpop.f32.mrf.mxu0
      %v960 = vadd.f32 %v909, %v959
      %v961 = vpop.f32.mrf.mxu0
      %v962 = vadd.f32 %v911, %v961
      %v963 = vpop.f32.mrf.mxu0
      %v964 = vpop.f32.mrf.mxu0
      %965 = vdwg.mxu0
      %966 = vst [vmem:[%s170] sm:$0xff] %v950
      %967 = vst [vmem:[%s170 + $0x8] sm:$0xff] %v952
      %968 = vst [vmem:[%s170 + $0x10] sm:$0xff] %v954
      %969 = vst [vmem:[%s170 + $0x18] sm:$0xff] %v956
      %970 = vst [vmem:[%s170 + $0x20] sm:$0xff] %v960
      %971 = vst [vmem:[%s170 + $0x28] sm:$0xff] %v962
      %p972 = scmp.lt.s32.totalorder %s14, 1
      %s973 = scalar_select %p972, %s14, 1
      %s974 = smul.addr %s973, 6
      %s975 = smul.addr %s974, 8
      %s976 = scalar_lea.vmem %s3, %s975
      // Predicated region
      $region33: #{phikon_forward.2} parent=31 // pred_check
        %p977 = pneg %p100
      $region34: #{phikon_forward.2} parent=31 // pred_check_branch
        %979 = sbr.rel (%p977) target = $region36
      $region35: #{phikon_forward.2} parent=31 // pred_region
        _
      $region36: #{phikon_forward.2} parent=31 // pred_fallthru
        _
    $region32: #{phikon_forward.2} parent=5 // pred_fallthru
      _
    %p980 = scmp.le.s32.totalorder 2, %s9
    // Predicated region
    $region37: #{phikon_forward.2} parent=5 // pred_check
      %p981 = pneg %p980
    $region38: #{phikon_forward.2} parent=5 // pred_check_branch
      %983 = sbr.rel (%p981) target = $region40
    $region39: #{phikon_forward.2} parent=5 // pred_region
      %s984 = ssub.s32 %s9, 2
      // Predicated region
      $region41: #{phikon_forward.2} parent=39 // pred_check
        %p985 = pneg %p106
      $region42: #{phikon_forward.2} parent=39 // pred_check_branch
        %987 = sbr.rel (%p985) target = $region44
      $region43: #{phikon_forward.2} parent=39 // pred_region
        %p988 = scmp.lt.s32.totalorder %s15, 1
        %s989 = scalar_select %p988, %s15, 1
        %s990 = smul.addr %s989, 6
        %s991 = smul.addr %s990, 8
        %s992 = scalar_lea.vmem %s3, %s991
      $region44: #{phikon_forward.2} parent=39 // pred_fallthru
        _
    $region40: #{phikon_forward.2} parent=5 // pred_fallthru
      _
  $region6: #{phikon_forward.2} parent=0 // loop_footer
    %s13 = sadd.s32 1, %s9
  $region7: #{phikon_forward.2} parent=0 // loop_footer_branch
    %8 = sbr.rel target = $region3
  $region8: #{phikon_forward.2} parent=0 // loop_exit
    _

// kernel: phikon_forward.3
$region0: #{phikon_forward.3}
  #allocation0 [shape = 'u32[]', space=smem, size = 0x4, offset = 0x4, fixed_abs, tag = 'smem constant byte address 0x4 - core index']
  #allocation1 [shape = 'u32[144,128]{1,0:T(1,128)}', space=vmem, size = 0x12000, scoped, tag = 'internal scratch']
  #allocation2 [shape = 'f32[24,256]{1,0:T(8,128)}', space=vmem, size = 0x6000, scoped, tag = 'scratch operand']
  #allocation3 [shape = 'f32[24,256]{1,0:T(8,128)}', space=vmem, size = 0x6000, scoped, tag = 'scratch operand']
  %s0 = inlined_call_operand.vmem [shape: f32[2,24,256], index: 0, kind: input, shape index: {}]
  %s1 = inlined_call_operand.vmem [shape: f32[2,1,256], index: 1, kind: input, shape index: {}]
  %s2 = inlined_call_operand.vmem [shape: f32[2,1,256], index: 2, kind: input, shape index: {}]
  %s3 = inlined_call_operand.hbm [shape: bf16[2,256,768], index: 3, kind: input, shape index: {}]
  %s4 = inlined_call_operand.vmem [shape: f32[2,1,768], index: 4, kind: input, shape index: {}]
  %s5 = inlined_call_operand.vmem [shape: bf16[2,256,256], index: 5, kind: input, shape index: {}]
  %s6 = inlined_call_operand.vmem [shape: f32[2,1,256], index: 6, kind: input, shape index: {}]
  %s7 = inlined_call_operand.vmem [shape: f32[2,1,256], index: 7, kind: input, shape index: {}]
  %s8 = inlined_call_operand.hbm [shape: f32[2,1,256], index: 8, kind: input, shape index: {}]
  %s9 = inlined_call_operand.vmem [shape: bf16[2,256,1024], index: 9, kind: input, shape index: {}]
  %s10 = inlined_call_operand.vmem [shape: f32[2,1,1024], index: 10, kind: input, shape index: {}]
  %s11 = inlined_call_operand.vmem [shape: bf16[2,1024,256], index: 11, kind: input, shape index: {}]
  %s12 = inlined_call_operand.hbm [shape: f32[2,1,256], index: 12, kind: input, shape index: {}]
  %s13 = inlined_call_operand.hbm [shape: f32[1,256], index: 13, kind: input, shape index: {}]
  %s14 = inlined_call_operand.hbm [shape: f32[1,256], index: 14, kind: input, shape index: {}]
  %s15 = inlined_call_operand.vmem [shape: f32[2,24,256], index: 15, kind: output, shape index: {}]
  %s16 = sld [smem:[#allocation0]]
  $region121: #{phikon_forward.3} parent=0
    _
  %s18 = ssub.s32 1, %s16
  %s19 = scalar_select 0, %s18, %s16
  $region1: #{phikon_forward.3} parent=0
    #allocation4 [shape = 'u8[786432]{0}', space=vmem, size = 0xc0000, scoped, tag = 'input window, operand 3']
    #allocation5 [shape = 's32[2]{0}', space=sflag, size = 0x8, scoped, tag = 'scoped memory for phikon_forward.3']
    #allocation6 [shape = 'u8[2048]{0}', space=vmem, size = 0x800, scoped, tag = 'input window, operand 8']
    #allocation7 [shape = 's32[2]{0}', space=sflag, size = 0x8, scoped, tag = 'scoped memory for phikon_forward.3']
    #allocation8 [shape = 'u8[2048]{0}', space=vmem, size = 0x800, scoped, tag = 'input window, operand 12']
    #allocation9 [shape = 'u8[1024]{0}', space=vmem, size = 0x400, scoped, tag = 'input window, operand 13, single buffered']
    #allocation10 [shape = 's32[1]{0}', space=sflag, size = 0x4, scoped, tag = 'scoped memory for phikon_forward.3']
    #allocation11 [shape = 'u8[1024]{0}', space=vmem, size = 0x400, scoped, tag = 'input window, operand 14, single buffered']
    %20 = vsyncpa [#allocation5], 0
    %s21 = scalar_lea.sflag [#allocation5], 1
    %22 = vsyncpa %s21, 0
    %23 = vsyncpa [#allocation7], 0
    %s24 = scalar_lea.sflag [#allocation7], 1
    %25 = vsyncpa %s24, 0
    %26 = vsyncpa [#allocation10], 0
    loop: start=0, step=1, limit=6
    $region2: #{phikon_forward.3} parent=1 // loop_pre_header
      _
    $region3: #{phikon_forward.3} parent=1 // loop_header
      %s28 = sphi 0, %s32
      %p29 = scmp.ge.s32.totalorder %s28, 6
      %s35 = sphi 0, %s47
      %s36 = sphi 0, %s43
      %s37 = sphi 0, %s35
      %s38 = sphi 0, %s36
      %s39 = sphi 0, %s37
      %s40 = sphi 0, %s38
      %s50 = sphi 0, %s52
      %s53 = sphi 0, %s50
      %s54 = sphi 0, %s53
      %s70 = sphi 0, %s54
      %s76 = sphi 0, %s78
      %s79 = sphi 0, %s76
      %s80 = sphi 0, %s79
      %s96 = sphi 0, %s80
      %s102 = sphi 0, %s104
      %s105 = sphi 0, %s102
      %s106 = sphi 0, %s105
      %s122 = sphi 0, %s106
      %s128 = sphi 0, %s130
      %s131 = sphi 0, %s128
      %s132 = sphi 0, %s131
      %s148 = sphi 0, %s132
      %s154 = sphi 0, %s156
      %s157 = sphi 0, %s154
      %s158 = sphi 0, %s157
      %s174 = sphi 0, %s158
      %s180 = sphi 0, %s182
      %s183 = sphi 0, %s180
      %s184 = sphi 0, %s183
      %s200 = sphi 0, %s184
      %s206 = sphi 0, %s208
      %s209 = sphi 0, %s206
      %s210 = sphi 0, %s209
      %s226 = sphi 0, %s210
      %s232 = sphi 0, %s234
      %s235 = sphi 0, %s232
      %s236 = sphi 0, %s235
      %s252 = sphi 0, %s236
      %s258 = sphi 0, %s260
      %s261 = sphi 0, %s258
      %s262 = sphi 0, %s261
      %s278 = sphi 0, %s262
      %s284 = sphi 0, %s286
      %s287 = sphi 0, %s284
      %s288 = sphi 0, %s287
      %s304 = sphi 0, %s288
      %s310 = sphi 0, %s312
      %s313 = sphi 0, %s310
      %s314 = sphi 0, %s313
      %s330 = sphi 0, %s314
      %s336 = sphi 0, %s338
      %s339 = sphi 0, %s336
      %s340 = sphi 0, %s339
      %s356 = sphi 0, %s340
      %s362 = sphi 0, %s364
      %s365 = sphi 0, %s362
      %s366 = sphi 0, %s365
      %s382 = sphi 0, %s366
      %s386 = sphi 0, %s386
      %s388 = sphi 0, %s386
      %s389 = sphi 0, %s388
      %s403 = sphi 0, %s389
      %s407 = sphi 0, %s407
      %s409 = sphi 0, %s407
      %s410 = sphi 0, %s409
      %s424 = sphi 0, %s410
      %s430 = sphi 0, %s432
      %s433 = sphi 0, %s430
      %s434 = sphi 0, %s433
      %s450 = sphi 0, %s434
    $region4: #{phikon_forward.3} parent=1 // loop_header_branch
      %31 = sbr.rel (%p29) target = $region8
    $region5: #{phikon_forward.3} parent=1 // loop_body
      %s33 = ssub.s32 %s28, 1
      %s34 = ssub.s32 %s28, 2
      %s41 = sadd.s32 1, %s36
      %p42 = scmp.ge.s32.totalorder %s41, 2
      %s43 = scalar_select %p42, 0, %s41
      %s44 = sadd.s32 1, %s35
      %s45 = scalar_select %p42, %s44, %s35
      %p46 = scmp.ge.s32.totalorder %s45, 2
      %s47 = scalar_select %p46, 0, %s45
      %s48 = ssub.s32 %s35, %s47
      %p49 = scmp.eq.s32.totalorder %s48, 0
      %s51 = sadd.s32 %s50, 1
      %s52 = scalar_select %p49, %s50, %s51
      %p55 = pneg %p49
      %p56 = scmp.eq.s32.totalorder %s28, 3
      %p57 = por %p55, %p56
      %p58 = scmp.ne.s32.totalorder %s50, %s53
      %p59 = scmp.eq.s32.totalorder %s28, 0
      %p60 = por %p58, %p59
      %p61 = scmp.ne.s32.totalorder %s50, %s53
      %p62 = scmp.eq.s32.totalorder %s33, 3
      %p63 = por %p61, %p62
      %p64 = scmp.ne.s32.totalorder %s53, %s54
      %p65 = scmp.eq.s32.totalorder %s33, 0
      %p66 = por %p64, %p65
      %p67 = scmp.ne.s32.totalorder %s53, %s54
      %p68 = scmp.eq.s32.totalorder %s34, 3
      %p69 = por %p67, %p68
      %p71 = scmp.ne.s32.totalorder %s54, %s70
      %p72 = scmp.eq.s32.totalorder %s34, 0
      %p73 = por %p71, %p72
      %s74 = ssub.s32 %s36, %s43
      %p75 = scmp.eq.s32.totalorder %s74, 0
      %s77 = sadd.s32 %s76, 1
      %s78 = scalar_select %p75, %s76, %s77
      %p81 = pneg %p75
      %p82 = scmp.eq.s32.totalorder %s28, 3
      %p83 = por %p81, %p82
      %p84 = scmp.ne.s32.totalorder %s76, %s79
      %p85 = scmp.eq.s32.totalorder %s28, 0
      %p86 = por %p84, %p85
      %p87 = scmp.ne.s32.totalorder %s76, %s79
      %p88 = scmp.eq.s32.totalorder %s33, 3
      %p89 = por %p87, %p88
      %p90 = scmp.ne.s32.totalorder %s79, %s80
      %p91 = scmp.eq.s32.totalorder %s33, 0
      %p92 = por %p90, %p91
      %p93 = scmp.ne.s32.totalorder %s79, %s80
      %p94 = scmp.eq.s32.totalorder %s34, 3
      %p95 = por %p93, %p94
      %p97 = scmp.ne.s32.totalorder %s80, %s96
      %p98 = scmp.eq.s32.totalorder %s34, 0
      %p99 = por %p97, %p98
      %s100 = ssub.s32 %s36, %s43
      %p101 = scmp.eq.s32.totalorder %s100, 0
      %s103 = sadd.s32 %s102, 1
      %s104 = scalar_select %p101, %s102, %s103
      %p107 = pneg %p101
      %p108 = scmp.eq.s32.totalorder %s28, 3
      %p109 = por %p107, %p108
      %p110 = scmp.ne.s32.totalorder %s102, %s105
      %p111 = scmp.eq.s32.totalorder %s28, 0
      %p112 = por %p110, %p111
      %p113 = scmp.ne.s32.totalorder %s102, %s105
      %p114 = scmp.eq.s32.totalorder %s33, 3
      %p115 = por %p113, %p114
      %p116 = scmp.ne.s32.totalorder %s105, %s106
      %p117 = scmp.eq.s32.totalorder %s33, 0
      %p118 = por %p116, %p117
      %p119 = scmp.ne.s32.totalorder %s105, %s106
      %p120 = scmp.eq.s32.totalorder %s34, 3
      %p121 = por %p119, %p120
      %p123 = scmp.ne.s32.totalorder %s106, %s122
      %p124 = scmp.eq.s32.totalorder %s34, 0
      %p125 = por %p123, %p124
      %s126 = ssub.s32 %s36, %s43
      %p127 = scmp.eq.s32.totalorder %s126, 0
      %s129 = sadd.s32 %s128, 1
      %s130 = scalar_select %p127, %s128, %s129
      %p133 = pneg %p127
      %p134 = scmp.eq.s32.totalorder %s28, 3
      %p135 = por %p133, %p134
      %p136 = scmp.ne.s32.totalorder %s128, %s131
      %p137 = scmp.eq.s32.totalorder %s28, 0
      %p138 = por %p136, %p137
      %p139 = scmp.ne.s32.totalorder %s128, %s131
      %p140 = scmp.eq.s32.totalorder %s33, 3
      %p141 = por %p139, %p140
      %p142 = scmp.ne.s32.totalorder %s131, %s132
      %p143 = scmp.eq.s32.totalorder %s33, 0
      %p144 = por %p142, %p143
      %p145 = scmp.ne.s32.totalorder %s131, %s132
      %p146 = scmp.eq.s32.totalorder %s34, 3
      %p147 = por %p145, %p146
      %p149 = scmp.ne.s32.totalorder %s132, %s148
      %p150 = scmp.eq.s32.totalorder %s34, 0
      %p151 = por %p149, %p150
      %s152 = ssub.s32 %s36, %s43
      %p153 = scmp.eq.s32.totalorder %s152, 0
      %s155 = sadd.s32 %s154, 1
      %s156 = scalar_select %p153, %s154, %s155
      %p159 = pneg %p153
      %p160 = scmp.eq.s32.totalorder %s28, 3
      %p161 = por %p159, %p160
      %p162 = scmp.ne.s32.totalorder %s154, %s157
      %p163 = scmp.eq.s32.totalorder %s28, 0
      %p164 = por %p162, %p163
      %p165 = scmp.ne.s32.totalorder %s154, %s157
      %p166 = scmp.eq.s32.totalorder %s33, 3
      %p167 = por %p165, %p166
      %p168 = scmp.ne.s32.totalorder %s157, %s158
      %p169 = scmp.eq.s32.totalorder %s33, 0
      %p170 = por %p168, %p169
      %p171 = scmp.ne.s32.totalorder %s157, %s158
      %p172 = scmp.eq.s32.totalorder %s34, 3
      %p173 = por %p171, %p172
      %p175 = scmp.ne.s32.totalorder %s158, %s174
      %p176 = scmp.eq.s32.totalorder %s34, 0
      %p177 = por %p175, %p176
      %s178 = ssub.s32 %s36, %s43
      %p179 = scmp.eq.s32.totalorder %s178, 0
      %s181 = sadd.s32 %s180, 1
      %s182 = scalar_select %p179, %s180, %s181
      %p185 = pneg %p179
      %p186 = scmp.eq.s32.totalorder %s28, 3
      %p187 = por %p185, %p186
      %p188 = scmp.ne.s32.totalorder %s180, %s183
      %p189 = scmp.eq.s32.totalorder %s28, 0
      %p190 = por %p188, %p189
      %p191 = scmp.ne.s32.totalorder %s180, %s183
      %p192 = scmp.eq.s32.totalorder %s33, 3
      %p193 = por %p191, %p192
      %p194 = scmp.ne.s32.totalorder %s183, %s184
      %p195 = scmp.eq.s32.totalorder %s33, 0
      %p196 = por %p194, %p195
      %p197 = scmp.ne.s32.totalorder %s183, %s184
      %p198 = scmp.eq.s32.totalorder %s34, 3
      %p199 = por %p197, %p198
      %p201 = scmp.ne.s32.totalorder %s184, %s200
      %p202 = scmp.eq.s32.totalorder %s34, 0
      %p203 = por %p201, %p202
      %s204 = ssub.s32 %s36, %s43
      %p205 = scmp.eq.s32.totalorder %s204, 0
      %s207 = sadd.s32 %s206, 1
      %s208 = scalar_select %p205, %s206, %s207
      %p211 = pneg %p205
      %p212 = scmp.eq.s32.totalorder %s28, 3
      %p213 = por %p211, %p212
      %p214 = scmp.ne.s32.totalorder %s206, %s209
      %p215 = scmp.eq.s32.totalorder %s28, 0
      %p216 = por %p214, %p215
      %p217 = scmp.ne.s32.totalorder %s206, %s209
      %p218 = scmp.eq.s32.totalorder %s33, 3
      %p219 = por %p217, %p218
      %p220 = scmp.ne.s32.totalorder %s209, %s210
      %p221 = scmp.eq.s32.totalorder %s33, 0
      %p222 = por %p220, %p221
      %p223 = scmp.ne.s32.totalorder %s209, %s210
      %p224 = scmp.eq.s32.totalorder %s34, 3
      %p225 = por %p223, %p224
      %p227 = scmp.ne.s32.totalorder %s210, %s226
      %p228 = scmp.eq.s32.totalorder %s34, 0
      %p229 = por %p227, %p228
      %s230 = ssub.s32 %s36, %s43
      %p231 = scmp.eq.s32.totalorder %s230, 0
      %s233 = sadd.s32 %s232, 1
      %s234 = scalar_select %p231, %s232, %s233
      %p237 = pneg %p231
      %p238 = scmp.eq.s32.totalorder %s28, 3
      %p239 = por %p237, %p238
      %p240 = scmp.ne.s32.totalorder %s232, %s235
      %p241 = scmp.eq.s32.totalorder %s28, 0
      %p242 = por %p240, %p241
      %p243 = scmp.ne.s32.totalorder %s232, %s235
      %p244 = scmp.eq.s32.totalorder %s33, 3
      %p245 = por %p243, %p244
      %p246 = scmp.ne.s32.totalorder %s235, %s236
      %p247 = scmp.eq.s32.totalorder %s33, 0
      %p248 = por %p246, %p247
      %p249 = scmp.ne.s32.totalorder %s235, %s236
      %p250 = scmp.eq.s32.totalorder %s34, 3
      %p251 = por %p249, %p250
      %p253 = scmp.ne.s32.totalorder %s236, %s252
      %p254 = scmp.eq.s32.totalorder %s34, 0
      %p255 = por %p253, %p254
      %s256 = ssub.s32 %s36, %s43
      %p257 = scmp.eq.s32.totalorder %s256, 0
      %s259 = sadd.s32 %s258, 1
      %s260 = scalar_select %p257, %s258, %s259
      %p263 = pneg %p257
      %p264 = scmp.eq.s32.totalorder %s28, 3
      %p265 = por %p263, %p264
      %p266 = scmp.ne.s32.totalorder %s258, %s261
      %p267 = scmp.eq.s32.totalorder %s28, 0
      %p268 = por %p266, %p267
      %p269 = scmp.ne.s32.totalorder %s258, %s261
      %p270 = scmp.eq.s32.totalorder %s33, 3
      %p271 = por %p269, %p270
      %p272 = scmp.ne.s32.totalorder %s261, %s262
      %p273 = scmp.eq.s32.totalorder %s33, 0
      %p274 = por %p272, %p273
      %p275 = scmp.ne.s32.totalorder %s261, %s262
      %p276 = scmp.eq.s32.totalorder %s34, 3
      %p277 = por %p275, %p276
      %p279 = scmp.ne.s32.totalorder %s262, %s278
      %p280 = scmp.eq.s32.totalorder %s34, 0
      %p281 = por %p279, %p280
      %s282 = ssub.s32 %s36, %s43
      %p283 = scmp.eq.s32.totalorder %s282, 0
      %s285 = sadd.s32 %s284, 1
      %s286 = scalar_select %p283, %s284, %s285
      %p289 = pneg %p283
      %p290 = scmp.eq.s32.totalorder %s28, 3
      %p291 = por %p289, %p290
      %p292 = scmp.ne.s32.totalorder %s284, %s287
      %p293 = scmp.eq.s32.totalorder %s28, 0
      %p294 = por %p292, %p293
      %p295 = scmp.ne.s32.totalorder %s284, %s287
      %p296 = scmp.eq.s32.totalorder %s33, 3
      %p297 = por %p295, %p296
      %p298 = scmp.ne.s32.totalorder %s287, %s288
      %p299 = scmp.eq.s32.totalorder %s33, 0
      %p300 = por %p298, %p299
      %p301 = scmp.ne.s32.totalorder %s287, %s288
      %p302 = scmp.eq.s32.totalorder %s34, 3
      %p303 = por %p301, %p302
      %p305 = scmp.ne.s32.totalorder %s288, %s304
      %p306 = scmp.eq.s32.totalorder %s34, 0
      %p307 = por %p305, %p306
      %s308 = ssub.s32 %s36, %s43
      %p309 = scmp.eq.s32.totalorder %s308, 0
      %s311 = sadd.s32 %s310, 1
      %s312 = scalar_select %p309, %s310, %s311
      %p315 = pneg %p309
      %p316 = scmp.eq.s32.totalorder %s28, 3
      %p317 = por %p315, %p316
      %p318 = scmp.ne.s32.totalorder %s310, %s313
      %p319 = scmp.eq.s32.totalorder %s28, 0
      %p320 = por %p318, %p319
      %p321 = scmp.ne.s32.totalorder %s310, %s313
      %p322 = scmp.eq.s32.totalorder %s33, 3
      %p323 = por %p321, %p322
      %p324 = scmp.ne.s32.totalorder %s313, %s314
      %p325 = scmp.eq.s32.totalorder %s33, 0
      %p326 = por %p324, %p325
      %p327 = scmp.ne.s32.totalorder %s313, %s314
      %p328 = scmp.eq.s32.totalorder %s34, 3
      %p329 = por %p327, %p328
      %p331 = scmp.ne.s32.totalorder %s314, %s330
      %p332 = scmp.eq.s32.totalorder %s34, 0
      %p333 = por %p331, %p332
      %s334 = ssub.s32 %s36, %s43
      %p335 = scmp.eq.s32.totalorder %s334, 0
      %s337 = sadd.s32 %s336, 1
      %s338 = scalar_select %p335, %s336, %s337
      %p341 = pneg %p335
      %p342 = scmp.eq.s32.totalorder %s28, 3
      %p343 = por %p341, %p342
      %p344 = scmp.ne.s32.totalorder %s336, %s339
      %p345 = scmp.eq.s32.totalorder %s28, 0
      %p346 = por %p344, %p345
      %p347 = scmp.ne.s32.totalorder %s336, %s339
      %p348 = scmp.eq.s32.totalorder %s33, 3
      %p349 = por %p347, %p348
      %p350 = scmp.ne.s32.totalorder %s339, %s340
      %p351 = scmp.eq.s32.totalorder %s33, 0
      %p352 = por %p350, %p351
      %p353 = scmp.ne.s32.totalorder %s339, %s340
      %p354 = scmp.eq.s32.totalorder %s34, 3
      %p355 = por %p353, %p354
      %p357 = scmp.ne.s32.totalorder %s340, %s356
      %p358 = scmp.eq.s32.totalorder %s34, 0
      %p359 = por %p357, %p358
      %s360 = ssub.s32 %s36, %s43
      %p361 = scmp.eq.s32.totalorder %s360, 0
      %s363 = sadd.s32 %s362, 1
      %s364 = scalar_select %p361, %s362, %s363
      %p367 = pneg %p361
      %p368 = scmp.eq.s32.totalorder %s28, 3
      %p369 = por %p367, %p368
      %p370 = scmp.ne.s32.totalorder %s362, %s365
      %p371 = scmp.eq.s32.totalorder %s28, 0
      %p372 = por %p370, %p371
      %p373 = scmp.ne.s32.totalorder %s362, %s365
      %p374 = scmp.eq.s32.totalorder %s33, 3
      %p375 = por %p373, %p374
      %p376 = scmp.ne.s32.totalorder %s365, %s366
      %p377 = scmp.eq.s32.totalorder %s33, 0
      %p378 = por %p376, %p377
      %p379 = scmp.ne.s32.totalorder %s365, %s366
      %p380 = scmp.eq.s32.totalorder %s34, 3
      %p381 = por %p379, %p380
      %p383 = scmp.ne.s32.totalorder %s366, %s382
      %p384 = scmp.eq.s32.totalorder %s34, 0
      %p385 = por %p383, %p384
      %s387 = sadd.s32 %s386, 1
      %p390 = scmp.eq.s32.totalorder %s28, 3
      %p391 = scmp.ne.s32.totalorder %s386, %s388
      %p392 = scmp.eq.s32.totalorder %s28, 0
      %p393 = por %p391, %p392
      %p394 = scmp.ne.s32.totalorder %s386, %s388
      %p395 = scmp.eq.s32.totalorder %s33, 3
      %p396 = por %p394, %p395
      %p397 = scmp.ne.s32.totalorder %s388, %s389
      %p398 = scmp.eq.s32.totalorder %s33, 0
      %p399 = por %p397, %p398
      %p400 = scmp.ne.s32.totalorder %s388, %s389
      %p401 = scmp.eq.s32.totalorder %s34, 3
      %p402 = por %p400, %p401
      %p404 = scmp.ne.s32.totalorder %s389, %s403
      %p405 = scmp.eq.s32.totalorder %s34, 0
      %p406 = por %p404, %p405
      %s408 = sadd.s32 %s407, 1
      %p411 = scmp.eq.s32.totalorder %s28, 3
      %p412 = scmp.ne.s32.totalorder %s407, %s409
      %p413 = scmp.eq.s32.totalorder %s28, 0
      %p414 = por %p412, %p413
      %p415 = scmp.ne.s32.totalorder %s407, %s409
      %p416 = scmp.eq.s32.totalorder %s33, 3
      %p417 = por %p415, %p416
      %p418 = scmp.ne.s32.totalorder %s409, %s410
      %p419 = scmp.eq.s32.totalorder %s33, 0
      %p420 = por %p418, %p419
      %p421 = scmp.ne.s32.totalorder %s409, %s410
      %p422 = scmp.eq.s32.totalorder %s34, 3
      %p423 = por %p421, %p422
      %p425 = scmp.ne.s32.totalorder %s410, %s424
      %p426 = scmp.eq.s32.totalorder %s34, 0
      %p427 = por %p425, %p426
      %s428 = ssub.s32 %s35, %s47
      %p429 = scmp.eq.s32.totalorder %s428, 0
      %s431 = sadd.s32 %s430, 1
      %s432 = scalar_select %p429, %s430, %s431
      %p435 = pneg %p429
      %p436 = scmp.eq.s32.totalorder %s28, 3
      %p437 = por %p435, %p436
      %p438 = scmp.ne.s32.totalorder %s430, %s433
      %p439 = scmp.eq.s32.totalorder %s28, 0
      %p440 = por %p438, %p439
      %p441 = scmp.ne.s32.totalorder %s430, %s433
      %p442 = scmp.eq.s32.totalorder %s33, 3
      %p443 = por %p441, %p442
      %p444 = scmp.ne.s32.totalorder %s433, %s434
      %p445 = scmp.eq.s32.totalorder %s33, 0
      %p446 = por %p444, %p445
      %p447 = scmp.ne.s32.totalorder %s433, %s434
      %p448 = scmp.eq.s32.totalorder %s34, 3
      %p449 = por %p447, %p448
      %p451 = scmp.ne.s32.totalorder %s434, %s450
      %p452 = scmp.eq.s32.totalorder %s34, 0
      %p453 = por %p451, %p452
      %p454 = scmp.le.s32.totalorder 1, %s28
      %p455 = scmp.lt.s32.totalorder %s28, 5
      %p456 = pnand %p454, %p455
      %p457 = pneg %p456
      // Predicated region
      $region9: #{phikon_forward.3} parent=5 // pred_check
        _
      $region10: #{phikon_forward.3} parent=5 // pred_check_branch
        %459 = sbr.rel (%p456) target = $region12
      $region11: #{phikon_forward.3} parent=5 // pred_region
        %s460 = ssub.s32 %s28, 1
        // Predicated region
        $region13: #{phikon_forward.3} parent=11 // pred_check
          %p461 = pneg %p399
        $region14: #{phikon_forward.3} parent=11 // pred_check_branch
          %463 = sbr.rel (%p461) target = $region16
        $region15: #{phikon_forward.3} parent=11 // pred_region
          %s465 = ssub.s32 32, 32
          %466 = vsyncadd [#allocation10], %s465
          %s468 = sshll.u32 [#allocation9], 4
          %s469 = int_to_ptr.vmem [resolvable:$true] %s468
          %471 = dma.hbm_to_vmem [thread:$0]  %s13, 32, %s469, [#allocation10]
        $region16: #{phikon_forward.3} parent=11 // pred_fallthru
          _
        // Predicated region
        $region17: #{phikon_forward.3} parent=11 // pred_check
          %p472 = pneg %p420
        $region18: #{phikon_forward.3} parent=11 // pred_check_branch
          %474 = sbr.rel (%p472) target = $region20
        $region19: #{phikon_forward.3} parent=11 // pred_region
          %s476 = ssub.s32 32, 32
          %477 = vsyncadd [#allocation10], %s476
          %s479 = sshll.u32 [#allocation11], 4
          %s480 = int_to_ptr.vmem [resolvable:$true] %s479
          %482 = dma.hbm_to_vmem [thread:$0]  %s14, 32, %s480, [#allocation10]
        $region20: #{phikon_forward.3} parent=11 // pred_fallthru
          _
      $region12: #{phikon_forward.3} parent=5 // pred_fallthru
        _
      %p483 = scmp.lt.s32.totalorder %s28, 4
      // Predicated region
      $region21: #{phikon_forward.3} parent=5 // pred_check
        %p484 = pneg %p483
      $region22: #{phikon_forward.3} parent=5 // pred_check_branch
        %486 = sbr.rel (%p484) target = $region24
      $region23: #{phikon_forward.3} parent=5 // pred_region
        // Predicated region
        $region25: #{phikon_forward.3} parent=23 // pred_check
          %p487 = pneg %p60
        $region26: #{phikon_forward.3} parent=23 // pred_check_branch
          %489 = sbr.rel (%p487) target = $region28
        $region27: #{phikon_forward.3} parent=23 // pred_region
          %p490 = scmp.lt.s32.totalorder %s35, 1
          %s491 = scalar_select %p490, %s35, 1
          %s492 = smul.addr %s491, 6
          %s493 = smul.addr %s492, 8
          %s494 = scalar_lea.vmem %s0, %s493
        $region28: #{phikon_forward.3} parent=23 // pred_fallthru
          _
        // Predicated region
        $region29: #{phikon_forward.3} parent=23 // pred_check
          %p495 = pneg %p86
        $region30: #{phikon_forward.3} parent=23 // pred_check_branch
          %497 = sbr.rel (%p495) target = $region32
        $region31: #{phikon_forward.3} parent=23 // pred_region
          %p498 = scmp.lt.s32.totalorder %s36, 1
          %s499 = scalar_select %p498, %s36, 1
          %s500 = smul.addr %s499, 2
          %s501 = scalar_lea.vmem %s1, %s500
        $region32: #{phikon_forward.3} parent=23 // pred_fallthru
          _
        // Predicated region
        $region33: #{phikon_forward.3} parent=23 // pred_check
          %p502 = pneg %p112
        $region34: #{phikon_forward.3} parent=23 // pred_check_branch
          %504 = sbr.rel (%p502) target = $region36
        $region35: #{phikon_forward.3} parent=23 // pred_region
          %p505 = scmp.lt.s32.totalorder %s36, 1
          %s506 = scalar_select %p505, %s36, 1
          %s507 = smul.addr %s506, 2
          %s508 = scalar_lea.vmem %s2, %s507
        $region36: #{phikon_forward.3} parent=23 // pred_fallthru
          _
        // Predicated region
        $region37: #{phikon_forward.3} parent=23 // pred_check
          %p509 = pneg %p138
        $region38: #{phikon_forward.3} parent=23 // pred_check_branch
          %511 = sbr.rel (%p509) target = $region40
        $region39: #{phikon_forward.3} parent=23 // pred_region
          %s512 = sand.u32 %s128, 1
          %s513 = scalar_lea.sflag [#allocation5], %s512
          %s514 = sand.u32 %s128, 1
          %s515 = smul.addr %s514, 768
          %s516 = scalar_lea.vmem [#allocation4], %s515
          %s518 = ssub.s32 12288, 12288
          %519 = vsyncadd %s513, %s518
          %s520 = smul.addr %s36, 192
          %s521 = smul.addr %s520, 64
          %s522 = scalar_lea.hbm %s3, %s521
          %s523 = sshll.u32 %s516, 4
          %s524 = int_to_ptr.vmem [resolvable:$true] %s523
          %529 = dma.hbm_to_vmem [thread:$0]  %s522, 12288, %s524, %s513, 384, 384, 24
        $region40: #{phikon_forward.3} parent=23 // pred_fallthru
          _
        // Predicated region
        $region41: #{phikon_forward.3} parent=23 // pred_check
          %p530 = pneg %p164
        $region42: #{phikon_forward.3} parent=23 // pred_check_branch
          %532 = sbr.rel (%p530) target = $region44
        $region43: #{phikon_forward.3} parent=23 // pred_region
          %p533 = scmp.lt.s32.totalorder %s36, 1
          %s534 = scalar_select %p533, %s36, 1
          %s535 = smul.addr %s534, 6
          %s536 = scalar_lea.vmem %s4, %s535
        $region44: #{phikon_forward.3} parent=23 // pred_fallthru
          _
        // Predicated region
        $region45: #{phikon_forward.3} parent=23 // pred_check
          %p537 = pneg %p190
        $region46: #{phikon_forward.3} parent=23 // pred_check_branch
          %539 = sbr.rel (%p537) target = $region48
        $region47: #{phikon_forward.3} parent=23 // pred_region
          %p540 = scmp.lt.s32.totalorder %s36, 1
          %s541 = scalar_select %p540, %s36, 1
          %s542 = smul.addr %s541, 64
          %s543 = smul.addr %s542, 4
          %s544 = scalar_lea.vmem %s5, %s543
        $region48: #{phikon_forward.3} parent=23 // pred_fallthru
          _
        // Predicated region
        $region49: #{phikon_forward.3} parent=23 // pred_check
          %p545 = pneg %p216
        $region50: #{phikon_forward.3} parent=23 // pred_check_branch
          %547 = sbr.rel (%p545) target = $region52
        $region51: #{phikon_forward.3} parent=23 // pred_region
          %p548 = scmp.lt.s32.totalorder %s36, 1
          %s549 = scalar_select %p548, %s36, 1
          %s550 = smul.addr %s549, 2
          %s551 = scalar_lea.vmem %s6, %s550
        $region52: #{phikon_forward.3} parent=23 // pred_fallthru
          _
        // Predicated region
        $region53: #{phikon_forward.3} parent=23 // pred_check
          %p552 = pneg %p242
        $region54: #{phikon_forward.3} parent=23 // pred_check_branch
          %554 = sbr.rel (%p552) target = $region56
        $region55: #{phikon_forward.3} parent=23 // pred_region
          %p555 = scmp.lt.s32.totalorder %s36, 1
          %s556 = scalar_select %p555, %s36, 1
          %s557 = smul.addr %s556, 2
          %s558 = scalar_lea.vmem %s7, %s557
        $region56: #{phikon_forward.3} parent=23 // pred_fallthru
          _
        // Predicated region
        $region57: #{phikon_forward.3} parent=23 // pred_check
          %p559 = pneg %p268
        $region58: #{phikon_forward.3} parent=23 // pred_check_branch
          %561 = sbr.rel (%p559) target = $region60
        $region59: #{phikon_forward.3} parent=23 // pred_region
          %s562 = sand.u32 %s28, 1
          %s563 = scalar_lea.sflag [#allocation7], %s562
          %s564 = sand.u32 %s258, 1
          %s565 = smul.addr %s564, 2
          %s566 = scalar_lea.vmem [#allocation6], %s565
          %s568 = ssub.s32 32, 32
          %569 = vsyncadd %s563, %s568
          %s570 = smul.addr %s36, 2
          %s571 = smul.addr %s570, 16
          %s572 = scalar_lea.hbm %s8, %s571
          %s574 = sshll.u32 %s566, 4
          %s575 = int_to_ptr.vmem [resolvable:$true] %s574
          %577 = dma.hbm_to_vmem [thread:$0]  %s572, 32, %s575, %s563
        $region60: #{phikon_forward.3} parent=23 // pred_fallthru
          _
        // Predicated region
        $region61: #{phikon_forward.3} parent=23 // pred_check
          %p578 = pneg %p294
        $region62: #{phikon_forward.3} parent=23 // pred_check_branch
          %580 = sbr.rel (%p578) target = $region64
        $region63: #{phikon_forward.3} parent=23 // pred_region
          %p581 = scmp.lt.s32.totalorder %s36, 1
          %s582 = scalar_select %p581, %s36, 1
          %s583 = smul.addr %s582, 256
          %s584 = smul.addr %s583, 4
          %s585 = scalar_lea.vmem %s9, %s584
        $region64: #{phikon_forward.3} parent=23 // pred_fallthru
          _
        // Predicated region
        $region65: #{phikon_forward.3} parent=23 // pred_check
          %p586 = pneg %p320
        $region66: #{phikon_forward.3} parent=23 // pred_check_branch
          %588 = sbr.rel (%p586) target = $region68
        $region67: #{phikon_forward.3} parent=23 // pred_region
          %p589 = scmp.lt.s32.totalorder %s36, 1
          %s590 = scalar_select %p589, %s36, 1
          %s591 = smul.addr %s590, 8
          %s592 = scalar_lea.vmem %s10, %s591
        $region68: #{phikon_forward.3} parent=23 // pred_fallthru
          _
        // Predicated region
        $region69: #{phikon_forward.3} parent=23 // pred_check
          %p593 = pneg %p346
        $region70: #{phikon_forward.3} parent=23 // pred_check_branch
          %595 = sbr.rel (%p593) target = $region72
        $region71: #{phikon_forward.3} parent=23 // pred_region
          %p596 = scmp.lt.s32.totalorder %s36, 1
          %s597 = scalar_select %p596, %s36, 1
          %s598 = smul.addr %s597, 256
          %s599 = smul.addr %s598, 4
          %s600 = scalar_lea.vmem %s11, %s599
        $region72: #{phikon_forward.3} parent=23 // pred_fallthru
          _
        // Predicated region
        $region73: #{phikon_forward.3} parent=23 // pred_check
          %p601 = pneg %p372
        $region74: #{phikon_forward.3} parent=23 // pred_check_branch
          %603 = sbr.rel (%p601) target = $region76
        $region75: #{phikon_forward.3} parent=23 // pred_region
          %s604 = sand.u32 %s28, 1
          %s605 = scalar_lea.sflag [#allocation7], %s604
          %s606 = sand.u32 %s362, 1
          %s607 = smul.addr %s606, 2
          %s608 = scalar_lea.vmem [#allocation8], %s607
          %s610 = ssub.s32 32, 32
          %611 = vsyncadd %s605, %s610
          %s612 = smul.addr %s36, 2
          %s613 = smul.addr %s612, 16
          %s614 = scalar_lea.hbm %s12, %s613
          %s616 = sshll.u32 %s608, 4
          %s617 = int_to_ptr.vmem [resolvable:$true] %s616
          %619 = dma.hbm_to_vmem [thread:$0]  %s614, 32, %s617, %s605
        $region76: #{phikon_forward.3} parent=23 // pred_fallthru
          _
      $region24: #{phikon_forward.3} parent=5 // pred_fallthru
        _
      %p620 = scmp.le.s32.totalorder 1, %s28
      %p621 = scmp.lt.s32.totalorder %s28, 5
      %p622 = pnand %p620, %p621
      %p623 = pneg %p622
      // Predicated region
      $region77: #{phikon_forward.3} parent=5 // pred_check
        _
      $region78: #{phikon_forward.3} parent=5 // pred_check_branch
        %625 = sbr.rel (%p622) target = $region80
      $region79: #{phikon_forward.3} parent=5 // pred_region
        %s626 = ssub.s32 %s28, 1
        %s627 = sand.u32 %s131, 1
        %s628 = scalar_lea.sflag [#allocation5], %s627
        %s629 = sand.u32 %s131, 1
        %s630 = smul.addr %s629, 768
        %s631 = scalar_lea.vmem [#allocation4], %s630
        // Predicated region
        $region81: #{phikon_forward.3} parent=79 // pred_check
          %p632 = pneg %p144
        $region82: #{phikon_forward.3} parent=79 // pred_check_branch
          %634 = sbr.rel (%p632) target = $region84
        $region83: #{phikon_forward.3} parent=79 // pred_region
          %635 = dma.done %s628, 12288
        $region84: #{phikon_forward.3} parent=79 // pred_fallthru
          _
        %s636 = sand.u32 %s33, 1
        %s637 = scalar_lea.sflag [#allocation7], %s636
        %s638 = sand.u32 %s261, 1
        %s639 = smul.addr %s638, 2
        %s640 = scalar_lea.vmem [#allocation6], %s639
        // Predicated region
        $region85: #{phikon_forward.3} parent=79 // pred_check
          %p641 = pneg %p274
        $region86: #{phikon_forward.3} parent=79 // pred_check_branch
          %643 = sbr.rel (%p641) target = $region88
        $region87: #{phikon_forward.3} parent=79 // pred_region
          %644 = dma.done %s637, 32
        $region88: #{phikon_forward.3} parent=79 // pred_fallthru
          _
        %s645 = sand.u32 %s33, 1
        %s646 = scalar_lea.sflag [#allocation7], %s645
        %s647 = sand.u32 %s365, 1
        %s648 = smul.addr %s647, 2
        %s649 = scalar_lea.vmem [#allocation8], %s648
        // Predicated region
        $region89: #{phikon_forward.3} parent=79 // pred_check
          %p650 = pneg %p378
        $region90: #{phikon_forward.3} parent=79 // pred_check_branch
          %652 = sbr.rel (%p650) target = $region92
        $region91: #{phikon_forward.3} parent=79 // pred_region
          %653 = dma.done %s646, 32
        $region92: #{phikon_forward.3} parent=79 // pred_fallthru
          _
        // Predicated region
        $region93: #{phikon_forward.3} parent=79 // pred_check
          %p654 = pneg %p399
        $region94: #{phikon_forward.3} parent=79 // pred_check_branch
          %656 = sbr.rel (%p654) target = $region96
        $region95: #{phikon_forward.3} parent=79 // pred_region
          %657 = dma.done [#allocation10], 32
        $region96: #{phikon_forward.3} parent=79 // pred_fallthru
          _
        // Predicated region
        $region97: #{phikon_forward.3} parent=79 // pred_check
          %p658 = pneg %p420
        $region98: #{phikon_forward.3} parent=79 // pred_check_branch
          %660 = sbr.rel (%p658) target = $region100
        $region99: #{phikon_forward.3} parent=79 // pred_region
          %661 = dma.done [#allocation10], 32
        $region100: #{phikon_forward.3} parent=79 // pred_fallthru
          _
        %p662 = scmp.lt.s32.totalorder %s37, 1
        %s663 = scalar_select %p662, %s37, 1
        %s664 = smul.addr %s663, 6
        %s665 = smul.addr %s664, 8
        %s666 = scalar_lea.vmem %s0, %s665
        %p667 = pneg %p66
        %p668 = pneg %p63
        %p669 = scmp.lt.s32.totalorder %s38, 1
        %s670 = scalar_select %p669, %s38, 1
        %s671 = smul.addr %s670, 2
        %s672 = scalar_lea.vmem %s1, %s671
        %p673 = pneg %p92
        %p674 = pneg %p89
        %p675 = scmp.lt.s32.totalorder %s38, 1
        %s676 = scalar_select %p675, %s38, 1
        %s677 = smul.addr %s676, 2
        %s678 = scalar_lea.vmem %s2, %s677
        %p679 = pneg %p118
        %p680 = pneg %p115
        %s681 = sand.u32 %s131, 1
        %s682 = scalar_lea.sflag [#allocation5], %s681
        %s683 = sand.u32 %s131, 1
        %s684 = smul.addr %s683, 768
        %s685 = scalar_lea.vmem [#allocation4], %s684
        %p686 = pneg %p144
        %p687 = pneg %p141
        %p688 = scmp.lt.s32.totalorder %s38, 1
        %s689 = scalar_select %p688, %s38, 1
        %s690 = smul.addr %s689, 6
        %s691 = scalar_lea.vmem %s4, %s690
        %p692 = pneg %p170
        %p693 = pneg %p167
        %p694 = scmp.lt.s32.totalorder %s38, 1
        %s695 = scalar_select %p694, %s38, 1
        %s696 = smul.addr %s695, 64
        %s697 = smul.addr %s696, 4
        %s698 = scalar_lea.vmem %s5, %s697
        %p699 = pneg %p196
        %p700 = pneg %p193
        %p701 = scmp.lt.s32.totalorder %s38, 1
        %s702 = scalar_select %p701, %s38, 1
        %s703 = smul.addr %s702, 2
        %s704 = scalar_lea.vmem %s6, %s703
        %p705 = pneg %p222
        %p706 = pneg %p219
        %p707 = scmp.lt.s32.totalorder %s38, 1
        %s708 = scalar_select %p707, %s38, 1
        %s709 = smul.addr %s708, 2
        %s710 = scalar_lea.vmem %s7, %s709
        %p711 = pneg %p248
        %p712 = pneg %p245
        %s713 = sand.u32 %s33, 1
        %s714 = scalar_lea.sflag [#allocation7], %s713
        %s715 = sand.u32 %s261, 1
        %s716 = smul.addr %s715, 2
        %s717 = scalar_lea.vmem [#allocation6], %s716
        %p718 = pneg %p274
        %p719 = pneg %p271
        %p720 = scmp.lt.s32.totalorder %s38, 1
        %s721 = scalar_select %p720, %s38, 1
        %s722 = smul.addr %s721, 256
        %s723 = smul.addr %s722, 4
        %s724 = scalar_lea.vmem %s9, %s723
        %p725 = pneg %p300
        %p726 = pneg %p297
        %p727 = scmp.lt.s32.totalorder %s38, 1
        %s728 = scalar_select %p727, %s38, 1
        %s729 = smul.addr %s728, 8
        %s730 = scalar_lea.vmem %s10, %s729
        %p731 = pneg %p326
        %p732 = pneg %p323
        %p733 = scmp.lt.s32.totalorder %s38, 1
        %s734 = scalar_select %p733, %s38, 1
        %s735 = smul.addr %s734, 256
        %s736 = smul.addr %s735, 4
        %s737 = scalar_lea.vmem %s11, %s736
        %p738 = pneg %p352
        %p739 = pneg %p349
        %s740 = sand.u32 %s33, 1
        %s741 = scalar_lea.sflag [#allocation7], %s740
        %s742 = sand.u32 %s365, 1
        %s743 = smul.addr %s742, 2
        %s744 = scalar_lea.vmem [#allocation8], %s743
        %p745 = pneg %p378
        %p746 = pneg %p375
        %p747 = pneg %p399
        %p748 = pneg %p396
        %p749 = pneg %p420
        %p750 = pneg %p417
        %p751 = pneg %p446
        %p752 = pneg %p443
        %p753 = scmp.lt.s32.totalorder %s37, 1
        %s754 = scalar_select %p753, %s37, 1
        %s755 = smul.addr %s754, 6
        %s756 = smul.addr %s755, 8
        %s757 = scalar_lea.vmem %s15, %s756
        %p758 = scmp.lt.s32.totalorder %s37, 1
        %s759 = scalar_select %p758, %s37, 1
        %s760 = smul.addr %s759, 6
        %s761 = smul.addr %s760, 8
        %s762 = scalar_lea.vmem %s0, %s761
        %p763 = scmp.lt.s32.totalorder %s38, 1
        %s764 = scalar_select %p763, %s38, 1
        %s765 = smul.addr %s764, 2
        %s766 = scalar_lea.vmem %s1, %s765
        %p767 = scmp.lt.s32.totalorder %s38, 1
        %s768 = scalar_select %p767, %s38, 1
        %s769 = smul.addr %s768, 2
        %s770 = scalar_lea.vmem %s2, %s769
        %p771 = scmp.lt.s32.totalorder %s38, 1
        %s772 = scalar_select %p771, %s38, 1
        %s773 = smul.addr %s772, 6
        %s774 = scalar_lea.vmem %s4, %s773
        %p775 = scmp.lt.s32.totalorder %s38, 1
        %s776 = scalar_select %p775, %s38, 1
        %s777 = smul.addr %s776, 64
        %s778 = smul.addr %s777, 4
        %s779 = scalar_lea.vmem %s5, %s778
        %p780 = scmp.lt.s32.totalorder %s38, 1
        %s781 = scalar_select %p780, %s38, 1
        %s782 = smul.addr %s781, 2
        %s783 = scalar_lea.vmem %s6, %s782
        %p784 = scmp.lt.s32.totalorder %s38, 1
        %s785 = scalar_select %p784, %s38, 1
        %s786 = smul.addr %s785, 2
        %s787 = scalar_lea.vmem %s7, %s786
        %p788 = scmp.lt.s32.totalorder %s38, 1
        %s789 = scalar_select %p788, %s38, 1
        %s790 = smul.addr %s789, 256
        %s791 = smul.addr %s790, 4
        %s792 = scalar_lea.vmem %s9, %s791
        %p793 = scmp.lt.s32.totalorder %s38, 1
        %s794 = scalar_select %p793, %s38, 1
        %s795 = smul.addr %s794, 8
        %s796 = scalar_lea.vmem %s10, %s795
        %p797 = scmp.lt.s32.totalorder %s38, 1
        %s798 = scalar_select %p797, %s38, 1
        %s799 = smul.addr %s798, 256
        %s800 = smul.addr %s799, 4
        %s801 = scalar_lea.vmem %s11, %s800
        %p802 = scmp.lt.s32.totalorder %s37, 1
        %s803 = scalar_select %p802, %s37, 1
        %s804 = smul.addr %s803, 6
        %s805 = smul.addr %s804, 8
        %s806 = scalar_lea.vmem %s15, %s805
        %p808 = scmp.eq.s32.totalorder %s38, 0
        // Predicated region
        $region101: #{phikon_forward.3} parent=79 // pred_check
          %p809 = pneg %p808
        $region102: #{phikon_forward.3} parent=79 // pred_check_branch
          %811 = sbr.rel (%p809) target = $region104
        $region103: #{phikon_forward.3} parent=79 // pred_region
          %v812 = vld [vmem:[%s762] sm:$0xff]
          %v813 = vld [vmem:[%s762 + $0x8] sm:$0xff]
          %v814 = vld [vmem:[%s762 + $0x10] sm:$0xff]
          %v815 = vld [vmem:[%s762 + $0x18] sm:$0xff]
          %v816 = vld [vmem:[%s762 + $0x20] sm:$0xff]
          %v817 = vld [vmem:[%s762 + $0x28] sm:$0xff]
          %818 = vst [vmem:[#allocation2] sm:$0xff] %v812
          %819 = vst [vmem:[#allocation2 + $0x8] sm:$0xff] %v813
          %820 = vst [vmem:[#allocation2 + $0x10] sm:$0xff] %v814
          %821 = vst [vmem:[#allocation2 + $0x18] sm:$0xff] %v815
          %822 = vst [vmem:[#allocation2 + $0x20] sm:$0xff] %v816
          %823 = vst [vmem:[#allocation2 + $0x28] sm:$0xff] %v817
        $region104: #{phikon_forward.3} parent=79 // pred_fallthru
          _
        %v824 = vld [vmem:[#allocation2] sm:$0xff]
        %v825 = vld [vmem:[#allocation2 + $0x8] sm:$0xff]
        %v826 = vld [vmem:[#allocation2 + $0x10] sm:$0xff]
        %v827 = vld [vmem:[#allocation2 + $0x18] sm:$0xff]
        %v828 = vld [vmem:[#allocation2 + $0x20] sm:$0xff]
        %v829 = vld [vmem:[#allocation2 + $0x28] sm:$0xff]
        %v830 = vld [vmem:[%s766] sm:$0x3]
        %v831 = vld [vmem:[%s770] sm:$0x3]
        %v832 = vadd.f32 %v824, %v825
        %833 = vadd.xlane.f32.xlu0 %v832
        %v834 = vpop.xlane.xlu0 %833
        %v835 = vadd.f32 %v826, %v827
        %836 = vadd.xlane.f32.xlu0 %v835
        %v837 = vpop.xlane.xlu0 %836
        %v838 = vadd.f32 %v828, %v829
        %839 = vadd.xlane.f32.xlu0 %v838
        %v840 = vpop.xlane.xlu0 %839
        %v841 = vrcp.pop 256.0
        %v842 = vmul.f32 %v834, %v841
        %v843 = vmul.f32 %v837, %v841
        %v844 = vmul.f32 %v840, %v841
        %v845 = vsub.f32 %v824, %v842
        %v846 = vsub.f32 %v825, %v842
        %v847 = vsub.f32 %v826, %v843
        %v848 = vsub.f32 %v827, %v843
        %v849 = vsub.f32 %v828, %v844
        %v850 = vsub.f32 %v829, %v844
        %v851 = vmul.f32 %v845, %v845
        %v852 = vmul.f32 %v846, %v846
        %v853 = vmul.f32 %v847, %v847
        %v854 = vmul.f32 %v848, %v848
        %v855 = vmul.f32 %v849, %v849
        %v856 = vmul.f32 %v850, %v850
        %v857 = vadd.f32 %v851, %v852
        %858 = vadd.xlane.f32.xlu0 %v857
        %v859 = vpop.xlane.xlu0 %858
        %v860 = vadd.f32 %v853, %v854
        %861 = vadd.xlane.f32.xlu0 %v860
        %v862 = vpop.xlane.xlu0 %861
        %v863 = vadd.f32 %v855, %v856
        %864 = vadd.xlane.f32.xlu0 %v863
        %v865 = vpop.xlane.xlu0 %864
        %v866 = vmul.f32 %v859, %v841
        %v867 = vmul.f32 %v862, %v841
        %v868 = vmul.f32 %v865, %v841
        %v869 = vadd.f32 %v866, 1e-12
        %v870 = vadd.f32 %v867, 1e-12
        %v871 = vadd.f32 %v868, 1e-12
        %v872 = vrsqrt.pop %v869
        %v873 = vrsqrt.pop %v870
        %v874 = vrsqrt.pop %v871
        %v875 = vmul.f32 %v845, %v872
        %v876 = vmul.f32 %v846, %v872
        %v877 = vmul.f32 %v847, %v873
        %v878 = vmul.f32 %v848, %v873
        %v879 = vmul.f32 %v849, %v874
        %v880 = vmul.f32 %v850, %v874
        %v882 = vlaneseq
        %v883 = vshrl.u32 %v882, 7
        %v884 = vsub.s32 0, %v883
        %v885 = vrot.slane %v830, %v884
        %v886 = vlaneseq
        %v887 = vshrl.u32 %v886, 7
        %v888 = vsub.s32 1, %v887
        %v889 = vrot.slane %v830, %v888
        %v892 = vmul.f32 %v875, %v885
        %v893 = vmul.f32 %v876, %v889
        %v894 = vmul.f32 %v877, %v885
        %v895 = vmul.f32 %v878, %v889
        %v896 = vmul.f32 %v879, %v885
        %v897 = vmul.f32 %v880, %v889
        %v899 = vlaneseq
        %v900 = vshrl.u32 %v899, 7
        %v901 = vsub.s32 0, %v900
        %v902 = vrot.slane %v831, %v901
        %v903 = vlaneseq
        %v904 = vshrl.u32 %v903, 7
        %v905 = vsub.s32 1, %v904
        %v906 = vrot.slane %v831, %v905
        %v909 = vadd.f32 %v892, %v902
        %v910 = vadd.f32 %v893, %v906
        %v911 = vadd.f32 %v894, %v902
        %v912 = vadd.f32 %v895, %v906
        %v913 = vadd.f32 %v896, %v902
        %v914 = vadd.f32 %v897, %v906
        %v915 = vpack.c.bf16 %v911, %v909
        %v916 = vpack.c.bf16 %v912, %v910
        %v917 = vpack.c.bf16 %v913, %v913
        %v918 = vpack.c.bf16 %v914, %v914
        %v919 = vld [vmem:[%s631] sm:$0xff]
        %v920 = vld [vmem:[%s631 + $0x8] sm:$0xff]
        %v921 = vld [vmem:[%s631 + $0x10] sm:$0xff]
        %v922 = vld [vmem:[%s631 + $0x18] sm:$0xff]
        %v923 = vld [vmem:[%s631 + $0x20] sm:$0xff]
        %v924 = vld [vmem:[%s631 + $0x28] sm:$0xff]
        %v925 = vld [vmem:[%s631 + $0x30] sm:$0xff]
        %v926 = vld [vmem:[%s631 + $0x38] sm:$0xff]
        %v927 = vld [vmem:[%s631 + $0x40] sm:$0xff]
        %v928 = vld [vmem:[%s631 + $0x48] sm:$0xff]
        %v929 = vld [vmem:[%s631 + $0x50] sm:$0xff]
        %v930 = vld [vmem:[%s631 + $0x58] sm:$0xff]
        %v931 = vld [vmem:[%s631 + $0x60] sm:$0xff]
        %v932 = vld [vmem:[%s631 + $0x68] sm:$0xff]
        %v933 = vld [vmem:[%s631 + $0x70] sm:$0xff]
        %v934 = vld [vmem:[%s631 + $0x78] sm:$0xff]
        %v935 = vld [vmem:[%s631 + $0x80] sm:$0xff]
        %v936 = vld [vmem:[%s631 + $0x88] sm:$0xff]
        %v937 = vld [vmem:[%s631 + $0x90] sm:$0xff]
        %v938 = vld [vmem:[%s631 + $0x98] sm:$0xff]
        %v939 = vld [vmem:[%s631 + $0xa0] sm:$0xff]
        %v940 = vld [vmem:[%s631 + $0xa8] sm:$0xff]
        %v941 = vld [vmem:[%s631 + $0xb0] sm:$0xff]
        %v942 = vld [vmem:[%s631 + $0xb8] sm:$0xff]
        %v943 = vld [vmem:[%s631 + $0xc0] sm:$0xff]
        %v944 = vld [vmem:[%s631 + $0xc8] sm:$0xff]
        %v945 = vld [vmem:[%s631 + $0xd0] sm:$0xff]
        %v946 = vld [vmem:[%s631 + $0xd8] sm:$0xff]
        %v947 = vld [vmem:[%s631 + $0xe0] sm:$0xff]
        %v948 = vld [vmem:[%s631 + $0xe8] sm:$0xff]
        %v949 = vld [vmem:[%s631 + $0xf0] sm:$0xff]
        %v950 = vld [vmem:[%s631 + $0xf8] sm:$0xff]
        %v951 = vld [vmem:[%s631 + $0x100] sm:$0xff]
        %v952 = vld [vmem:[%s631 + $0x108] sm:$0xff]
        %v953 = vld [vmem:[%s631 + $0x110] sm:$0xff]
        %v954 = vld [vmem:[%s631 + $0x118] sm:$0xff]
        %v955 = vld [vmem:[%s631 + $0x120] sm:$0xff]
        %v956 = vld [vmem:[%s631 + $0x128] sm:$0xff]
        %v957 = vld [vmem:[%s631 + $0x130] sm:$0xff]
        %v958 = vld [vmem:[%s631 + $0x138] sm:$0xff]
        %v959 = vld [vmem:[%s631 + $0x140] sm:$0xff]
        %v960 = vld [vmem:[%s631 + $0x148] sm:$0xff]
        %v961 = vld [vmem:[%s631 + $0x150] sm:$0xff]
        %v962 = vld [vmem:[%s631 + $0x158] sm:$0xff]
        %v963 = vld [vmem:[%s631 + $0x160] sm:$0xff]
        %v964 = vld [vmem:[%s631 + $0x168] sm:$0xff]
        %v965 = vld [vmem:[%s631 + $0x170] sm:$0xff]
        %v966 = vld [vmem:[%s631 + $0x178] sm:$0xff]
        %v967 = vld [vmem:[%s631 + $0x180] sm:$0xff]
        %v968 = vld [vmem:[%s631 + $0x188] sm:$0xff]
        %v969 = vld [vmem:[%s631 + $0x190] sm:$0xff]
        %v970 = vld [vmem:[%s631 + $0x198] sm:$0xff]
        %v971 = vld [vmem:[%s631 + $0x1a0] sm:$0xff]
        %v972 = vld [vmem:[%s631 + $0x1a8] sm:$0xff]
        %v973 = vld [vmem:[%s631 + $0x1b0] sm:$0xff]
        %v974 = vld [vmem:[%s631 + $0x1b8] sm:$0xff]
        %v975 = vld [vmem:[%s631 + $0x1c0] sm:$0xff]
        %v976 = vld [vmem:[%s631 + $0x1c8] sm:$0xff]
        %v977 = vld [vmem:[%s631 + $0x1d0] sm:$0xff]
        %v978 = vld [vmem:[%s631 + $0x1d8] sm:$0xff]
        %v979 = vld [vmem:[%s631 + $0x1e0] sm:$0xff]
        %v980 = vld [vmem:[%s631 + $0x1e8] sm:$0xff]
        %v981 = vld [vmem:[%s631 + $0x1f0] sm:$0xff]
        %v982 = vld [vmem:[%s631 + $0x1f8] sm:$0xff]
        %v983 = vld [vmem:[%s631 + $0x200] sm:$0xff]
        %v984 = vld [vmem:[%s631 + $0x208] sm:$0xff]
        %v985 = vld [vmem:[%s631 + $0x210] sm:$0xff]
        %v986 = vld [vmem:[%s631 + $0x218] sm:$0xff]
        %v987 = vld [vmem:[%s631 + $0x220] sm:$0xff]
        %v988 = vld [vmem:[%s631 + $0x228] sm:$0xff]
        %v989 = vld [vmem:[%s631 + $0x230] sm:$0xff]
        %v990 = vld [vmem:[%s631 + $0x238] sm:$0xff]
        %v991 = vld [vmem:[%s631 + $0x240] sm:$0xff]
        %v992 = vld [vmem:[%s631 + $0x248] sm:$0xff]
        %v993 = vld [vmem:[%s631 + $0x250] sm:$0xff]
        %v994 = vld [vmem:[%s631 + $0x258] sm:$0xff]
        %v995 = vld [vmem:[%s631 + $0x260] sm:$0xff]
        %v996 = vld [vmem:[%s631 + $0x268] sm:$0xff]
        %v997 = vld [vmem:[%s631 + $0x270] sm:$0xff]
        %v998 = vld [vmem:[%s631 + $0x278] sm:$0xff]
        %v999 = vld [vmem:[%s631 + $0x280] sm:$0xff]
        %v1000 = vld [vmem:[%s631 + $0x288] sm:$0xff]
        %v1001 = vld [vmem:[%s631 + $0x290] sm:$0xff]
        %v1002 = vld [vmem:[%s631 + $0x298] sm:$0xff]
        %v1003 = vld [vmem:[%s631 + $0x2a0] sm:$0xff]
        %v1004 = vld [vmem:[%s631 + $0x2a8] sm:$0xff]
        %v1005 = vld [vmem:[%s631 + $0x2b0] sm:$0xff]
        %v1006 = vld [vmem:[%s631 + $0x2b8] sm:$0xff]
        %v1007 = vld [vmem:[%s631 + $0x2c0] sm:$0xff]
        %v1008 = vld [vmem:[%s631 + $0x2c8] sm:$0xff]
        %v1009 = vld [vmem:[%s631 + $0x2d0] sm:$0xff]
        %v1010 = vld [vmem:[%s631 + $0x2d8] sm:$0xff]
        %v1011 = vld [vmem:[%s631 + $0x2e0] sm:$0xff]
        %v1012 = vld [vmem:[%s631 + $0x2e8] sm:$0xff]
        %v1013 = vld [vmem:[%s631 + $0x2f0] sm:$0xff]
        %v1014 = vld [vmem:[%s631 + $0x2f8] sm:$0xff]
        %v1015 = vld [vmem:[%s774] sm:$0x3f]
        %v1017 = vlaneseq
        %v1018 = vshrl.u32 %v1017, 7
        %v1019 = vsub.s32 0, %v1018
        %v1020 = vrot.slane %v1015, %v1019
        %v1021 = vlaneseq
        %v1022 = vshrl.u32 %v1021, 7
        %v1023 = vsub.s32 1, %v1022
        %v1024 = vrot.slane %v1015, %v1023
        %v1025 = vlaneseq
        %v1026 = vshrl.u32 %v1025, 7
        %v1027 = vsub.s32 2, %v1026
        %v1028 = vrot.slane %v1015, %v1027
        %v1029 = vlaneseq
        %v1030 = vshrl.u32 %v1029, 7
        %v1031 = vsub.s32 3, %v1030
        %v1032 = vrot.slane %v1015, %v1031
        %v1033 = vlaneseq
        %v1034 = vshrl.u32 %v1033, 7
        %v1035 = vsub.s32 4, %v1034
        %v1036 = vrot.slane %v1015, %v1035
        %v1037 = vlaneseq
        %v1038 = vshrl.u32 %v1037, 7
        %v1039 = vsub.s32 5, %v1038
        %v1040 = vrot.slane %v1015, %v1039
        %v1143 = vunpack.c.l.b16 %v919
        %v1144 = vunpack.c.h.b16 %v919
        %v1145 = vunpack.c.l.b16 %v920
        %v1146 = vunpack.c.h.b16 %v920
        %v1147 = vunpack.c.l.b16 %v921
        %v1148 = vunpack.c.h.b16 %v921
        %v1149 = vunpack.c.l.b16 %v922
        %v1150 = vunpack.c.h.b16 %v922
        %v1151 = vunpack.c.l.b16 %v923
        %v1152 = vunpack.c.h.b16 %v923
        %v1153 = vunpack.c.l.b16 %v924
        %v1154 = vunpack.c.h.b16 %v924
        %v1155 = vunpack.c.l.b16 %v925
        %v1156 = vunpack.c.h.b16 %v925
        %v1157 = vunpack.c.l.b16 %v926
        %v1158 = vunpack.c.h.b16 %v926
        %v1159 = vunpack.c.l.b16 %v927
        %v1160 = vunpack.c.h.b16 %v927
        %v1161 = vunpack.c.l.b16 %v928
        %v1162 = vunpack.c.h.b16 %v928
        %v1163 = vunpack.c.l.b16 %v929
        %v1164 = vunpack.c.h.b16 %v929
        %v1165 = vunpack.c.l.b16 %v930
        %v1166 = vunpack.c.h.b16 %v930
        %v1167 = vunpack.c.l.b16 %v931
        %v1168 = vunpack.c.h.b16 %v931
        %v1169 = vunpack.c.l.b16 %v932
        %v1170 = vunpack.c.h.b16 %v932
        %v1171 = vunpack.c.l.b16 %v933
        %v1172 = vunpack.c.h.b16 %v933
        %v1173 = vunpack.c.l.b16 %v934
        %v1174 = vunpack.c.h.b16 %v934
        %v1175 = vunpack.c.l.b16 %v935
        %v1176 = vunpack.c.h.b16 %v935
        %v1177 = vunpack.c.l.b16 %v936
        %v1178 = vunpack.c.h.b16 %v936
        %v1179 = vunpack.c.l.b16 %v937
        %v1180 = vunpack.c.h.b16 %v937
        %v1181 = vunpack.c.l.b16 %v938
        %v1182 = vunpack.c.h.b16 %v938
        %v1183 = vunpack.c.l.b16 %v939
        %v1184 = vunpack.c.h.b16 %v939
        %v1185 = vunpack.c.l.b16 %v940
        %v1186 = vunpack.c.h.b16 %v940
        %v1187 = vunpack.c.l.b16 %v941
        %v1188 = vunpack.c.h.b16 %v941
        %v1189 = vunpack.c.l.b16 %v942
        %v1190 = vunpack.c.h.b16 %v942
        %v1191 = vunpack.c.l.b16 %v943
        %v1192 = vunpack.c.h.b16 %v943
        %v1193 = vunpack.c.l.b16 %v944
        %v1194 = vunpack.c.h.b16 %v944
        %v1195 = vunpack.c.l.b16 %v945
        %v1196 = vunpack.c.h.b16 %v945
        %v1197 = vunpack.c.l.b16 %v946
        %v1198 = vunpack.c.h.b16 %v946
        %v1199 = vunpack.c.l.b16 %v947
        %v1200 = vunpack.c.h.b16 %v947
        %v1201 = vunpack.c.l.b16 %v948
        %v1202 = vunpack.c.h.b16 %v948
        %v1203 = vunpack.c.l.b16 %v949
        %v1204 = vunpack.c.h.b16 %v949
        %v1205 = vunpack.c.l.b16 %v950
        %v1206 = vunpack.c.h.b16 %v950
        %v1207 = vunpack.c.l.b16 %v951
        %v1208 = vunpack.c.h.b16 %v951
        %v1209 = vunpack.c.l.b16 %v952
        %v1210 = vunpack.c.h.b16 %v952
        %v1211 = vunpack.c.l.b16 %v953
        %v1212 = vunpack.c.h.b16 %v953
        %v1213 = vunpack.c.l.b16 %v954
        %v1214 = vunpack.c.h.b16 %v954
        %v1215 = vunpack.c.l.b16 %v955
        %v1216 = vunpack.c.h.b16 %v955
        %v1217 = vunpack.c.l.b16 %v956
        %v1218 = vunpack.c.h.b16 %v956
        %v1219 = vunpack.c.l.b16 %v957
        %v1220 = vunpack.c.h.b16 %v957
        %v1221 = vunpack.c.l.b16 %v958
        %v1222 = vunpack.c.h.b16 %v958
        %v1223 = vunpack.c.l.b16 %v959
        %v1224 = vunpack.c.h.b16 %v959
        %v1225 = vunpack.c.l.b16 %v960
        %v1226 = vunpack.c.h.b16 %v960
        %v1227 = vunpack.c.l.b16 %v961
        %v1228 = vunpack.c.h.b16 %v961
        %v1229 = vunpack.c.l.b16 %v962
        %v1230 = vunpack.c.h.b16 %v962
        %v1231 = vunpack.c.l.b16 %v963
        %v1232 = vunpack.c.h.b16 %v963
        %v1233 = vunpack.c.l.b16 %v964
        %v1234 = vunpack.c.h.b16 %v964
        %v1235 = vunpack.c.l.b16 %v965
        %v1236 = vunpack.c.h.b16 %v965
        %v1237 = vunpack.c.l.b16 %v966
        %v1238 = vunpack.c.h.b16 %v966
        %v1239 = vunpack.c.l.b16 %v967
        %v1240 = vunpack.c.h.b16 %v967
        %v1241 = vunpack.c.l.b16 %v968
        %v1242 = vunpack.c.h.b16 %v968
        %v1243 = vunpack.c.l.b16 %v969
        %v1244 = vunpack.c.h.b16 %v969
        %v1245 = vunpack.c.l.b16 %v970
        %v1246 = vunpack.c.h.b16 %v970
        %v1247 = vunpack.c.l.b16 %v971
        %v1248 = vunpack.c.h.b16 %v971
        %v1249 = vunpack.c.l.b16 %v972
        %v1250 = vunpack.c.h.b16 %v972
        %v1251 = vunpack.c.l.b16 %v973
        %v1252 = vunpack.c.h.b16 %v973
        %v1253 = vunpack.c.l.b16 %v974
        %v1254 = vunpack.c.h.b16 %v974
        %v1255 = vunpack.c.l.b16 %v975
        %v1256 = vunpack.c.h.b16 %v975
        %v1257 = vunpack.c.l.b16 %v976
        %v1258 = vunpack.c.h.b16 %v976
        %v1259 = vunpack.c.l.b16 %v977
        %v1260 = vunpack.c.h.b16 %v977
        %v1261 = vunpack.c.l.b16 %v978
        %v1262 = vunpack.c.h.b16 %v978
        %v1263 = vunpack.c.l.b16 %v979
        %v1264 = vunpack.c.h.b16 %v979
        %v1265 = vunpack.c.l.b16 %v980
        %v1266 = vunpack.c.h.b16 %v980
        %v1267 = vunpack.c.l.b16 %v981
        %v1268 = vunpack.c.h.b16 %v981
        %v1269 = vunpack.c.l.b16 %v982
        %v1270 = vunpack.c.h.b16 %v982
        %v1271 = vunpack.c.l.b16 %v983
        %v1272 = vunpack.c.h.b16 %v983
        %v1273 = vunpack.c.l.b16 %v984
        %v1274 = vunpack.c.h.b16 %v984
        %v1275 = vunpack.c.l.b16 %v985
        %v1276 = vunpack.c.h.b16 %v985
        %v1277 = vunpack.c.l.b16 %v986
        %v1278 = vunpack.c.h.b16 %v986
        %v1279 = vunpack.c.l.b16 %v987
        %v1280 = vunpack.c.h.b16 %v987
        %v1281 = vunpack.c.l.b16 %v988
        %v1282 = vunpack.c.h.b16 %v988
        %v1283 = vunpack.c.l.b16 %v989
        %v1284 = vunpack.c.h.b16 %v989
        %v1285 = vunpack.c.l.b16 %v990
        %v1286 = vunpack.c.h.b16 %v990
        %v1287 = vunpack.c.l.b16 %v991
        %v1288 = vunpack.c.h.b16 %v991
        %v1289 = vunpack.c.l.b16 %v992
        %v1290 = vunpack.c.h.b16 %v992
        %v1291 = vunpack.c.l.b16 %v993
        %v1292 = vunpack.c.h.b16 %v993
        %v1293 = vunpack.c.l.b16 %v994
        %v1294 = vunpack.c.h.b16 %v994
        %v1295 = vunpack.c.l.b16 %v995
        %v1296 = vunpack.c.h.b16 %v995
        %v1297 = vunpack.c.l.b16 %v996
        %v1298 = vunpack.c.h.b16 %v996
        %v1299 = vunpack.c.l.b16 %v997
        %v1300 = vunpack.c.h.b16 %v997
        %v1301 = vunpack.c.l.b16 %v998
        %v1302 = vunpack.c.h.b16 %v998
        %v1303 = vunpack.c.l.b16 %v999
        %v1304 = vunpack.c.h.b16 %v999
        %v1305 = vunpack.c.l.b16 %v1000
        %v1306 = vunpack.c.h.b16 %v1000
        %v1307 = vunpack.c.l.b16 %v1001
        %v1308 = vunpack.c.h.b16 %v1001
        %v1309 = vunpack.c.l.b16 %v1002
        %v1310 = vunpack.c.h.b16 %v1002
        %v1311 = vunpack.c.l.b16 %v1003
        %v1312 = vunpack.c.h.b16 %v1003
        %v1313 = vunpack.c.l.b16 %v1004
        %v1314 = vunpack.c.h.b16 %v1004
        %v1315 = vunpack.c.l.b16 %v1005
        %v1316 = vunpack.c.h.b16 %v1005
        %v1317 = vunpack.c.l.b16 %v1006
        %v1318 = vunpack.c.h.b16 %v1006
        %v1319 = vunpack.c.l.b16 %v1007
        %v1320 = vunpack.c.h.b16 %v1007
        %v1321 = vunpack.c.l.b16 %v1008
        %v1322 = vunpack.c.h.b16 %v1008
        %v1323 = vunpack.c.l.b16 %v1009
        %v1324 = vunpack.c.h.b16 %v1009
        %v1325 = vunpack.c.l.b16 %v1010
        %v1326 = vunpack.c.h.b16 %v1010
        %v1327 = vunpack.c.l.b16 %v1011
        %v1328 = vunpack.c.h.b16 %v1011
        %v1329 = vunpack.c.l.b16 %v1012
        %v1330 = vunpack.c.h.b16 %v1012
        %v1331 = vunpack.c.l.b16 %v1013
        %v1332 = vunpack.c.h.b16 %v1013
        %v1333 = vunpack.c.l.b16 %v1014
        %v1334 = vunpack.c.h.b16 %v1014
        %v1335 = vpack.c.b16 %v1149, %v1143
        %v1336 = vpack.c.b16 %v1150, %v1144
        %v1337 = vpack.c.b16 %v1151, %v1145
        %v1338 = vpack.c.b16 %v1152, %v1146
        %v1339 = vpack.c.b16 %v1153, %v1147
        %v1340 = vpack.c.b16 %v1154, %v1148
        %v1341 = vpack.c.b16 %v1161, %v1155
        %v1342 = vpack.c.b16 %v1162, %v1156
        %v1343 = vpack.c.b16 %v1163, %v1157
        %v1344 = vpack.c.b16 %v1164, %v1158
        %v1345 = vpack.c.b16 %v1165, %v1159
        %v1346 = vpack.c.b16 %v1166, %v1160
        %v1347 = vpack.c.b16 %v1173, %v1167
        %v1348 = vpack.c.b16 %v1174, %v1168
        %v1349 = vpack.c.b16 %v1175, %v1169
        %v1350 = vpack.c.b16 %v1176, %v1170
        %v1351 = vpack.c.b16 %v1177, %v1171
        %v1352 = vpack.c.b16 %v1178, %v1172
        %v1353 = vpack.c.b16 %v1185, %v1179
        %v1354 = vpack.c.b16 %v1186, %v1180
        %v1355 = vpack.c.b16 %v1187, %v1181
        %v1356 = vpack.c.b16 %v1188, %v1182
        %v1357 = vpack.c.b16 %v1189, %v1183
        %v1358 = vpack.c.b16 %v1190, %v1184
        %v1359 = vpack.c.b16 %v1197, %v1191
        %v1360 = vpack.c.b16 %v1198, %v1192
        %v1361 = vpack.c.b16 %v1199, %v1193
        %v1362 = vpack.c.b16 %v1200, %v1194
        %v1363 = vpack.c.b16 %v1201, %v1195
        %v1364 = vpack.c.b16 %v1202, %v1196
        %v1365 = vpack.c.b16 %v1209, %v1203
        %v1366 = vpack.c.b16 %v1210, %v1204
        %v1367 = vpack.c.b16 %v1211, %v1205
        %v1368 = vpack.c.b16 %v1212, %v1206
        %v1369 = vpack.c.b16 %v1213, %v1207
        %v1370 = vpack.c.b16 %v1214, %v1208
        %v1371 = vpack.c.b16 %v1221, %v1215
        %v1372 = vpack.c.b16 %v1222, %v1216
        %v1373 = vpack.c.b16 %v1223, %v1217
        %v1374 = vpack.c.b16 %v1224, %v1218
        %v1375 = vpack.c.b16 %v1225, %v1219
        %v1376 = vpack.c.b16 %v1226, %v1220
        %v1377 = vpack.c.b16 %v1233, %v1227
        %v1378 = vpack.c.b16 %v1234, %v1228
        %v1379 = vpack.c.b16 %v1235, %v1229
        %v1380 = vpack.c.b16 %v1236, %v1230
        %v1381 = vpack.c.b16 %v1237, %v1231
        %v1382 = vpack.c.b16 %v1238, %v1232
        %v1383 = vpack.c.b16 %v1245, %v1239
        %v1384 = vpack.c.b16 %v1246, %v1240
        %v1385 = vpack.c.b16 %v1247, %v1241
        %v1386 = vpack.c.b16 %v1248, %v1242
        %v1387 = vpack.c.b16 %v1249, %v1243
        %v1388 = vpack.c.b16 %v1250, %v1244
        %v1389 = vpack.c.b16 %v1257, %v1251
        %v1390 = vpack.c.b16 %v1258, %v1252
        %v1391 = vpack.c.b16 %v1259, %v1253
        %v1392 = vpack.c.b16 %v1260, %v1254
        %v1393 = vpack.c.b16 %v1261, %v1255
        %v1394 = vpack.c.b16 %v1262, %v1256
        %v1395 = vpack.c.b16 %v1269, %v1263
        %v1396 = vpack.c.b16 %v1270, %v1264
        %v1397 = vpack.c.b16 %v1271, %v1265
        %v1398 = vpack.c.b16 %v1272, %v1266
        %v1399 = vpack.c.b16 %v1273, %v1267
        %v1400 = vpack.c.b16 %v1274, %v1268
        %v1401 = vpack.c.b16 %v1281, %v1275
        %v1402 = vpack.c.b16 %v1282, %v1276
        %v1403 = vpack.c.b16 %v1283, %v1277
        %v1404 = vpack.c.b16 %v1284, %v1278
        %v1405 = vpack.c.b16 %v1285, %v1279
        %v1406 = vpack.c.b16 %v1286, %v1280
        %v1407 = vpack.c.b16 %v1293, %v1287
        %v1408 = vpack.c.b16 %v1294, %v1288
        %v1409 = vpack.c.b16 %v1295, %v1289
        %v1410 = vpack.c.b16 %v1296, %v1290
        %v1411 = vpack.c.b16 %v1297, %v1291
        %v1412 = vpack.c.b16 %v1298, %v1292
        %v1413 = vpack.c.b16 %v1305, %v1299
        %v1414 = vpack.c.b16 %v1306, %v1300
        %v1415 = vpack.c.b16 %v1307, %v1301
        %v1416 = vpack.c.b16 %v1308, %v1302
        %v1417 = vpack.c.b16 %v1309, %v1303
        %v1418 = vpack.c.b16 %v1310, %v1304
        %v1419 = vpack.c.b16 %v1317, %v1311
        %v1420 = vpack.c.b16 %v1318, %v1312
        %v1421 = vpack.c.b16 %v1319, %v1313
        %v1422 = vpack.c.b16 %v1320, %v1314
        %v1423 = vpack.c.b16 %v1321, %v1315
        %v1424 = vpack.c.b16 %v1322, %v1316
        %v1425 = vpack.c.b16 %v1329, %v1323
        %v1426 = vpack.c.b16 %v1330, %v1324
        %v1427 = vpack.c.b16 %v1331, %v1325
        %v1428 = vpack.c.b16 %v1332, %v1326
        %v1429 = vpack.c.b16 %v1333, %v1327
        %v1430 = vpack.c.b16 %v1334, %v1328
        %1527 = vmatprep.subr.bf16.mxu0 %v1378
        %1528 = vmatpush1.bf16.msra.mxu0 %v1377
        %1529 = vmatprep.subr.bf16.mxu0 %v1372
        %1530 = vmatpush1.bf16.msra.mxu0 %v1371
        %1531 = vmatprep.subr.bf16.mxu0 %v1366
        %1532 = vmatpush1.bf16.msra.mxu0 %v1365
        %1533 = vmatprep.subr.bf16.mxu0 %v1360
        %1534 = vmatpush1.bf16.msra.mxu0 %v1359
        %1535 = vmatprep.subr.bf16.mxu0 %v1354
        %1536 = vmatpush1.bf16.msra.mxu0 %v1353
        %1537 = vmatprep.subr.bf16.mxu0 %v1348
        %1538 = vmatpush1.bf16.msra.mxu0 %v1347
        %1539 = vmatprep.subr.bf16.mxu0 %v1342
        %1540 = vmatpush1.bf16.msra.mxu0 %v1341
        %1541 = vmatprep.subr.bf16.mxu0 %v1336
        %1542 = vmatpush1.bf16.msra.mxu0 %v1335
        %1543 = vmatprep.subr.bf16.mxu0 %v1426
        %1544 = vmatpush2.bf16.msra.mxu0 %v1425
        %1545 = vmatprep.subr.bf16.mxu0 %v1420
        %1546 = vmatpush2.bf16.msra.mxu0 %v1419
        %1547 = vmatprep.subr.bf16.mxu0 %v1414
        %1548 = vmatpush2.bf16.msra.mxu0 %v1413
        %1549 = vmatprep.subr.bf16.mxu0 %v1408
        %1550 = vmatpush2.bf16.msra.mxu0 %v1407
        %1551 = vmatprep.subr.bf16.mxu0 %v1402
        %1552 = vmatpush2.bf16.msra.mxu0 %v1401
        %1553 = vmatprep.subr.bf16.mxu0 %v1396
        %1554 = vmatpush2.bf16.msra.mxu0 %v1395
        %1555 = vmatprep.subr.bf16.mxu0 %v1390
        %1556 = vmatpush2.bf16.msra.mxu0 %v1389
        %1557 = vmatprep.subr.bf16.mxu0 %v1384
        %1558 = vmatpush2.bf16.msra.mxu0 %v1383
        %1559 = vmatprep.mubr.bf16.mxu0 %v916
        %1560 = vmatmul.mubr.bf16.gmra.mxu0 %v915
        %v1561 = vpop.f32.mrf.mxu0
        %v1562 = vadd.f32 %v1020, %v1561
        %v1563 = vpop.f32.mrf.mxu0
        %v1564 = vadd.f32 %v1024, %v1563
        %v1565 = vpop.f32.mrf.mxu0
        %v1566 = vadd.f32 %v1020, %v1565
        %v1567 = vpop.f32.mrf.mxu0
        %v1568 = vadd.f32 %v1024, %v1567
        %1569 = vmatprep.mubr.bf16.mxu0 %v918
        %1570 = vmatmul.mubr.bf16.gmra.mxu0 %v917
        %v1571 = vpop.f32.mrf.mxu0
        %v1572 = vadd.f32 %v1020, %v1571
        %v1573 = vpop.f32.mrf.mxu0
        %v1574 = vadd.f32 %v1024, %v1573
        %v1575 = vpop.f32.mrf.mxu0
        %v1576 = vpop.f32.mrf.mxu0
        %1577 = vdwg.mxu0
        %1578 = vmatprep.subr.bf16.mxu0 %v1380
        %1579 = vmatpush1.bf16.msra.mxu0 %v1379
        %1580 = vmatprep.subr.bf16.mxu0 %v1374
        %1581 = vmatpush1.bf16.msra.mxu0 %v1373
        %1582 = vmatprep.subr.bf16.mxu0 %v1368
        %1583 = vmatpush1.bf16.msra.mxu0 %v1367
        %1584 = vmatprep.subr.bf16.mxu0 %v1362
        %1585 = vmatpush1.bf16.msra.mxu0 %v1361
        %1586 = vmatprep.subr.bf16.mxu0 %v1356
        %1587 = vmatpush1.bf16.msra.mxu0 %v1355
        %1588 = vmatprep.subr.bf16.mxu0 %v1350
        %1589 = vmatpush1.bf16.msra.mxu0 %v1349
        %1590 = vmatprep.subr.bf16.mxu0 %v1344
        %1591 = vmatpush1.bf16.msra.mxu0 %v1343
        %1592 = vmatprep.subr.bf16.mxu0 %v1338
        %1593 = vmatpush1.bf16.msra.mxu0 %v1337
        %1594 = vmatprep.subr.bf16.mxu0 %v1428
        %1595 = vmatpush2.bf16.msra.mxu0 %v1427
        %1596 = vmatprep.subr.bf16.mxu0 %v1422
        %1597 = vmatpush2.bf16.msra.mxu0 %v1421
        %1598 = vmatprep.subr.bf16.mxu0 %v1416
        %1599 = vmatpush2.bf16.msra.mxu0 %v1415
        %1600 = vmatprep.subr.bf16.mxu0 %v1410
        %1601 = vmatpush2.bf16.msra.mxu0 %v1409
        %1602 = vmatprep.subr.bf16.mxu0 %v1404
        %1603 = vmatpush2.bf16.msra.mxu0 %v1403
        %1604 = vmatprep.subr.bf16.mxu0 %v1398
        %1605 = vmatpush2.bf16.msra.mxu0 %v1397
        %1606 = vmatprep.subr.bf16.mxu0 %v1392
        %1607 = vmatpush2.bf16.msra.mxu0 %v1391
        %1608 = vmatprep.subr.bf16.mxu0 %v1386
        %1609 = vmatpush2.bf16.msra.mxu0 %v1385
        %1610 = vmatprep.mubr.bf16.mxu0 %v916
        %1611 = vmatmul.mubr.bf16.gmra.mxu0 %v915
        %v1612 = vpop.f32.mrf.mxu0
        %v1613 = vadd.f32 %v1028, %v1612
        %v1614 = vpop.f32.mrf.mxu0
        %v1615 = vadd.f32 %v1032, %v1614
        %v1616 = vpop.f32.mrf.mxu0
        %v1617 = vadd.f32 %v1028, %v1616
        %v1618 = vpop.f32.mrf.mxu0
        %v1619 = vadd.f32 %v1032, %v1618
        %1620 = vmatprep.mubr.bf16.mxu0 %v918
        %1621 = vmatmul.mubr.bf16.gmra.mxu0 %v917
        %v1622 = vpop.f32.mrf.mxu0
        %v1623 = vadd.f32 %v1028, %v1622
        %v1624 = vpop.f32.mrf.mxu0
        %v1625 = vadd.f32 %v1032, %v1624
        %v1626 = vpop.f32.mrf.mxu0
        %v1627 = vpop.f32.mrf.mxu0
        %1628 = vdwg.mxu0
        %1629 = vmatprep.subr.bf16.mxu0 %v1382
        %1630 = vmatpush1.bf16.msra.mxu0 %v1381
        %1631 = vmatprep.subr.bf16.mxu0 %v1376
        %1632 = vmatpush1.bf16.msra.mxu0 %v1375
        %1633 = vmatprep.subr.bf16.mxu0 %v1370
        %1634 = vmatpush1.bf16.msra.mxu0 %v1369
        %1635 = vmatprep.subr.bf16.mxu0 %v1364
        %1636 = vmatpush1.bf16.msra.mxu0 %v1363
        %1637 = vmatprep.subr.bf16.mxu0 %v1358
        %1638 = vmatpush1.bf16.msra.mxu0 %v1357
        %1639 = vmatprep.subr.bf16.mxu0 %v1352
        %1640 = vmatpush1.bf16.msra.mxu0 %v1351
        %1641 = vmatprep.subr.bf16.mxu0 %v1346
        %1642 = vmatpush1.bf16.msra.mxu0 %v1345
        %1643 = vmatprep.subr.bf16.mxu0 %v1340
        %1644 = vmatpush1.bf16.msra.mxu0 %v1339
        %1645 = vmatprep.subr.bf16.mxu0 %v1430
        %1646 = vmatpush2.bf16.msra.mxu0 %v1429
        %1647 = vmatprep.subr.bf16.mxu0 %v1424
        %1648 = vmatpush2.bf16.msra.mxu0 %v1423
        %1649 = vmatprep.subr.bf16.mxu0 %v1418
        %1650 = vmatpush2.bf16.msra.mxu0 %v1417
        %1651 = vmatprep.subr.bf16.mxu0 %v1412
        %1652 = vmatpush2.bf16.msra.mxu0 %v1411
        %1653 = vmatprep.subr.bf16.mxu0 %v1406
        %1654 = vmatpush2.bf16.msra.mxu0 %v1405
        %1655 = vmatprep.subr.bf16.mxu0 %v1400
        %1656 = vmatpush2.bf16.msra.mxu0 %v1399
        %1657 = vmatprep.subr.bf16.mxu0 %v1394
        %1658 = vmatpush2.bf16.msra.mxu0 %v1393
        %1659 = vmatprep.subr.bf16.mxu0 %v1388
        %1660 = vmatpush2.bf16.msra.mxu0 %v1387
        %1661 = vmatprep.mubr.bf16.mxu0 %v916
        %1662 = vmatmul.mubr.bf16.gmra.mxu0 %v915
        %v1663 = vpop.f32.mrf.mxu0
        %v1664 = vadd.f32 %v1036, %v1663
        %v1665 = vpop.f32.mrf.mxu0
        %v1666 = vadd.f32 %v1040, %v1665
        %v1667 = vpop.f32.mrf.mxu0
        %v1668 = vadd.f32 %v1036, %v1667
        %v1669 = vpop.f32.mrf.mxu0
        %v1670 = vadd.f32 %v1040, %v1669
        %1671 = vmatprep.mubr.bf16.mxu0 %v918
        %1672 = vmatmul.mubr.bf16.gmra.mxu0 %v917
        %v1673 = vpop.f32.mrf.mxu0
        %v1674 = vadd.f32 %v1036, %v1673
        %v1675 = vpop.f32.mrf.mxu0
        %v1676 = vadd.f32 %v1040, %v1675
        %v1677 = vpop.f32.mrf.mxu0
        %v1678 = vpop.f32.mrf.mxu0
        %1679 = vdwg.mxu0
        %v1680 = vlaneseq
        %v1681 = vand.u32 %v1680, 127
        %vm1682 = vcmp.lt.s32.totalorder %v1681, 17
        %v1683 = vsel %vm1682, 0.0, -1e+30
        %v1684 = vmul.f32 %v1562, 0.125
        %v1685 = vmul.f32 %v1566, 0.125
        %v1686 = vmul.f32 %v1572, 0.125
        %v1687 = vpack.c.bf16 %v1685, %v1684
        %v1688 = vpack.c.bf16 %v1686, %v1686
        %v1689 = vpack.c.bf16 %v1617, %v1613
        %v1690 = vpack.c.bf16 %v1623, %v1623
        %v1691 = vpack.c.bf16 %v1668, %v1664
        %v1692 = vpack.c.bf16 %v1674, %v1674
        %vm1693 = vcmask 523264
        %v1695 = vsel %vm1693, %v1687, 0
        %v1698 = vsel %vm1693, %v1688, 0
        %v1701 = vsel %vm1693, %v1689, 0
        %v1704 = vsel %vm1693, %v1690, 0
        %1706 = vmatprep.subr.bf16.mxu0 0
        %1707 = vmatpush1.bf16.xpose.msra.mxu0 0
        %1708 = vmatprep.subr.bf16.mxu0 0
        %1709 = vmatpush1.bf16.xpose.msra.mxu0 0
        %1710 = vmatprep.subr.bf16.mxu0 0
        %1711 = vmatpush1.bf16.xpose.msra.mxu0 0
        %1712 = vmatprep.subr.bf16.mxu0 0
        %1713 = vmatpush1.bf16.xpose.msra.mxu0 0
        %1714 = vmatprep.subr.bf16.mxu0 0
        %1715 = vmatpush1.bf16.xpose.msra.mxu0 0
        %1716 = vmatprep.subr.bf16.mxu0 0
        %1717 = vmatpush1.bf16.xpose.msra.mxu0 0
        %1718 = vmatprep.subr.bf16.mxu0 0
        %1719 = vmatpush1.bf16.xpose.msra.mxu0 %v1704
        %1720 = vmatprep.subr.bf16.mxu0 0
        %1721 = vmatpush1.bf16.xpose.msra.mxu0 %v1701
        %1722 = vmatprep.subr.bf16.mxu0 0
        %1723 = vmatpush2.bf16.xpose.msra.mxu0 0
        %1724 = vmatprep.subr.bf16.mxu0 0
        %1725 = vmatpush2.bf16.xpose.msra.mxu0 0
        %1726 = vmatprep.subr.bf16.mxu0 0
        %1727 = vmatpush2.bf16.xpose.msra.mxu0 0
        %1728 = vmatprep.subr.bf16.mxu0 0
        %1729 = vmatpush2.bf16.xpose.msra.mxu0 0
        %1730 = vmatprep.subr.bf16.mxu0 0
        %1731 = vmatpush2.bf16.xpose.msra.mxu0 0
        %1732 = vmatprep.subr.bf16.mxu0 0
        %1733 = vmatpush2.bf16.xpose.msra.mxu0 0
        %1734 = vmatprep.subr.bf16.mxu0 0
        %1735 = vmatpush2.bf16.xpose.msra.mxu0 0
        %1736 = vmatprep.subr.bf16.mxu0 0
        %1737 = vmatpush2.bf16.xpose.msra.mxu0 0
        %1738 = vmatprep.mubr.bf16.mxu0 0
        %1739 = vmatmul.mubr.bf16.gmra.mxu0 %v1695
        %v1740 = vpop.f32.mrf.mxu0
        %v1741 = vadd.f32 %v1683, %v1740
        %v1742 = vpop.f32.mrf.mxu0
        %v1743 = vpop.f32.mrf.mxu0
        %v1744 = vadd.f32 %v1683, %v1743
        %v1745 = vpop.f32.mrf.mxu0
        %1746 = vmatprep.mubr.bf16.mxu0 0
        %1747 = vmatmul.mubr.bf16.gmra.mxu0 %v1698
        %v1748 = vpop.f32.mrf.mxu0
        %v1749 = vadd.f32 %v1683, %v1748
        %v1750 = vpop.f32.mrf.mxu0
        %v1751 = vpop.f32.mrf.mxu0
        %v1752 = vpop.f32.mrf.mxu0
        %1753 = vdwg.mxu0
        %vm1754 = vcmask 195584
        %v1755 = vsel %vm1754, %v1741, -inf
        %1756 = vmax.xlane.f32.xlu0 %v1755
        %v1757 = vpop.xlane.xlu0 %1756
        %v1758 = vsel %vm1754, %v1744, -inf
        %1759 = vmax.xlane.f32.xlu0 %v1758
        %v1760 = vpop.xlane.xlu0 %1759
        %v1761 = vsel %vm1754, %v1749, -inf
        %1762 = vmax.xlane.f32.xlu0 %v1761
        %v1763 = vpop.xlane.xlu0 %1762
        %v1764 = vsub.f32 %v1741, %v1757
        %v1765 = vsub.f32 %v1744, %v1760
        %v1766 = vsub.f32 %v1749, %v1763
        %v1767 = vmul.f32 %v1764, 1.442695
        %v1768 = vpow.pop %v1767
        %v1769 = vmul.f32 %v1765, 1.442695
        %v1770 = vpow.pop %v1769
        %v1771 = vmul.f32 %v1766, 1.442695
        %v1772 = vpow.pop %v1771
        %v1773 = vsel %vm1754, %v1768, 0.0
        %1774 = vadd.xlane.f32.xlu0 %v1773
        %v1775 = vpop.xlane.xlu0 %1774
        %v1776 = vsel %vm1754, %v1770, 0.0
        %1777 = vadd.xlane.f32.xlu0 %v1776
        %v1778 = vpop.xlane.xlu0 %1777
        %v1779 = vsel %vm1754, %v1772, 0.0
        %1780 = vadd.xlane.f32.xlu0 %v1779
        %v1781 = vpop.xlane.xlu0 %1780
        %v1782 = vrcp.pop %v1775
        %v1783 = vrcp.pop %v1778
        %v1784 = vrcp.pop %v1781
        %v1785 = vmul.f32 %v1768, %v1782
        %v1786 = vmul.f32 %v1770, %v1783
        %v1787 = vmul.f32 %v1772, %v1784
        %v1788 = vpack.c.bf16 %v1786, %v1785
        %v1789 = vpack.c.bf16 %v1787, %v1787
        %v1791 = vsel %vm1754, %v1788, 0
        %v1794 = vsel %vm1754, %v1789, 0
        %vm1796 = vcmask 1043456
        %v1798 = vsel %vm1796, %v1692, 0
        %1800 = vmatprep.subr.bf16.mxu0 0
        %1801 = vmatpush1.bf16.msra.mxu0 0
        %1802 = vmatprep.subr.bf16.mxu0 0
        %1803 = vmatpush1.bf16.msra.mxu0 0
        %1804 = vmatprep.subr.bf16.mxu0 0
        %1805 = vmatpush1.bf16.msra.mxu0 0
        %1806 = vmatprep.subr.bf16.mxu0 0
        %1807 = vmatpush1.bf16.msra.mxu0 0
        %1808 = vmatprep.subr.bf16.mxu0 0
        %1809 = vmatpush1.bf16.msra.mxu0 0
        %1810 = vmatprep.subr.bf16.mxu0 0
        %1811 = vmatpush1.bf16.msra.mxu0 0
        %1812 = vmatprep.subr.bf16.mxu0 0
        %1813 = vmatpush1.bf16.msra.mxu0 %v1798
        %1814 = vmatprep.subr.bf16.mxu0 0
        %1815 = vmatpush1.bf16.msra.mxu0 %v1691
        %1816 = vmatprep.subr.bf16.mxu0 0
        %1817 = vmatpush2.bf16.msra.mxu0 0
        %1818 = vmatprep.subr.bf16.mxu0 0
        %1819 = vmatpush2.bf16.msra.mxu0 0
        %1820 = vmatprep.subr.bf16.mxu0 0
        %1821 = vmatpush2.bf16.msra.mxu0 0
        %1822 = vmatprep.subr.bf16.mxu0 0
        %1823 = vmatpush2.bf16.msra.mxu0 0
        %1824 = vmatprep.subr.bf16.mxu0 0
        %1825 = vmatpush2.bf16.msra.mxu0 0
        %1826 = vmatprep.subr.bf16.mxu0 0
        %1827 = vmatpush2.bf16.msra.mxu0 0
        %1828 = vmatprep.subr.bf16.mxu0 0
        %1829 = vmatpush2.bf16.msra.mxu0 0
        %1830 = vmatprep.subr.bf16.mxu0 0
        %1831 = vmatpush2.bf16.msra.mxu0 0
        %1832 = vmatprep.mubr.bf16.mxu0 0
        %1833 = vmatmul.mubr.bf16.gmra.mxu0 %v1791
        %v1834 = vpop.f32.mrf.mxu0
        %v1835 = vadd.f32 0.0, %v1834
        %v1836 = vpop.f32.mrf.mxu0
        %v1837 = vpop.f32.mrf.mxu0
        %v1838 = vadd.f32 0.0, %v1837
        %v1839 = vpop.f32.mrf.mxu0
        %1840 = vmatprep.mubr.bf16.mxu0 0
        %1841 = vmatmul.mubr.bf16.gmra.mxu0 %v1794
        %v1842 = vpop.f32.mrf.mxu0
        %v1843 = vadd.f32 0.0, %v1842
        %v1844 = vpop.f32.mrf.mxu0
        %v1845 = vpop.f32.mrf.mxu0
        %v1846 = vpop.f32.mrf.mxu0
        %1847 = vdwg.mxu0
        %1848 = vst.msk [vmem:[#allocation3] sm:$0xff] %vm1693, %v1835
        %1849 = vst.msk [vmem:[#allocation3 + $0x10] sm:$0xff] %vm1693, %v1838
        %1850 = vst.msk [vmem:[#allocation3 + $0x20] sm:$0xff] %vm1693, %v1843
        %1853 = vrot.lane.b32.xlu0 %v1687, 64
        %v1854 = vpop.permute.xlu0 %1853
        %1855 = vrot.lane.b32.xlu0 %v1688, 64
        %v1856 = vpop.permute.xlu0 %1855
        %1859 = vrot.lane.b32.xlu0 %v1689, 64
        %v1860 = vpop.permute.xlu0 %1859
        %1861 = vrot.lane.b32.xlu0 %v1690, 64
        %v1862 = vpop.permute.xlu0 %1861
        %v1864 = vsel %vm1693, %v1854, 0
        %v1867 = vsel %vm1693, %v1856, 0
        %v1870 = vsel %vm1693, %v1860, 0
        %v1873 = vsel %vm1693, %v1862, 0
        %1875 = vmatprep.subr.bf16.mxu0 0
        %1876 = vmatpush1.bf16.xpose.msra.mxu0 0
        %1877 = vmatprep.subr.bf16.mxu0 0
        %1878 = vmatpush1.bf16.xpose.msra.mxu0 0
        %1879 = vmatprep.subr.bf16.mxu0 0
        %1880 = vmatpush1.bf16.xpose.msra.mxu0 0
        %1881 = vmatprep.subr.bf16.mxu0 0
        %1882 = vmatpush1.bf16.xpose.msra.mxu0 0
        %1883 = vmatprep.subr.bf16.mxu0 0
        %1884 = vmatpush1.bf16.xpose.msra.mxu0 0
        %1885 = vmatprep.subr.bf16.mxu0 0
        %1886 = vmatpush1.bf16.xpose.msra.mxu0 0
        %1887 = vmatprep.subr.bf16.mxu0 0
        %1888 = vmatpush1.bf16.xpose.msra.mxu0 %v1873
        %1889 = vmatprep.subr.bf16.mxu0 0
        %1890 = vmatpush1.bf16.xpose.msra.mxu0 %v1870
        %1891 = vmatprep.subr.bf16.mxu0 0
        %1892 = vmatpush2.bf16.xpose.msra.mxu0 0
        %1893 = vmatprep.subr.bf16.mxu0 0
        %1894 = vmatpush2.bf16.xpose.msra.mxu0 0
        %1895 = vmatprep.subr.bf16.mxu0 0
        %1896 = vmatpush2.bf16.xpose.msra.mxu0 0
        %1897 = vmatprep.subr.bf16.mxu0 0
        %1898 = vmatpush2.bf16.xpose.msra.mxu0 0
        %1899 = vmatprep.subr.bf16.mxu0 0
        %1900 = vmatpush2.bf16.xpose.msra.mxu0 0
        %1901 = vmatprep.subr.bf16.mxu0 0
        %1902 = vmatpush2.bf16.xpose.msra.mxu0 0
        %1903 = vmatprep.subr.bf16.mxu0 0
        %1904 = vmatpush2.bf16.xpose.msra.mxu0 0
        %1905 = vmatprep.subr.bf16.mxu0 0
        %1906 = vmatpush2.bf16.xpose.msra.mxu0 0
        %1907 = vmatprep.mubr.bf16.mxu0 0
        %1908 = vmatmul.mubr.bf16.gmra.mxu0 %v1864
        %v1909 = vpop.f32.mrf.mxu0
        %v1910 = vadd.f32 %v1683, %v1909
        %v1911 = vpop.f32.mrf.mxu0
        %v1912 = vpop.f32.mrf.mxu0
        %v1913 = vadd.f32 %v1683, %v1912
        %v1914 = vpop.f32.mrf.mxu0
        %1915 = vmatprep.mubr.bf16.mxu0 0
        %1916 = vmatmul.mubr.bf16.gmra.mxu0 %v1867
        %v1917 = vpop.f32.mrf.mxu0
        %v1918 = vadd.f32 %v1683, %v1917
        %v1919 = vpop.f32.mrf.mxu0
        %v1920 = vpop.f32.mrf.mxu0
        %v1921 = vpop.f32.mrf.mxu0
        %1922 = vdwg.mxu0
        %v1923 = vsel %vm1754, %v1910, -inf
        %1924 = vmax.xlane.f32.xlu0 %v1923
        %v1925 = vpop.xlane.xlu0 %1924
        %v1926 = vsel %vm1754, %v1913, -inf
        %1927 = vmax.xlane.f32.xlu0 %v1926
        %v1928 = vpop.xlane.xlu0 %1927
        %v1929 = vsel %vm1754, %v1918, -inf
        %1930 = vmax.xlane.f32.xlu0 %v1929
        %v1931 = vpop.xlane.xlu0 %1930
        %v1932 = vsub.f32 %v1910, %v1925
        %v1933 = vsub.f32 %v1913, %v1928
        %v1934 = vsub.f32 %v1918, %v1931
        %v1935 = vmul.f32 %v1932, 1.442695
        %v1936 = vpow.pop %v1935
        %v1937 = vmul.f32 %v1933, 1.442695
        %v1938 = vpow.pop %v1937
        %v1939 = vmul.f32 %v1934, 1.442695
        %v1940 = vpow.pop %v1939
        %v1941 = vsel %vm1754, %v1936, 0.0
        %1942 = vadd.xlane.f32.xlu0 %v1941
        %v1943 = vpop.xlane.xlu0 %1942
        %v1944 = vsel %vm1754, %v1938, 0.0
        %1945 = vadd.xlane.f32.xlu0 %v1944
        %v1946 = vpop.xlane.xlu0 %1945
        %v1947 = vsel %vm1754, %v1940, 0.0
        %1948 = vadd.xlane.f32.xlu0 %v1947
        %v1949 = vpop.xlane.xlu0 %1948
        %v1950 = vrcp.pop %v1943
        %v1951 = vrcp.pop %v1946
        %v1952 = vrcp.pop %v1949
        %v1953 = vmul.f32 %v1936, %v1950
        %v1954 = vmul.f32 %v1938, %v1951
        %v1955 = vmul.f32 %v1940, %v1952
        %v1956 = vpack.c.bf16 %v1954, %v1953
        %v1957 = vpack.c.bf16 %v1955, %v1955
        %1960 = vrot.lane.b32.xlu0 %v1691, 64
        %v1961 = vpop.permute.xlu0 %1960
        %1962 = vrot.lane.b32.xlu0 %v1692, 64
        %v1963 = vpop.permute.xlu0 %1962
        %v1966 = vsel %vm1754, %v1956, 0
        %v1969 = vsel %vm1754, %v1957, 0
        %v1972 = vsel %vm1796, %v1963, 0
        %1974 = vmatprep.subr.bf16.mxu0 0
        %1975 = vmatpush1.bf16.msra.mxu0 0
        %1976 = vmatprep.subr.bf16.mxu0 0
        %1977 = vmatpush1.bf16.msra.mxu0 0
        %1978 = vmatprep.subr.bf16.mxu0 0
        %1979 = vmatpush1.bf16.msra.mxu0 0
        %1980 = vmatprep.subr.bf16.mxu0 0
        %1981 = vmatpush1.bf16.msra.mxu0 0
        %1982 = vmatprep.subr.bf16.mxu0 0
        %1983 = vmatpush1.bf16.msra.mxu0 0
        %1984 = vmatprep.subr.bf16.mxu0 0
        %1985 = vmatpush1.bf16.msra.mxu0 0
        %1986 = vmatprep.subr.bf16.mxu0 0
        %1987 = vmatpush1.bf16.msra.mxu0 %v1972
        %1988 = vmatprep.subr.bf16.mxu0 0
        %1989 = vmatpush1.bf16.msra.mxu0 %v1961
        %1990 = vmatprep.subr.bf16.mxu0 0
        %1991 = vmatpush2.bf16.msra.mxu0 0
        %1992 = vmatprep.subr.bf16.mxu0 0
        %1993 = vmatpush2.bf16.msra.mxu0 0
        %1994 = vmatprep.subr.bf16.mxu0 0
        %1995 = vmatpush2.bf16.msra.mxu0 0
        %1996 = vmatprep.subr.bf16.mxu0 0
        %1997 = vmatpush2.bf16.msra.mxu0 0
        %1998 = vmatprep.subr.bf16.mxu0 0
        %1999 = vmatpush2.bf16.msra.mxu0 0
        %2000 = vmatprep.subr.bf16.mxu0 0
        %2001 = vmatpush2.bf16.msra.mxu0 0
        %2002 = vmatprep.subr.bf16.mxu0 0
        %2003 = vmatpush2.bf16.msra.mxu0 0
        %2004 = vmatprep.subr.bf16.mxu0 0
        %2005 = vmatpush2.bf16.msra.mxu0 0
        %2006 = vmatprep.mubr.bf16.mxu0 0
        %2007 = vmatmul.mubr.bf16.gmra.mxu0 %v1966
        %v2008 = vpop.f32.mrf.mxu0
        %v2009 = vadd.f32 0.0, %v2008
        %v2010 = vpop.f32.mrf.mxu0
        %v2011 = vpop.f32.mrf.mxu0
        %v2012 = vadd.f32 0.0, %v2011
        %v2013 = vpop.f32.mrf.mxu0
        %2014 = vmatprep.mubr.bf16.mxu0 0
        %2015 = vmatmul.mubr.bf16.gmra.mxu0 %v1969
        %v2016 = vpop.f32.mrf.mxu0
        %v2017 = vadd.f32 0.0, %v2016
        %v2018 = vpop.f32.mrf.mxu0
        %v2019 = vpop.f32.mrf.mxu0
        %v2020 = vpop.f32.mrf.mxu0
        %2021 = vdwg.mxu0
        %2025 = vrot.lane.b32.xlu0 %v2009, 64
        %v2026 = vpop.permute.xlu0 %2025
        %2027 = vrot.lane.b32.xlu0 %v2012, 64
        %v2028 = vpop.permute.xlu0 %2027
        %2029 = vrot.lane.b32.xlu0 %v2017, 64
        %v2030 = vpop.permute.xlu0 %2029
        %vm2034 = vcmask 1048064
        %2035 = vst.msk [vmem:[#allocation3] sm:$0xff] %vm2034, %v2026
        %2036 = vst.msk [vmem:[#allocation3 + $0x10] sm:$0xff] %vm2034, %v2028
        %2037 = vst.msk [vmem:[#allocation3 + $0x20] sm:$0xff] %vm2034, %v2030
        %v2038 = vmul.f32 %v1564, 0.125
        %v2039 = vmul.f32 %v1568, 0.125
        %v2040 = vmul.f32 %v1574, 0.125
        %v2041 = vpack.c.bf16 %v2039, %v2038
        %v2042 = vpack.c.bf16 %v2040, %v2040
        %v2043 = vpack.c.bf16 %v1619, %v1615
        %v2044 = vpack.c.bf16 %v1625, %v1625
        %v2045 = vpack.c.bf16 %v1670, %v1666
        %v2046 = vpack.c.bf16 %v1676, %v1676
        %v2048 = vsel %vm1693, %v2041, 0
        %v2051 = vsel %vm1693, %v2042, 0
        %v2054 = vsel %vm1693, %v2043, 0
        %v2057 = vsel %vm1693, %v2044, 0
        %2059 = vmatprep.subr.bf16.mxu0 0
        %2060 = vmatpush1.bf16.xpose.msra.mxu0 0
        %2061 = vmatprep.subr.bf16.mxu0 0
        %2062 = vmatpush1.bf16.xpose.msra.mxu0 0
        %2063 = vmatprep.subr.bf16.mxu0 0
        %2064 = vmatpush1.bf16.xpose.msra.mxu0 0
        %2065 = vmatprep.subr.bf16.mxu0 0
        %2066 = vmatpush1.bf16.xpose.msra.mxu0 0
        %2067 = vmatprep.subr.bf16.mxu0 0
        %2068 = vmatpush1.bf16.xpose.msra.mxu0 0
        %2069 = vmatprep.subr.bf16.mxu0 0
        %2070 = vmatpush1.bf16.xpose.msra.mxu0 0
        %2071 = vmatprep.subr.bf16.mxu0 0
        %2072 = vmatpush1.bf16.xpose.msra.mxu0 %v2057
        %2073 = vmatprep.subr.bf16.mxu0 0
        %2074 = vmatpush1.bf16.xpose.msra.mxu0 %v2054
        %2075 = vmatprep.subr.bf16.mxu0 0
        %2076 = vmatpush2.bf16.xpose.msra.mxu0 0
        %2077 = vmatprep.subr.bf16.mxu0 0
        %2078 = vmatpush2.bf16.xpose.msra.mxu0 0
        %2079 = vmatprep.subr.bf16.mxu0 0
        %2080 = vmatpush2.bf16.xpose.msra.mxu0 0
        %2081 = vmatprep.subr.bf16.mxu0 0
        %2082 = vmatpush2.bf16.xpose.msra.mxu0 0
        %2083 = vmatprep.subr.bf16.mxu0 0
        %2084 = vmatpush2.bf16.xpose.msra.mxu0 0
        %2085 = vmatprep.subr.bf16.mxu0 0
        %2086 = vmatpush2.bf16.xpose.msra.mxu0 0
        %2087 = vmatprep.subr.bf16.mxu0 0
        %2088 = vmatpush2.bf16.xpose.msra.mxu0 0
        %2089 = vmatprep.subr.bf16.mxu0 0
        %2090 = vmatpush2.bf16.xpose.msra.mxu0 0
        %2091 = vmatprep.mubr.bf16.mxu0 0
        %2092 = vmatmul.mubr.bf16.gmra.mxu0 %v2048
        %v2093 = vpop.f32.mrf.mxu0
        %v2094 = vadd.f32 %v1683, %v2093
        %v2095 = vpop.f32.mrf.mxu0
        %v2096 = vpop.f32.mrf.mxu0
        %v2097 = vadd.f32 %v1683, %v2096
        %v2098 = vpop.f32.mrf.mxu0
        %2099 = vmatprep.mubr.bf16.mxu0 0
        %2100 = vmatmul.mubr.bf16.gmra.mxu0 %v2051
        %v2101 = vpop.f32.mrf.mxu0
        %v2102 = vadd.f32 %v1683, %v2101
        %v2103 = vpop.f32.mrf.mxu0
        %v2104 = vpop.f32.mrf.mxu0
        %v2105 = vpop.f32.mrf.mxu0
        %2106 = vdwg.mxu0
        %v2107 = vsel %vm1754, %v2094, -inf
        %2108 = vmax.xlane.f32.xlu0 %v2107
        %v2109 = vpop.xlane.xlu0 %2108
        %v2110 = vsel %vm1754, %v2097, -inf
        %2111 = vmax.xlane.f32.xlu0 %v2110
        %v2112 = vpop.xlane.xlu0 %2111
        %v2113 = vsel %vm1754, %v2102, -inf
        %2114 = vmax.xlane.f32.xlu0 %v2113
        %v2115 = vpop.xlane.xlu0 %2114
        %v2116 = vsub.f32 %v2094, %v2109
        %v2117 = vsub.f32 %v2097, %v2112
        %v2118 = vsub.f32 %v2102, %v2115
        %v2119 = vmul.f32 %v2116, 1.442695
        %v2120 = vpow.pop %v2119
        %v2121 = vmul.f32 %v2117, 1.442695
        %v2122 = vpow.pop %v2121
        %v2123 = vmul.f32 %v2118, 1.442695
        %v2124 = vpow.pop %v2123
        %v2125 = vsel %vm1754, %v2120, 0.0
        %2126 = vadd.xlane.f32.xlu0 %v2125
        %v2127 = vpop.xlane.xlu0 %2126
        %v2128 = vsel %vm1754, %v2122, 0.0
        %2129 = vadd.xlane.f32.xlu0 %v2128
        %v2130 = vpop.xlane.xlu0 %2129
        %v2131 = vsel %vm1754, %v2124, 0.0
        %2132 = vadd.xlane.f32.xlu0 %v2131
        %v2133 = vpop.xlane.xlu0 %2132
        %v2134 = vrcp.pop %v2127
        %v2135 = vrcp.pop %v2130
        %v2136 = vrcp.pop %v2133
        %v2137 = vmul.f32 %v2120, %v2134
        %v2138 = vmul.f32 %v2122, %v2135
        %v2139 = vmul.f32 %v2124, %v2136
        %v2140 = vpack.c.bf16 %v2138, %v2137
        %v2141 = vpack.c.bf16 %v2139, %v2139
        %v2143 = vsel %vm1754, %v2140, 0
        %v2146 = vsel %vm1754, %v2141, 0
        %v2149 = vsel %vm1796, %v2046, 0
        %2151 = vmatprep.subr.bf16.mxu0 0
        %2152 = vmatpush1.bf16.msra.mxu0 0
        %2153 = vmatprep.subr.bf16.mxu0 0
        %2154 = vmatpush1.bf16.msra.mxu0 0
        %2155 = vmatprep.subr.bf16.mxu0 0
        %2156 = vmatpush1.bf16.msra.mxu0 0
        %2157 = vmatprep.subr.bf16.mxu0 0
        %2158 = vmatpush1.bf16.msra.mxu0 0
        %2159 = vmatprep.subr.bf16.mxu0 0
        %2160 = vmatpush1.bf16.msra.mxu0 0
        %2161 = vmatprep.subr.bf16.mxu0 0
        %2162 = vmatpush1.bf16.msra.mxu0 0
        %2163 = vmatprep.subr.bf16.mxu0 0
        %2164 = vmatpush1.bf16.msra.mxu0 %v2149
        %2165 = vmatprep.subr.bf16.mxu0 0
        %2166 = vmatpush1.bf16.msra.mxu0 %v2045
        %2167 = vmatprep.subr.bf16.mxu0 0
        %2168 = vmatpush2.bf16.msra.mxu0 0
        %2169 = vmatprep.subr.bf16.mxu0 0
        %2170 = vmatpush2.bf16.msra.mxu0 0
        %2171 = vmatprep.subr.bf16.mxu0 0
        %2172 = vmatpush2.bf16.msra.mxu0 0
        %2173 = vmatprep.subr.bf16.mxu0 0
        %2174 = vmatpush2.bf16.msra.mxu0 0
        %2175 = vmatprep.subr.bf16.mxu0 0
        %2176 = vmatpush2.bf16.msra.mxu0 0
        %2177 = vmatprep.subr.bf16.mxu0 0
        %2178 = vmatpush2.bf16.msra.mxu0 0
        %2179 = vmatprep.subr.bf16.mxu0 0
        %2180 = vmatpush2.bf16.msra.mxu0 0
        %2181 = vmatprep.subr.bf16.mxu0 0
        %2182 = vmatpush2.bf16.msra.mxu0 0
        %2183 = vmatprep.mubr.bf16.mxu0 0
        %2184 = vmatmul.mubr.bf16.gmra.mxu0 %v2143
        %v2185 = vpop.f32.mrf.mxu0
        %v2186 = vadd.f32 0.0, %v2185
        %v2187 = vpop.f32.mrf.mxu0
        %v2188 = vpop.f32.mrf.mxu0
        %v2189 = vadd.f32 0.0, %v2188
        %v2190 = vpop.f32.mrf.mxu0
        %2191 = vmatprep.mubr.bf16.mxu0 0
        %2192 = vmatmul.mubr.bf16.gmra.mxu0 %v2146
        %v2193 = vpop.f32.mrf.mxu0
        %v2194 = vadd.f32 0.0, %v2193
        %v2195 = vpop.f32.mrf.mxu0
        %v2196 = vpop.f32.mrf.mxu0
        %v2197 = vpop.f32.mrf.mxu0
        %2198 = vdwg.mxu0
        %2199 = vst.msk [vmem:[#allocation3 + $0x8] sm:$0xff] %vm1693, %v2186
        %2200 = vst.msk [vmem:[#allocation3 + $0x18] sm:$0xff] %vm1693, %v2189
        %2201 = vst.msk [vmem:[#allocation3 + $0x28] sm:$0xff] %vm1693, %v2194
        %2204 = vrot.lane.b32.xlu0 %v2041, 64
        %v2205 = vpop.permute.xlu0 %2204
        %2206 = vrot.lane.b32.xlu0 %v2042, 64
        %v2207 = vpop.permute.xlu0 %2206
        %2210 = vrot.lane.b32.xlu0 %v2043, 64
        %v2211 = vpop.permute.xlu0 %2210
        %2212 = vrot.lane.b32.xlu0 %v2044, 64
        %v2213 = vpop.permute.xlu0 %2212
        %v2215 = vsel %vm1693, %v2205, 0
        %v2218 = vsel %vm1693, %v2207, 0
        %v2221 = vsel %vm1693, %v2211, 0
        %v2224 = vsel %vm1693, %v2213, 0
        %2226 = vmatprep.subr.bf16.mxu0 0
        %2227 = vmatpush1.bf16.xpose.msra.mxu0 0
        %2228 = vmatprep.subr.bf16.mxu0 0
        %2229 = vmatpush1.bf16.xpose.msra.mxu0 0
        %2230 = vmatprep.subr.bf16.mxu0 0
        %2231 = vmatpush1.bf16.xpose.msra.mxu0 0
        %2232 = vmatprep.subr.bf16.mxu0 0
        %2233 = vmatpush1.bf16.xpose.msra.mxu0 0
        %2234 = vmatprep.subr.bf16.mxu0 0
        %2235 = vmatpush1.bf16.xpose.msra.mxu0 0
        %2236 = vmatprep.subr.bf16.mxu0 0
        %2237 = vmatpush1.bf16.xpose.msra.mxu0 0
        %2238 = vmatprep.subr.bf16.mxu0 0
        %2239 = vmatpush1.bf16.xpose.msra.mxu0 %v2224
        %2240 = vmatprep.subr.bf16.mxu0 0
        %2241 = vmatpush1.bf16.xpose.msra.mxu0 %v2221
        %2242 = vmatprep.subr.bf16.mxu0 0
        %2243 = vmatpush2.bf16.xpose.msra.mxu0 0
        %2244 = vmatprep.subr.bf16.mxu0 0
        %2245 = vmatpush2.bf16.xpose.msra.mxu0 0
        %2246 = vmatprep.subr.bf16.mxu0 0
        %2247 = vmatpush2.bf16.xpose.msra.mxu0 0
        %2248 = vmatprep.subr.bf16.mxu0 0
        %2249 = vmatpush2.bf16.xpose.msra.mxu0 0
        %2250 = vmatprep.subr.bf16.mxu0 0
        %2251 = vmatpush2.bf16.xpose.msra.mxu0 0
        %2252 = vmatprep.subr.bf16.mxu0 0
        %2253 = vmatpush2.bf16.xpose.msra.mxu0 0
        %2254 = vmatprep.subr.bf16.mxu0 0
        %2255 = vmatpush2.bf16.xpose.msra.mxu0 0
        %2256 = vmatprep.subr.bf16.mxu0 0
        %2257 = vmatpush2.bf16.xpose.msra.mxu0 0
        %2258 = vmatprep.mubr.bf16.mxu0 0
        %2259 = vmatmul.mubr.bf16.gmra.mxu0 %v2215
        %v2260 = vpop.f32.mrf.mxu0
        %v2261 = vadd.f32 %v1683, %v2260
        %v2262 = vpop.f32.mrf.mxu0
        %v2263 = vpop.f32.mrf.mxu0
        %v2264 = vadd.f32 %v1683, %v2263
        %v2265 = vpop.f32.mrf.mxu0
        %2266 = vmatprep.mubr.bf16.mxu0 0
        %2267 = vmatmul.mubr.bf16.gmra.mxu0 %v2218
        %v2268 = vpop.f32.mrf.mxu0
        %v2269 = vadd.f32 %v1683, %v2268
        %v2270 = vpop.f32.mrf.mxu0
        %v2271 = vpop.f32.mrf.mxu0
        %v2272 = vpop.f32.mrf.mxu0
        %2273 = vdwg.mxu0
        %v2274 = vsel %vm1754, %v2261, -inf
        %2275 = vmax.xlane.f32.xlu0 %v2274
        %v2276 = vpop.xlane.xlu0 %2275
        %v2277 = vsel %vm1754, %v2264, -inf
        %2278 = vmax.xlane.f32.xlu0 %v2277
        %v2279 = vpop.xlane.xlu0 %2278
        %v2280 = vsel %vm1754, %v2269, -inf
        %2281 = vmax.xlane.f32.xlu0 %v2280
        %v2282 = vpop.xlane.xlu0 %2281
        %v2283 = vsub.f32 %v2261, %v2276
        %v2284 = vsub.f32 %v2264, %v2279
        %v2285 = vsub.f32 %v2269, %v2282
        %v2286 = vmul.f32 %v2283, 1.442695
        %v2287 = vpow.pop %v2286
        %v2288 = vmul.f32 %v2284, 1.442695
        %v2289 = vpow.pop %v2288
        %v2290 = vmul.f32 %v2285, 1.442695
        %v2291 = vpow.pop %v2290
        %v2292 = vsel %vm1754, %v2287, 0.0
        %2293 = vadd.xlane.f32.xlu0 %v2292
        %v2294 = vpop.xlane.xlu0 %2293
        %v2295 = vsel %vm1754, %v2289, 0.0
        %2296 = vadd.xlane.f32.xlu0 %v2295
        %v2297 = vpop.xlane.xlu0 %2296
        %v2298 = vsel %vm1754, %v2291, 0.0
        %2299 = vadd.xlane.f32.xlu0 %v2298
        %v2300 = vpop.xlane.xlu0 %2299
        %v2301 = vrcp.pop %v2294
        %v2302 = vrcp.pop %v2297
        %v2303 = vrcp.pop %v2300
        %v2304 = vmul.f32 %v2287, %v2301
        %v2305 = vmul.f32 %v2289, %v2302
        %v2306 = vmul.f32 %v2291, %v2303
        %v2307 = vpack.c.bf16 %v2305, %v2304
        %v2308 = vpack.c.bf16 %v2306, %v2306
        %2311 = vrot.lane.b32.xlu0 %v2045, 64
        %v2312 = vpop.permute.xlu0 %2311
        %2313 = vrot.lane.b32.xlu0 %v2046, 64
        %v2314 = vpop.permute.xlu0 %2313
        %v2317 = vsel %vm1754, %v2307, 0
        %v2320 = vsel %vm1754, %v2308, 0
        %v2323 = vsel %vm1796, %v2314, 0
        %2325 = vmatprep.subr.bf16.mxu0 0
        %2326 = vmatpush1.bf16.msra.mxu0 0
        %2327 = vmatprep.subr.bf16.mxu0 0
        %2328 = vmatpush1.bf16.msra.mxu0 0
        %2329 = vmatprep.subr.bf16.mxu0 0
        %2330 = vmatpush1.bf16.msra.mxu0 0
        %2331 = vmatprep.subr.bf16.mxu0 0
        %2332 = vmatpush1.bf16.msra.mxu0 0
        %2333 = vmatprep.subr.bf16.mxu0 0
        %2334 = vmatpush1.bf16.msra.mxu0 0
        %2335 = vmatprep.subr.bf16.mxu0 0
        %2336 = vmatpush1.bf16.msra.mxu0 0
        %2337 = vmatprep.subr.bf16.mxu0 0
        %2338 = vmatpush1.bf16.msra.mxu0 %v2323
        %2339 = vmatprep.subr.bf16.mxu0 0
        %2340 = vmatpush1.bf16.msra.mxu0 %v2312
        %2341 = vmatprep.subr.bf16.mxu0 0
        %2342 = vmatpush2.bf16.msra.mxu0 0
        %2343 = vmatprep.subr.bf16.mxu0 0
        %2344 = vmatpush2.bf16.msra.mxu0 0
        %2345 = vmatprep.subr.bf16.mxu0 0
        %2346 = vmatpush2.bf16.msra.mxu0 0
        %2347 = vmatprep.subr.bf16.mxu0 0
        %2348 = vmatpush2.bf16.msra.mxu0 0
        %2349 = vmatprep.subr.bf16.mxu0 0
        %2350 = vmatpush2.bf16.msra.mxu0 0
        %2351 = vmatprep.subr.bf16.mxu0 0
        %2352 = vmatpush2.bf16.msra.mxu0 0
        %2353 = vmatprep.subr.bf16.mxu0 0
        %2354 = vmatpush2.bf16.msra.mxu0 0
        %2355 = vmatprep.subr.bf16.mxu0 0
        %2356 = vmatpush2.bf16.msra.mxu0 0
        %2357 = vmatprep.mubr.bf16.mxu0 0
        %2358 = vmatmul.mubr.bf16.gmra.mxu0 %v2317
        %v2359 = vpop.f32.mrf.mxu0
        %v2360 = vadd.f32 0.0, %v2359
        %v2361 = vpop.f32.mrf.mxu0
        %v2362 = vpop.f32.mrf.mxu0
        %v2363 = vadd.f32 0.0, %v2362
        %v2364 = vpop.f32.mrf.mxu0
        %2365 = vmatprep.mubr.bf16.mxu0 0
        %2366 = vmatmul.mubr.bf16.gmra.mxu0 %v2320
        %v2367 = vpop.f32.mrf.mxu0
        %v2368 = vadd.f32 0.0, %v2367
        %v2369 = vpop.f32.mrf.mxu0
        %v2370 = vpop.f32.mrf.mxu0
        %v2371 = vpop.f32.mrf.mxu0
        %2372 = vdwg.mxu0
        %2376 = vrot.lane.b32.xlu0 %v2360, 64
        %v2377 = vpop.permute.xlu0 %2376
        %2378 = vrot.lane.b32.xlu0 %v2363, 64
        %v2379 = vpop.permute.xlu0 %2378
        %2380 = vrot.lane.b32.xlu0 %v2368, 64
        %v2381 = vpop.permute.xlu0 %2380
        %2385 = vst.msk [vmem:[#allocation3 + $0x8] sm:$0xff] %vm2034, %v2377
        %2386 = vst.msk [vmem:[#allocation3 + $0x18] sm:$0xff] %vm2034, %v2379
        %2387 = vst.msk [vmem:[#allocation3 + $0x28] sm:$0xff] %vm2034, %v2381
        %v2388 = vld [vmem:[#allocation3] sm:$0xff]
        %v2389 = vld [vmem:[#allocation3 + $0x8] sm:$0xff]
        %v2390 = vld [vmem:[#allocation3 + $0x10] sm:$0xff]
        %v2391 = vld [vmem:[#allocation3 + $0x18] sm:$0xff]
        %v2392 = vld [vmem:[#allocation3 + $0x20] sm:$0xff]
        %v2393 = vld [vmem:[#allocation3 + $0x28] sm:$0xff]
        %v2394 = vpack.c.bf16 %v2390, %v2388
        %v2395 = vpack.c.bf16 %v2391, %v2389
        %v2396 = vpack.c.bf16 %v2392, %v2392
        %v2397 = vpack.c.bf16 %v2393, %v2393
        %v2398 = vld [vmem:[%s779] sm:$0xff]
        %v2399 = vld [vmem:[%s779 + $0x8] sm:$0xff]
        %v2400 = vld [vmem:[%s779 + $0x10] sm:$0xff]
        %v2401 = vld [vmem:[%s779 + $0x18] sm:$0xff]
        %v2402 = vld [vmem:[%s779 + $0x20] sm:$0xff]
        %v2403 = vld [vmem:[%s779 + $0x28] sm:$0xff]
        %v2404 = vld [vmem:[%s779 + $0x30] sm:$0xff]
        %v2405 = vld [vmem:[%s779 + $0x38] sm:$0xff]
        %v2406 = vld [vmem:[%s779 + $0x40] sm:$0xff]
        %v2407 = vld [vmem:[%s779 + $0x48] sm:$0xff]
        %v2408 = vld [vmem:[%s779 + $0x50] sm:$0xff]
        %v2409 = vld [vmem:[%s779 + $0x58] sm:$0xff]
        %v2410 = vld [vmem:[%s779 + $0x60] sm:$0xff]
        %v2411 = vld [vmem:[%s779 + $0x68] sm:$0xff]
        %v2412 = vld [vmem:[%s779 + $0x70] sm:$0xff]
        %v2413 = vld [vmem:[%s779 + $0x78] sm:$0xff]
        %v2414 = vld [vmem:[%s779 + $0x80] sm:$0xff]
        %v2415 = vld [vmem:[%s779 + $0x88] sm:$0xff]
        %v2416 = vld [vmem:[%s779 + $0x90] sm:$0xff]
        %v2417 = vld [vmem:[%s779 + $0x98] sm:$0xff]
        %v2418 = vld [vmem:[%s779 + $0xa0] sm:$0xff]
        %v2419 = vld [vmem:[%s779 + $0xa8] sm:$0xff]
        %v2420 = vld [vmem:[%s779 + $0xb0] sm:$0xff]
        %v2421 = vld [vmem:[%s779 + $0xb8] sm:$0xff]
        %v2422 = vld [vmem:[%s779 + $0xc0] sm:$0xff]
        %v2423 = vld [vmem:[%s779 + $0xc8] sm:$0xff]
        %v2424 = vld [vmem:[%s779 + $0xd0] sm:$0xff]
        %v2425 = vld [vmem:[%s779 + $0xd8] sm:$0xff]
        %v2426 = vld [vmem:[%s779 + $0xe0] sm:$0xff]
        %v2427 = vld [vmem:[%s779 + $0xe8] sm:$0xff]
        %v2428 = vld [vmem:[%s779 + $0xf0] sm:$0xff]
        %v2429 = vld [vmem:[%s779 + $0xf8] sm:$0xff]
        %v2430 = vld [vmem:[%s783] sm:$0x3]
        %v2432 = vlaneseq
        %v2433 = vshrl.u32 %v2432, 7
        %v2434 = vsub.s32 0, %v2433
        %v2435 = vrot.slane %v2430, %v2434
        %v2436 = vlaneseq
        %v2437 = vshrl.u32 %v2436, 7
        %v2438 = vsub.s32 1, %v2437
        %v2439 = vrot.slane %v2430, %v2438
        %v2474 = vunpack.c.l.b16 %v2398
        %v2475 = vunpack.c.h.b16 %v2398
        %v2476 = vunpack.c.l.b16 %v2399
        %v2477 = vunpack.c.h.b16 %v2399
        %v2478 = vunpack.c.l.b16 %v2400
        %v2479 = vunpack.c.h.b16 %v2400
        %v2480 = vunpack.c.l.b16 %v2401
        %v2481 = vunpack.c.h.b16 %v2401
        %v2482 = vunpack.c.l.b16 %v2402
        %v2483 = vunpack.c.h.b16 %v2402
        %v2484 = vunpack.c.l.b16 %v2403
        %v2485 = vunpack.c.h.b16 %v2403
        %v2486 = vunpack.c.l.b16 %v2404
        %v2487 = vunpack.c.h.b16 %v2404
        %v2488 = vunpack.c.l.b16 %v2405
        %v2489 = vunpack.c.h.b16 %v2405
        %v2490 = vunpack.c.l.b16 %v2406
        %v2491 = vunpack.c.h.b16 %v2406
        %v2492 = vunpack.c.l.b16 %v2407
        %v2493 = vunpack.c.h.b16 %v2407
        %v2494 = vunpack.c.l.b16 %v2408
        %v2495 = vunpack.c.h.b16 %v2408
        %v2496 = vunpack.c.l.b16 %v2409
        %v2497 = vunpack.c.h.b16 %v2409
        %v2498 = vunpack.c.l.b16 %v2410
        %v2499 = vunpack.c.h.b16 %v2410
        %v2500 = vunpack.c.l.b16 %v2411
        %v2501 = vunpack.c.h.b16 %v2411
        %v2502 = vunpack.c.l.b16 %v2412
        %v2503 = vunpack.c.h.b16 %v2412
        %v2504 = vunpack.c.l.b16 %v2413
        %v2505 = vunpack.c.h.b16 %v2413
        %v2506 = vunpack.c.l.b16 %v2414
        %v2507 = vunpack.c.h.b16 %v2414
        %v2508 = vunpack.c.l.b16 %v2415
        %v2509 = vunpack.c.h.b16 %v2415
        %v2510 = vunpack.c.l.b16 %v2416
        %v2511 = vunpack.c.h.b16 %v2416
        %v2512 = vunpack.c.l.b16 %v2417
        %v2513 = vunpack.c.h.b16 %v2417
        %v2514 = vunpack.c.l.b16 %v2418
        %v2515 = vunpack.c.h.b16 %v2418
        %v2516 = vunpack.c.l.b16 %v2419
        %v2517 = vunpack.c.h.b16 %v2419
        %v2518 = vunpack.c.l.b16 %v2420
        %v2519 = vunpack.c.h.b16 %v2420
        %v2520 = vunpack.c.l.b16 %v2421
        %v2521 = vunpack.c.h.b16 %v2421
        %v2522 = vunpack.c.l.b16 %v2422
        %v2523 = vunpack.c.h.b16 %v2422
        %v2524 = vunpack.c.l.b16 %v2423
        %v2525 = vunpack.c.h.b16 %v2423
        %v2526 = vunpack.c.l.b16 %v2424
        %v2527 = vunpack.c.h.b16 %v2424
        %v2528 = vunpack.c.l.b16 %v2425
        %v2529 = vunpack.c.h.b16 %v2425
        %v2530 = vunpack.c.l.b16 %v2426
        %v2531 = vunpack.c.h.b16 %v2426
        %v2532 = vunpack.c.l.b16 %v2427
        %v2533 = vunpack.c.h.b16 %v2427
        %v2534 = vunpack.c.l.b16 %v2428
        %v2535 = vunpack.c.h.b16 %v2428
        %v2536 = vunpack.c.l.b16 %v2429
        %v2537 = vunpack.c.h.b16 %v2429
        %v2538 = vpack.c.b16 %v2476, %v2474
        %v2539 = vpack.c.b16 %v2477, %v2475
        %v2540 = vpack.c.b16 %v2480, %v2478
        %v2541 = vpack.c.b16 %v2481, %v2479
        %v2542 = vpack.c.b16 %v2484, %v2482
        %v2543 = vpack.c.b16 %v2485, %v2483
        %v2544 = vpack.c.b16 %v2488, %v2486
        %v2545 = vpack.c.b16 %v2489, %v2487
        %v2546 = vpack.c.b16 %v2492, %v2490
        %v2547 = vpack.c.b16 %v2493, %v2491
        %v2548 = vpack.c.b16 %v2496, %v2494
        %v2549 = vpack.c.b16 %v2497, %v2495
        %v2550 = vpack.c.b16 %v2500, %v2498
        %v2551 = vpack.c.b16 %v2501, %v2499
        %v2552 = vpack.c.b16 %v2504, %v2502
        %v2553 = vpack.c.b16 %v2505, %v2503
        %v2554 = vpack.c.b16 %v2508, %v2506
        %v2555 = vpack.c.b16 %v2509, %v2507
        %v2556 = vpack.c.b16 %v2512, %v2510
        %v2557 = vpack.c.b16 %v2513, %v2511
        %v2558 = vpack.c.b16 %v2516, %v2514
        %v2559 = vpack.c.b16 %v2517, %v2515
        %v2560 = vpack.c.b16 %v2520, %v2518
        %v2561 = vpack.c.b16 %v2521, %v2519
        %v2562 = vpack.c.b16 %v2524, %v2522
        %v2563 = vpack.c.b16 %v2525, %v2523
        %v2564 = vpack.c.b16 %v2528, %v2526
        %v2565 = vpack.c.b16 %v2529, %v2527
        %v2566 = vpack.c.b16 %v2532, %v2530
        %v2567 = vpack.c.b16 %v2533, %v2531
        %v2568 = vpack.c.b16 %v2536, %v2534
        %v2569 = vpack.c.b16 %v2537, %v2535
        %2602 = vmatprep.subr.bf16.mxu0 %v2553
        %2603 = vmatpush1.bf16.msra.mxu0 %v2552
        %2604 = vmatprep.subr.bf16.mxu0 %v2551
        %2605 = vmatpush1.bf16.msra.mxu0 %v2550
        %2606 = vmatprep.subr.bf16.mxu0 %v2549
        %2607 = vmatpush1.bf16.msra.mxu0 %v2548
        %2608 = vmatprep.subr.bf16.mxu0 %v2547
        %2609 = vmatpush1.bf16.msra.mxu0 %v2546
        %2610 = vmatprep.subr.bf16.mxu0 %v2545
        %2611 = vmatpush1.bf16.msra.mxu0 %v2544
        %2612 = vmatprep.subr.bf16.mxu0 %v2543
        %2613 = vmatpush1.bf16.msra.mxu0 %v2542
        %2614 = vmatprep.subr.bf16.mxu0 %v2541
        %2615 = vmatpush1.bf16.msra.mxu0 %v2540
        %2616 = vmatprep.subr.bf16.mxu0 %v2539
        %2617 = vmatpush1.bf16.msra.mxu0 %v2538
        %2618 = vmatprep.subr.bf16.mxu0 %v2569
        %2619 = vmatpush2.bf16.msra.mxu0 %v2568
        %2620 = vmatprep.subr.bf16.mxu0 %v2567
        %2621 = vmatpush2.bf16.msra.mxu0 %v2566
        %2622 = vmatprep.subr.bf16.mxu0 %v2565
        %2623 = vmatpush2.bf16.msra.mxu0 %v2564
        %2624 = vmatprep.subr.bf16.mxu0 %v2563
        %2625 = vmatpush2.bf16.msra.mxu0 %v2562
        %2626 = vmatprep.subr.bf16.mxu0 %v2561
        %2627 = vmatpush2.bf16.msra.mxu0 %v2560
        %2628 = vmatprep.subr.bf16.mxu0 %v2559
        %2629 = vmatpush2.bf16.msra.mxu0 %v2558
        %2630 = vmatprep.subr.bf16.mxu0 %v2557
        %2631 = vmatpush2.bf16.msra.mxu0 %v2556
        %2632 = vmatprep.subr.bf16.mxu0 %v2555
        %2633 = vmatpush2.bf16.msra.mxu0 %v2554
        %2634 = vmatprep.mubr.bf16.mxu0 %v2395
        %2635 = vmatmul.mubr.bf16.gmra.mxu0 %v2394
        %v2636 = vpop.f32.mrf.mxu0
        %v2637 = vadd.f32 %v2435, %v2636
        %v2638 = vpop.f32.mrf.mxu0
        %v2639 = vadd.f32 %v2439, %v2638
        %v2640 = vpop.f32.mrf.mxu0
        %v2641 = vadd.f32 %v2435, %v2640
        %v2642 = vpop.f32.mrf.mxu0
        %v2643 = vadd.f32 %v2439, %v2642
        %2644 = vmatprep.mubr.bf16.mxu0 %v2397
        %2645 = vmatmul.mubr.bf16.gmra.mxu0 %v2396
        %v2646 = vpop.f32.mrf.mxu0
        %v2647 = vadd.f32 %v2435, %v2646
        %v2648 = vpop.f32.mrf.mxu0
        %v2649 = vadd.f32 %v2439, %v2648
        %v2650 = vpop.f32.mrf.mxu0
        %v2651 = vpop.f32.mrf.mxu0
        %2652 = vdwg.mxu0
        %v2653 = vadd.f32 %v824, %v2637
        %v2654 = vadd.f32 %v825, %v2639
        %v2655 = vadd.f32 %v826, %v2641
        %v2656 = vadd.f32 %v827, %v2643
        %v2657 = vadd.f32 %v828, %v2647
        %v2658 = vadd.f32 %v829, %v2649
        %v2659 = vld [vmem:[%s787] sm:$0x3]
        %v2660 = vld [vmem:[%s640] sm:$0x3]
        %v2661 = vadd.f32 %v2653, %v2654
        %2662 = vadd.xlane.f32.xlu0 %v2661
        %v2663 = vpop.xlane.xlu0 %2662
        %v2664 = vadd.f32 %v2655, %v2656
        %2665 = vadd.xlane.f32.xlu0 %v2664
        %v2666 = vpop.xlane.xlu0 %2665
        %v2667 = vadd.f32 %v2657, %v2658
        %2668 = vadd.xlane.f32.xlu0 %v2667
        %v2669 = vpop.xlane.xlu0 %2668
        %v2670 = vmul.f32 %v2663, %v841
        %v2671 = vmul.f32 %v2666, %v841
        %v2672 = vmul.f32 %v2669, %v841
        %v2673 = vsub.f32 %v2653, %v2670
        %v2674 = vsub.f32 %v2654, %v2670
        %v2675 = vsub.f32 %v2655, %v2671
        %v2676 = vsub.f32 %v2656, %v2671
        %v2677 = vsub.f32 %v2657, %v2672
        %v2678 = vsub.f32 %v2658, %v2672
        %v2679 = vmul.f32 %v2673, %v2673
        %v2680 = vmul.f32 %v2674, %v2674
        %v2681 = vmul.f32 %v2675, %v2675
        %v2682 = vmul.f32 %v2676, %v2676
        %v2683 = vmul.f32 %v2677, %v2677
        %v2684 = vmul.f32 %v2678, %v2678
        %v2685 = vadd.f32 %v2679, %v2680
        %2686 = vadd.xlane.f32.xlu0 %v2685
        %v2687 = vpop.xlane.xlu0 %2686
        %v2688 = vadd.f32 %v2681, %v2682
        %2689 = vadd.xlane.f32.xlu0 %v2688
        %v2690 = vpop.xlane.xlu0 %2689
        %v2691 = vadd.f32 %v2683, %v2684
        %2692 = vadd.xlane.f32.xlu0 %v2691
        %v2693 = vpop.xlane.xlu0 %2692
        %v2694 = vmul.f32 %v2687, %v841
        %v2695 = vmul.f32 %v2690, %v841
        %v2696 = vmul.f32 %v2693, %v841
        %v2697 = vadd.f32 %v2694, 1e-12
        %v2698 = vadd.f32 %v2695, 1e-12
        %v2699 = vadd.f32 %v2696, 1e-12
        %v2700 = vrsqrt.pop %v2697
        %v2701 = vrsqrt.pop %v2698
        %v2702 = vrsqrt.pop %v2699
        %v2703 = vmul.f32 %v2673, %v2700
        %v2704 = vmul.f32 %v2674, %v2700
        %v2705 = vmul.f32 %v2675, %v2701
        %v2706 = vmul.f32 %v2676, %v2701
        %v2707 = vmul.f32 %v2677, %v2702
        %v2708 = vmul.f32 %v2678, %v2702
        %v2710 = vlaneseq
        %v2711 = vshrl.u32 %v2710, 7
        %v2712 = vsub.s32 0, %v2711
        %v2713 = vrot.slane %v2659, %v2712
        %v2714 = vlaneseq
        %v2715 = vshrl.u32 %v2714, 7
        %v2716 = vsub.s32 1, %v2715
        %v2717 = vrot.slane %v2659, %v2716
        %v2720 = vmul.f32 %v2703, %v2713
        %v2721 = vmul.f32 %v2704, %v2717
        %v2722 = vmul.f32 %v2705, %v2713
        %v2723 = vmul.f32 %v2706, %v2717
        %v2724 = vmul.f32 %v2707, %v2713
        %v2725 = vmul.f32 %v2708, %v2717
        %v2727 = vlaneseq
        %v2728 = vshrl.u32 %v2727, 7
        %v2729 = vsub.s32 0, %v2728
        %v2730 = vrot.slane %v2660, %v2729
        %v2731 = vlaneseq
        %v2732 = vshrl.u32 %v2731, 7
        %v2733 = vsub.s32 1, %v2732
        %v2734 = vrot.slane %v2660, %v2733
        %v2737 = vadd.f32 %v2720, %v2730
        %v2738 = vadd.f32 %v2721, %v2734
        %v2739 = vadd.f32 %v2722, %v2730
        %v2740 = vadd.f32 %v2723, %v2734
        %v2741 = vadd.f32 %v2724, %v2730
        %v2742 = vadd.f32 %v2725, %v2734
        %v2743 = vpack.c.bf16 %v2739, %v2737
        %v2744 = vpack.c.bf16 %v2740, %v2738
        %v2745 = vpack.c.bf16 %v2741, %v2741
        %v2746 = vpack.c.bf16 %v2742, %v2742
        %v2747 = vld [vmem:[%s792] sm:$0xff]
        %v2748 = vld [vmem:[%s792 + $0x8] sm:$0xff]
        %v2749 = vld [vmem:[%s792 + $0x10] sm:$0xff]
        %v2750 = vld [vmem:[%s792 + $0x18] sm:$0xff]
        %v2751 = vld [vmem:[%s792 + $0x20] sm:$0xff]
        %v2752 = vld [vmem:[%s792 + $0x28] sm:$0xff]
        %v2753 = vld [vmem:[%s792 + $0x30] sm:$0xff]
        %v2754 = vld [vmem:[%s792 + $0x38] sm:$0xff]
        %v2755 = vld [vmem:[%s792 + $0x40] sm:$0xff]
        %v2756 = vld [vmem:[%s792 + $0x48] sm:$0xff]
        %v2757 = vld [vmem:[%s792 + $0x50] sm:$0xff]
        %v2758 = vld [vmem:[%s792 + $0x58] sm:$0xff]
        %v2759 = vld [vmem:[%s792 + $0x60] sm:$0xff]
        %v2760 = vld [vmem:[%s792 + $0x68] sm:$0xff]
        %v2761 = vld [vmem:[%s792 + $0x70] sm:$0xff]
        %v2762 = vld [vmem:[%s792 + $0x78] sm:$0xff]
        %v2763 = vld [vmem:[%s792 + $0x80] sm:$0xff]
        %v2764 = vld [vmem:[%s792 + $0x88] sm:$0xff]
        %v2765 = vld [vmem:[%s792 + $0x90] sm:$0xff]
        %v2766 = vld [vmem:[%s792 + $0x98] sm:$0xff]
        %v2767 = vld [vmem:[%s792 + $0xa0] sm:$0xff]
        %v2768 = vld [vmem:[%s792 + $0xa8] sm:$0xff]
        %v2769 = vld [vmem:[%s792 + $0xb0] sm:$0xff]
        %v2770 = vld [vmem:[%s792 + $0xb8] sm:$0xff]
        %v2771 = vld [vmem:[%s792 + $0xc0] sm:$0xff]
        %v2772 = vld [vmem:[%s792 + $0xc8] sm:$0xff]
        %v2773 = vld [vmem:[%s792 + $0xd0] sm:$0xff]
        %v2774 = vld [vmem:[%s792 + $0xd8] sm:$0xff]
        %v2775 = vld [vmem:[%s792 + $0xe0] sm:$0xff]
        %v2776 = vld [vmem:[%s792 + $0xe8] sm:$0xff]
        %v2777 = vld [vmem:[%s792 + $0xf0] sm:$0xff]
        %v2778 = vld [vmem:[%s792 + $0xf8] sm:$0xff]
        %v2779 = vld [vmem:[%s792 + $0x100] sm:$0xff]
        %v2780 = vld [vmem:[%s792 + $0x108] sm:$0xff]
        %v2781 = vld [vmem:[%s792 + $0x110] sm:$0xff]
        %v2782 = vld [vmem:[%s792 + $0x118] sm:$0xff]
        %v2783 = vld [vmem:[%s792 + $0x120] sm:$0xff]
        %v2784 = vld [vmem:[%s792 + $0x128] sm:$0xff]
        %v2785 = vld [vmem:[%s792 + $0x130] sm:$0xff]
        %v2786 = vld [vmem:[%s792 + $0x138] sm:$0xff]
        %v2787 = vld [vmem:[%s792 + $0x140] sm:$0xff]
        %v2788 = vld [vmem:[%s792 + $0x148] sm:$0xff]
        %v2789 = vld [vmem:[%s792 + $0x150] sm:$0xff]
        %v2790 = vld [vmem:[%s792 + $0x158] sm:$0xff]
        %v2791 = vld [vmem:[%s792 + $0x160] sm:$0xff]
        %v2792 = vld [vmem:[%s792 + $0x168] sm:$0xff]
        %v2793 = vld [vmem:[%s792 + $0x170] sm:$0xff]
        %v2794 = vld [vmem:[%s792 + $0x178] sm:$0xff]
        %v2795 = vld [vmem:[%s792 + $0x180] sm:$0xff]
        %v2796 = vld [vmem:[%s792 + $0x188] sm:$0xff]
        %v2797 = vld [vmem:[%s792 + $0x190] sm:$0xff]
        %v2798 = vld [vmem:[%s792 + $0x198] sm:$0xff]
        %v2799 = vld [vmem:[%s792 + $0x1a0] sm:$0xff]
        %v2800 = vld [vmem:[%s792 + $0x1a8] sm:$0xff]
        %v2801 = vld [vmem:[%s792 + $0x1b0] sm:$0xff]
        %v2802 = vld [vmem:[%s792 + $0x1b8] sm:$0xff]
        %v2803 = vld [vmem:[%s792 + $0x1c0] sm:$0xff]
        %v2804 = vld [vmem:[%s792 + $0x1c8] sm:$0xff]
        %v2805 = vld [vmem:[%s792 + $0x1d0] sm:$0xff]
        %v2806 = vld [vmem:[%s792 + $0x1d8] sm:$0xff]
        %v2807 = vld [vmem:[%s792 + $0x1e0] sm:$0xff]
        %v2808 = vld [vmem:[%s792 + $0x1e8] sm:$0xff]
        %v2809 = vld [vmem:[%s792 + $0x1f0] sm:$0xff]
        %v2810 = vld [vmem:[%s792 + $0x1f8] sm:$0xff]
        %v2811 = vld [vmem:[%s792 + $0x200] sm:$0xff]
        %v2812 = vld [vmem:[%s792 + $0x208] sm:$0xff]
        %v2813 = vld [vmem:[%s792 + $0x210] sm:$0xff]
        %v2814 = vld [vmem:[%s792 + $0x218] sm:$0xff]
        %v2815 = vld [vmem:[%s792 + $0x220] sm:$0xff]
        %v2816 = vld [vmem:[%s792 + $0x228] sm:$0xff]
        %v2817 = vld [vmem:[%s792 + $0x230] sm:$0xff]
        %v2818 = vld [vmem:[%s792 + $0x238] sm:$0xff]
        %v2819 = vld [vmem:[%s792 + $0x240] sm:$0xff]
        %v2820 = vld [vmem:[%s792 + $0x248] sm:$0xff]
        %v2821 = vld [vmem:[%s792 + $0x250] sm:$0xff]
        %v2822 = vld [vmem:[%s792 + $0x258] sm:$0xff]
        %v2823 = vld [vmem:[%s792 + $0x260] sm:$0xff]
        %v2824 = vld [vmem:[%s792 + $0x268] sm:$0xff]
        %v2825 = vld [vmem:[%s792 + $0x270] sm:$0xff]
        %v2826 = vld [vmem:[%s792 + $0x278] sm:$0xff]
        %v2827 = vld [vmem:[%s792 + $0x280] sm:$0xff]
        %v2828 = vld [vmem:[%s792 + $0x288] sm:$0xff]
        %v2829 = vld [vmem:[%s792 + $0x290] sm:$0xff]
        %v2830 = vld [vmem:[%s792 + $0x298] sm:$0xff]
        %v2831 = vld [vmem:[%s792 + $0x2a0] sm:$0xff]
        %v2832 = vld [vmem:[%s792 + $0x2a8] sm:$0xff]
        %v2833 = vld [vmem:[%s792 + $0x2b0] sm:$0xff]
        %v2834 = vld [vmem:[%s792 + $0x2b8] sm:$0xff]
        %v2835 = vld [vmem:[%s792 + $0x2c0] sm:$0xff]
        %v2836 = vld [vmem:[%s792 + $0x2c8] sm:$0xff]
        %v2837 = vld [vmem:[%s792 + $0x2d0] sm:$0xff]
        %v2838 = vld [vmem:[%s792 + $0x2d8] sm:$0xff]
        %v2839 = vld [vmem:[%s792 + $0x2e0] sm:$0xff]
        %v2840 = vld [vmem:[%s792 + $0x2e8] sm:$0xff]
        %v2841 = vld [vmem:[%s792 + $0x2f0] sm:$0xff]
        %v2842 = vld [vmem:[%s792 + $0x2f8] sm:$0xff]
        %v2843 = vld [vmem:[%s792 + $0x300] sm:$0xff]
        %v2844 = vld [vmem:[%s792 + $0x308] sm:$0xff]
        %v2845 = vld [vmem:[%s792 + $0x310] sm:$0xff]
        %v2846 = vld [vmem:[%s792 + $0x318] sm:$0xff]
        %v2847 = vld [vmem:[%s792 + $0x320] sm:$0xff]
        %v2848 = vld [vmem:[%s792 + $0x328] sm:$0xff]
        %v2849 = vld [vmem:[%s792 + $0x330] sm:$0xff]
        %v2850 = vld [vmem:[%s792 + $0x338] sm:$0xff]
        %v2851 = vld [vmem:[%s792 + $0x340] sm:$0xff]
        %v2852 = vld [vmem:[%s792 + $0x348] sm:$0xff]
        %v2853 = vld [vmem:[%s792 + $0x350] sm:$0xff]
        %v2854 = vld [vmem:[%s792 + $0x358] sm:$0xff]
        %v2855 = vld [vmem:[%s792 + $0x360] sm:$0xff]
        %v2856 = vld [vmem:[%s792 + $0x368] sm:$0xff]
        %v2857 = vld [vmem:[%s792 + $0x370] sm:$0xff]
        %v2858 = vld [vmem:[%s792 + $0x378] sm:$0xff]
        %v2859 = vld [vmem:[%s792 + $0x380] sm:$0xff]
        %v2860 = vld [vmem:[%s792 + $0x388] sm:$0xff]
        %v2861 = vld [vmem:[%s792 + $0x390] sm:$0xff]
        %v2862 = vld [vmem:[%s792 + $0x398] sm:$0xff]
        %v2863 = vld [vmem:[%s792 + $0x3a0] sm:$0xff]
        %v2864 = vld [vmem:[%s792 + $0x3a8] sm:$0xff]
        %v2865 = vld [vmem:[%s792 + $0x3b0] sm:$0xff]
        %v2866 = vld [vmem:[%s792 + $0x3b8] sm:$0xff]
        %v2867 = vld [vmem:[%s792 + $0x3c0] sm:$0xff]
        %v2868 = vld [vmem:[%s792 + $0x3c8] sm:$0xff]
        %v2869 = vld [vmem:[%s792 + $0x3d0] sm:$0xff]
        %v2870 = vld [vmem:[%s792 + $0x3d8] sm:$0xff]
        %v2871 = vld [vmem:[%s792 + $0x3e0] sm:$0xff]
        %v2872 = vld [vmem:[%s792 + $0x3e8] sm:$0xff]
        %v2873 = vld [vmem:[%s792 + $0x3f0] sm:$0xff]
        %v2874 = vld [vmem:[%s792 + $0x3f8] sm:$0xff]
        %v2875 = vld [vmem:[%s796] sm:$0xff]
        %v2877 = vlaneseq
        %v2878 = vshrl.u32 %v2877, 7
        %v2879 = vsub.s32 0, %v2878
        %v2880 = vrot.slane %v2875, %v2879
        %v2881 = vlaneseq
        %v2882 = vshrl.u32 %v2881, 7
        %v2883 = vsub.s32 1, %v2882
        %v2884 = vrot.slane %v2875, %v2883
        %v2885 = vlaneseq
        %v2886 = vshrl.u32 %v2885, 7
        %v2887 = vsub.s32 2, %v2886
        %v2888 = vrot.slane %v2875, %v2887
        %v2889 = vlaneseq
        %v2890 = vshrl.u32 %v2889, 7
        %v2891 = vsub.s32 3, %v2890
        %v2892 = vrot.slane %v2875, %v2891
        %v2893 = vlaneseq
        %v2894 = vshrl.u32 %v2893, 7
        %v2895 = vsub.s32 4, %v2894
        %v2896 = vrot.slane %v2875, %v2895
        %v2897 = vlaneseq
        %v2898 = vshrl.u32 %v2897, 7
        %v2899 = vsub.s32 5, %v2898
        %v2900 = vrot.slane %v2875, %v2899
        %v2901 = vlaneseq
        %v2902 = vshrl.u32 %v2901, 7
        %v2903 = vsub.s32 6, %v2902
        %v2904 = vrot.slane %v2875, %v2903
        %v2905 = vlaneseq
        %v2906 = vshrl.u32 %v2905, 7
        %v2907 = vsub.s32 7, %v2906
        %v2908 = vrot.slane %v2875, %v2907
        %v3045 = vunpack.c.l.b16 %v2747
        %v3046 = vunpack.c.h.b16 %v2747
        %v3047 = vunpack.c.l.b16 %v2748
        %v3048 = vunpack.c.h.b16 %v2748
        %v3049 = vunpack.c.l.b16 %v2749
        %v3050 = vunpack.c.h.b16 %v2749
        %v3051 = vunpack.c.l.b16 %v2750
        %v3052 = vunpack.c.h.b16 %v2750
        %v3053 = vunpack.c.l.b16 %v2751
        %v3054 = vunpack.c.h.b16 %v2751
        %v3055 = vunpack.c.l.b16 %v2752
        %v3056 = vunpack.c.h.b16 %v2752
        %v3057 = vunpack.c.l.b16 %v2753
        %v3058 = vunpack.c.h.b16 %v2753
        %v3059 = vunpack.c.l.b16 %v2754
        %v3060 = vunpack.c.h.b16 %v2754
        %v3061 = vunpack.c.l.b16 %v2755
        %v3062 = vunpack.c.h.b16 %v2755
        %v3063 = vunpack.c.l.b16 %v2756
        %v3064 = vunpack.c.h.b16 %v2756
        %v3065 = vunpack.c.l.b16 %v2757
        %v3066 = vunpack.c.h.b16 %v2757
        %v3067 = vunpack.c.l.b16 %v2758
        %v3068 = vunpack.c.h.b16 %v2758
        %v3069 = vunpack.c.l.b16 %v2759
        %v3070 = vunpack.c.h.b16 %v2759
        %v3071 = vunpack.c.l.b16 %v2760
        %v3072 = vunpack.c.h.b16 %v2760
        %v3073 = vunpack.c.l.b16 %v2761
        %v3074 = vunpack.c.h.b16 %v2761
        %v3075 = vunpack.c.l.b16 %v2762
        %v3076 = vunpack.c.h.b16 %v2762
        %v3077 = vunpack.c.l.b16 %v2763
        %v3078 = vunpack.c.h.b16 %v2763
        %v3079 = vunpack.c.l.b16 %v2764
        %v3080 = vunpack.c.h.b16 %v2764
        %v3081 = vunpack.c.l.b16 %v2765
        %v3082 = vunpack.c.h.b16 %v2765
        %v3083 = vunpack.c.l.b16 %v2766
        %v3084 = vunpack.c.h.b16 %v2766
        %v3085 = vunpack.c.l.b16 %v2767
        %v3086 = vunpack.c.h.b16 %v2767
        %v3087 = vunpack.c.l.b16 %v2768
        %v3088 = vunpack.c.h.b16 %v2768
        %v3089 = vunpack.c.l.b16 %v2769
        %v3090 = vunpack.c.h.b16 %v2769
        %v3091 = vunpack.c.l.b16 %v2770
        %v3092 = vunpack.c.h.b16 %v2770
        %v3093 = vunpack.c.l.b16 %v2771
        %v3094 = vunpack.c.h.b16 %v2771
        %v3095 = vunpack.c.l.b16 %v2772
        %v3096 = vunpack.c.h.b16 %v2772
        %v3097 = vunpack.c.l.b16 %v2773
        %v3098 = vunpack.c.h.b16 %v2773
        %v3099 = vunpack.c.l.b16 %v2774
        %v3100 = vunpack.c.h.b16 %v2774
        %v3101 = vunpack.c.l.b16 %v2775
        %v3102 = vunpack.c.h.b16 %v2775
        %v3103 = vunpack.c.l.b16 %v2776
        %v3104 = vunpack.c.h.b16 %v2776
        %v3105 = vunpack.c.l.b16 %v2777
        %v3106 = vunpack.c.h.b16 %v2777
        %v3107 = vunpack.c.l.b16 %v2778
        %v3108 = vunpack.c.h.b16 %v2778
        %v3109 = vunpack.c.l.b16 %v2779
        %v3110 = vunpack.c.h.b16 %v2779
        %v3111 = vunpack.c.l.b16 %v2780
        %v3112 = vunpack.c.h.b16 %v2780
        %v3113 = vunpack.c.l.b16 %v2781
        %v3114 = vunpack.c.h.b16 %v2781
        %v3115 = vunpack.c.l.b16 %v2782
        %v3116 = vunpack.c.h.b16 %v2782
        %v3117 = vunpack.c.l.b16 %v2783
        %v3118 = vunpack.c.h.b16 %v2783
        %v3119 = vunpack.c.l.b16 %v2784
        %v3120 = vunpack.c.h.b16 %v2784
        %v3121 = vunpack.c.l.b16 %v2785
        %v3122 = vunpack.c.h.b16 %v2785
        %v3123 = vunpack.c.l.b16 %v2786
        %v3124 = vunpack.c.h.b16 %v2786
        %v3125 = vunpack.c.l.b16 %v2787
        %v3126 = vunpack.c.h.b16 %v2787
        %v3127 = vunpack.c.l.b16 %v2788
        %v3128 = vunpack.c.h.b16 %v2788
        %v3129 = vunpack.c.l.b16 %v2789
        %v3130 = vunpack.c.h.b16 %v2789
        %v3131 = vunpack.c.l.b16 %v2790
        %v3132 = vunpack.c.h.b16 %v2790
        %v3133 = vunpack.c.l.b16 %v2791
        %v3134 = vunpack.c.h.b16 %v2791
        %v3135 = vunpack.c.l.b16 %v2792
        %v3136 = vunpack.c.h.b16 %v2792
        %v3137 = vunpack.c.l.b16 %v2793
        %v3138 = vunpack.c.h.b16 %v2793
        %v3139 = vunpack.c.l.b16 %v2794
        %v3140 = vunpack.c.h.b16 %v2794
        %v3141 = vunpack.c.l.b16 %v2795
        %v3142 = vunpack.c.h.b16 %v2795
        %v3143 = vunpack.c.l.b16 %v2796
        %v3144 = vunpack.c.h.b16 %v2796
        %v3145 = vunpack.c.l.b16 %v2797
        %v3146 = vunpack.c.h.b16 %v2797
        %v3147 = vunpack.c.l.b16 %v2798
        %v3148 = vunpack.c.h.b16 %v2798
        %v3149 = vunpack.c.l.b16 %v2799
        %v3150 = vunpack.c.h.b16 %v2799
        %v3151 = vunpack.c.l.b16 %v2800
        %v3152 = vunpack.c.h.b16 %v2800
        %v3153 = vunpack.c.l.b16 %v2801
        %v3154 = vunpack.c.h.b16 %v2801
        %v3155 = vunpack.c.l.b16 %v2802
        %v3156 = vunpack.c.h.b16 %v2802
        %v3157 = vunpack.c.l.b16 %v2803
        %v3158 = vunpack.c.h.b16 %v2803
        %v3159 = vunpack.c.l.b16 %v2804
        %v3160 = vunpack.c.h.b16 %v2804
        %v3161 = vunpack.c.l.b16 %v2805
        %v3162 = vunpack.c.h.b16 %v2805
        %v3163 = vunpack.c.l.b16 %v2806
        %v3164 = vunpack.c.h.b16 %v2806
        %v3165 = vunpack.c.l.b16 %v2807
        %v3166 = vunpack.c.h.b16 %v2807
        %v3167 = vunpack.c.l.b16 %v2808
        %v3168 = vunpack.c.h.b16 %v2808
        %v3169 = vunpack.c.l.b16 %v2809
        %v3170 = vunpack.c.h.b16 %v2809
        %v3171 = vunpack.c.l.b16 %v2810
        %v3172 = vunpack.c.h.b16 %v2810
        %v3173 = vunpack.c.l.b16 %v2811
        %v3174 = vunpack.c.h.b16 %v2811
        %v3175 = vunpack.c.l.b16 %v2812
        %v3176 = vunpack.c.h.b16 %v2812
        %v3177 = vunpack.c.l.b16 %v2813
        %v3178 = vunpack.c.h.b16 %v2813
        %v3179 = vunpack.c.l.b16 %v2814
        %v3180 = vunpack.c.h.b16 %v2814
        %v3181 = vunpack.c.l.b16 %v2815
        %v3182 = vunpack.c.h.b16 %v2815
        %v3183 = vunpack.c.l.b16 %v2816
        %v3184 = vunpack.c.h.b16 %v2816
        %v3185 = vunpack.c.l.b16 %v2817
        %v3186 = vunpack.c.h.b16 %v2817
        %v3187 = vunpack.c.l.b16 %v2818
        %v3188 = vunpack.c.h.b16 %v2818
        %v3189 = vunpack.c.l.b16 %v2819
        %v3190 = vunpack.c.h.b16 %v2819
        %v3191 = vunpack.c.l.b16 %v2820
        %v3192 = vunpack.c.h.b16 %v2820
        %v3193 = vunpack.c.l.b16 %v2821
        %v3194 = vunpack.c.h.b16 %v2821
        %v3195 = vunpack.c.l.b16 %v2822
        %v3196 = vunpack.c.h.b16 %v2822
        %v3197 = vunpack.c.l.b16 %v2823
        %v3198 = vunpack.c.h.b16 %v2823
        %v3199 = vunpack.c.l.b16 %v2824
        %v3200 = vunpack.c.h.b16 %v2824
        %v3201 = vunpack.c.l.b16 %v2825
        %v3202 = vunpack.c.h.b16 %v2825
        %v3203 = vunpack.c.l.b16 %v2826
        %v3204 = vunpack.c.h.b16 %v2826
        %v3205 = vunpack.c.l.b16 %v2827
        %v3206 = vunpack.c.h.b16 %v2827
        %v3207 = vunpack.c.l.b16 %v2828
        %v3208 = vunpack.c.h.b16 %v2828
        %v3209 = vunpack.c.l.b16 %v2829
        %v3210 = vunpack.c.h.b16 %v2829
        %v3211 = vunpack.c.l.b16 %v2830
        %v3212 = vunpack.c.h.b16 %v2830
        %v3213 = vunpack.c.l.b16 %v2831
        %v3214 = vunpack.c.h.b16 %v2831
        %v3215 = vunpack.c.l.b16 %v2832
        %v3216 = vunpack.c.h.b16 %v2832
        %v3217 = vunpack.c.l.b16 %v2833
        %v3218 = vunpack.c.h.b16 %v2833
        %v3219 = vunpack.c.l.b16 %v2834
        %v3220 = vunpack.c.h.b16 %v2834
        %v3221 = vunpack.c.l.b16 %v2835
        %v3222 = vunpack.c.h.b16 %v2835
        %v3223 = vunpack.c.l.b16 %v2836
        %v3224 = vunpack.c.h.b16 %v2836
        %v3225 = vunpack.c.l.b16 %v2837
        %v3226 = vunpack.c.h.b16 %v2837
        %v3227 = vunpack.c.l.b16 %v2838
        %v3228 = vunpack.c.h.b16 %v2838
        %v3229 = vunpack.c.l.b16 %v2839
        %v3230 = vunpack.c.h.b16 %v2839
        %v3231 = vunpack.c.l.b16 %v2840
        %v3232 = vunpack.c.h.b16 %v2840
        %v3233 = vunpack.c.l.b16 %v2841
        %v3234 = vunpack.c.h.b16 %v2841
        %v3235 = vunpack.c.l.b16 %v2842
        %v3236 = vunpack.c.h.b16 %v2842
        %v3237 = vunpack.c.l.b16 %v2843
        %v3238 = vunpack.c.h.b16 %v2843
        %v3239 = vunpack.c.l.b16 %v2844
        %v3240 = vunpack.c.h.b16 %v2844
        %v3241 = vunpack.c.l.b16 %v2845
        %v3242 = vunpack.c.h.b16 %v2845
        %v3243 = vunpack.c.l.b16 %v2846
        %v3244 = vunpack.c.h.b16 %v2846
        %v3245 = vunpack.c.l.b16 %v2847
        %v3246 = vunpack.c.h.b16 %v2847
        %v3247 = vunpack.c.l.b16 %v2848
        %v3248 = vunpack.c.h.b16 %v2848
        %v3249 = vunpack.c.l.b16 %v2849
        %v3250 = vunpack.c.h.b16 %v2849
        %v3251 = vunpack.c.l.b16 %v2850
        %v3252 = vunpack.c.h.b16 %v2850
        %v3253 = vunpack.c.l.b16 %v2851
        %v3254 = vunpack.c.h.b16 %v2851
        %v3255 = vunpack.c.l.b16 %v2852
        %v3256 = vunpack.c.h.b16 %v2852
        %v3257 = vunpack.c.l.b16 %v2853
        %v3258 = vunpack.c.h.b16 %v2853
        %v3259 = vunpack.c.l.b16 %v2854
        %v3260 = vunpack.c.h.b16 %v2854
        %v3261 = vunpack.c.l.b16 %v2855
        %v3262 = vunpack.c.h.b16 %v2855
        %v3263 = vunpack.c.l.b16 %v2856
        %v3264 = vunpack.c.h.b16 %v2856
        %v3265 = vunpack.c.l.b16 %v2857
        %v3266 = vunpack.c.h.b16 %v2857
        %v3267 = vunpack.c.l.b16 %v2858
        %v3268 = vunpack.c.h.b16 %v2858
        %v3269 = vunpack.c.l.b16 %v2859
        %v3270 = vunpack.c.h.b16 %v2859
        %v3271 = vunpack.c.l.b16 %v2860
        %v3272 = vunpack.c.h.b16 %v2860
        %v3273 = vunpack.c.l.b16 %v2861
        %v3274 = vunpack.c.h.b16 %v2861
        %v3275 = vunpack.c.l.b16 %v2862
        %v3276 = vunpack.c.h.b16 %v2862
        %v3277 = vunpack.c.l.b16 %v2863
        %v3278 = vunpack.c.h.b16 %v2863
        %v3279 = vunpack.c.l.b16 %v2864
        %v3280 = vunpack.c.h.b16 %v2864
        %v3281 = vunpack.c.l.b16 %v2865
        %v3282 = vunpack.c.h.b16 %v2865
        %v3283 = vunpack.c.l.b16 %v2866
        %v3284 = vunpack.c.h.b16 %v2866
        %v3285 = vunpack.c.l.b16 %v2867
        %v3286 = vunpack.c.h.b16 %v2867
        %v3287 = vunpack.c.l.b16 %v2868
        %v3288 = vunpack.c.h.b16 %v2868
        %v3289 = vunpack.c.l.b16 %v2869
        %v3290 = vunpack.c.h.b16 %v2869
        %v3291 = vunpack.c.l.b16 %v2870
        %v3292 = vunpack.c.h.b16 %v2870
        %v3293 = vunpack.c.l.b16 %v2871
        %v3294 = vunpack.c.h.b16 %v2871
        %v3295 = vunpack.c.l.b16 %v2872
        %v3296 = vunpack.c.h.b16 %v2872
        %v3297 = vunpack.c.l.b16 %v2873
        %v3298 = vunpack.c.h.b16 %v2873
        %v3299 = vunpack.c.l.b16 %v2874
        %v3300 = vunpack.c.h.b16 %v2874
        %v3301 = vpack.c.b16 %v3053, %v3045
        %v3302 = vpack.c.b16 %v3054, %v3046
        %v3303 = vpack.c.b16 %v3055, %v3047
        %v3304 = vpack.c.b16 %v3056, %v3048
        %v3305 = vpack.c.b16 %v3057, %v3049
        %v3306 = vpack.c.b16 %v3058, %v3050
        %v3307 = vpack.c.b16 %v3059, %v3051
        %v3308 = vpack.c.b16 %v3060, %v3052
        %v3309 = vpack.c.b16 %v3069, %v3061
        %v3310 = vpack.c.b16 %v3070, %v3062
        %v3311 = vpack.c.b16 %v3071, %v3063
        %v3312 = vpack.c.b16 %v3072, %v3064
        %v3313 = vpack.c.b16 %v3073, %v3065
        %v3314 = vpack.c.b16 %v3074, %v3066
        %v3315 = vpack.c.b16 %v3075, %v3067
        %v3316 = vpack.c.b16 %v3076, %v3068
        %v3317 = vpack.c.b16 %v3085, %v3077
        %v3318 = vpack.c.b16 %v3086, %v3078
        %v3319 = vpack.c.b16 %v3087, %v3079
        %v3320 = vpack.c.b16 %v3088, %v3080
        %v3321 = vpack.c.b16 %v3089, %v3081
        %v3322 = vpack.c.b16 %v3090, %v3082
        %v3323 = vpack.c.b16 %v3091, %v3083
        %v3324 = vpack.c.b16 %v3092, %v3084
        %v3325 = vpack.c.b16 %v3101, %v3093
        %v3326 = vpack.c.b16 %v3102, %v3094
        %v3327 = vpack.c.b16 %v3103, %v3095
        %v3328 = vpack.c.b16 %v3104, %v3096
        %v3329 = vpack.c.b16 %v3105, %v3097
        %v3330 = vpack.c.b16 %v3106, %v3098
        %v3331 = vpack.c.b16 %v3107, %v3099
        %v3332 = vpack.c.b16 %v3108, %v3100
        %v3333 = vpack.c.b16 %v3117, %v3109
        %v3334 = vpack.c.b16 %v3118, %v3110
        %v3335 = vpack.c.b16 %v3119, %v3111
        %v3336 = vpack.c.b16 %v3120, %v3112
        %v3337 = vpack.c.b16 %v3121, %v3113
        %v3338 = vpack.c.b16 %v3122, %v3114
        %v3339 = vpack.c.b16 %v3123, %v3115
        %v3340 = vpack.c.b16 %v3124, %v3116
        %v3341 = vpack.c.b16 %v3133, %v3125
        %v3342 = vpack.c.b16 %v3134, %v3126
        %v3343 = vpack.c.b16 %v3135, %v3127
        %v3344 = vpack.c.b16 %v3136, %v3128
        %v3345 = vpack.c.b16 %v3137, %v3129
        %v3346 = vpack.c.b16 %v3138, %v3130
        %v3347 = vpack.c.b16 %v3139, %v3131
        %v3348 = vpack.c.b16 %v3140, %v3132
        %v3349 = vpack.c.b16 %v3149, %v3141
        %v3350 = vpack.c.b16 %v3150, %v3142
        %v3351 = vpack.c.b16 %v3151, %v3143
        %v3352 = vpack.c.b16 %v3152, %v3144
        %v3353 = vpack.c.b16 %v3153, %v3145
        %v3354 = vpack.c.b16 %v3154, %v3146
        %v3355 = vpack.c.b16 %v3155, %v3147
        %v3356 = vpack.c.b16 %v3156, %v3148
        %v3357 = vpack.c.b16 %v3165, %v3157
        %v3358 = vpack.c.b16 %v3166, %v3158
        %v3359 = vpack.c.b16 %v3167, %v3159
        %v3360 = vpack.c.b16 %v3168, %v3160
        %v3361 = vpack.c.b16 %v3169, %v3161
        %v3362 = vpack.c.b16 %v3170, %v3162
        %v3363 = vpack.c.b16 %v3171, %v3163
        %v3364 = vpack.c.b16 %v3172, %v3164
        %v3365 = vpack.c.b16 %v3181, %v3173
        %v3366 = vpack.c.b16 %v3182, %v3174
        %v3367 = vpack.c.b16 %v3183, %v3175
        %v3368 = vpack.c.b16 %v3184, %v3176
        %v3369 = vpack.c.b16 %v3185, %v3177
        %v3370 = vpack.c.b16 %v3186, %v3178
        %v3371 = vpack.c.b16 %v3187, %v3179
        %v3372 = vpack.c.b16 %v3188, %v3180
        %v3373 = vpack.c.b16 %v3197, %v3189
        %v3374 = vpack.c.b16 %v3198, %v3190
        %v3375 = vpack.c.b16 %v3199, %v3191
        %v3376 = vpack.c.b16 %v3200, %v3192
        %v3377 = vpack.c.b16 %v3201, %v3193
        %v3378 = vpack.c.b16 %v3202, %v3194
        %v3379 = vpack.c.b16 %v3203, %v3195
        %v3380 = vpack.c.b16 %v3204, %v3196
        %v3381 = vpack.c.b16 %v3213, %v3205
        %v3382 = vpack.c.b16 %v3214, %v3206
        %v3383 = vpack.c.b16 %v3215, %v3207
        %v3384 = vpack.c.b16 %v3216, %v3208
        %v3385 = vpack.c.b16 %v3217, %v3209
        %v3386 = vpack.c.b16 %v3218, %v3210
        %v3387 = vpack.c.b16 %v3219, %v3211
        %v3388 = vpack.c.b16 %v3220, %v3212
        %v3389 = vpack.c.b16 %v3229, %v3221
        %v3390 = vpack.c.b16 %v3230, %v3222
        %v3391 = vpack.c.b16 %v3231, %v3223
        %v3392 = vpack.c.b16 %v3232, %v3224
        %v3393 = vpack.c.b16 %v3233, %v3225
        %v3394 = vpack.c.b16 %v3234, %v3226
        %v3395 = vpack.c.b16 %v3235, %v3227
        %v3396 = vpack.c.b16 %v3236, %v3228
        %v3397 = vpack.c.b16 %v3245, %v3237
        %v3398 = vpack.c.b16 %v3246, %v3238
        %v3399 = vpack.c.b16 %v3247, %v3239
        %v3400 = vpack.c.b16 %v3248, %v3240
        %v3401 = vpack.c.b16 %v3249, %v3241
        %v3402 = vpack.c.b16 %v3250, %v3242
        %v3403 = vpack.c.b16 %v3251, %v3243
        %v3404 = vpack.c.b16 %v3252, %v3244
        %v3405 = vpack.c.b16 %v3261, %v3253
        %v3406 = vpack.c.b16 %v3262, %v3254
        %v3407 = vpack.c.b16 %v3263, %v3255
        %v3408 = vpack.c.b16 %v3264, %v3256
        %v3409 = vpack.c.b16 %v3265, %v3257
        %v3410 = vpack.c.b16 %v3266, %v3258
        %v3411 = vpack.c.b16 %v3267, %v3259
        %v3412 = vpack.c.b16 %v3268, %v3260
        %v3413 = vpack.c.b16 %v3277, %v3269
        %v3414 = vpack.c.b16 %v3278, %v3270
        %v3415 = vpack.c.b16 %v3279, %v3271
        %v3416 = vpack.c.b16 %v3280, %v3272
        %v3417 = vpack.c.b16 %v3281, %v3273
        %v3418 = vpack.c.b16 %v3282, %v3274
        %v3419 = vpack.c.b16 %v3283, %v3275
        %v3420 = vpack.c.b16 %v3284, %v3276
        %v3421 = vpack.c.b16 %v3293, %v3285
        %v3422 = vpack.c.b16 %v3294, %v3286
        %v3423 = vpack.c.b16 %v3295, %v3287
        %v3424 = vpack.c.b16 %v3296, %v3288
        %v3425 = vpack.c.b16 %v3297, %v3289
        %v3426 = vpack.c.b16 %v3298, %v3290
        %v3427 = vpack.c.b16 %v3299, %v3291
        %v3428 = vpack.c.b16 %v3300, %v3292
        %3557 = vmatprep.subr.bf16.mxu0 %v3358
        %3558 = vmatpush1.bf16.msra.mxu0 %v3357
        %3559 = vmatprep.subr.bf16.mxu0 %v3350
        %3560 = vmatpush1.bf16.msra.mxu0 %v3349
        %3561 = vmatprep.subr.bf16.mxu0 %v3342
        %3562 = vmatpush1.bf16.msra.mxu0 %v3341
        %3563 = vmatprep.subr.bf16.mxu0 %v3334
        %3564 = vmatpush1.bf16.msra.mxu0 %v3333
        %3565 = vmatprep.subr.bf16.mxu0 %v3326
        %3566 = vmatpush1.bf16.msra.mxu0 %v3325
        %3567 = vmatprep.subr.bf16.mxu0 %v3318
        %3568 = vmatpush1.bf16.msra.mxu0 %v3317
        %3569 = vmatprep.subr.bf16.mxu0 %v3310
        %3570 = vmatpush1.bf16.msra.mxu0 %v3309
        %3571 = vmatprep.subr.bf16.mxu0 %v3302
        %3572 = vmatpush1.bf16.msra.mxu0 %v3301
        %3573 = vmatprep.subr.bf16.mxu0 %v3422
        %3574 = vmatpush2.bf16.msra.mxu0 %v3421
        %3575 = vmatprep.subr.bf16.mxu0 %v3414
        %3576 = vmatpush2.bf16.msra.mxu0 %v3413
        %3577 = vmatprep.subr.bf16.mxu0 %v3406
        %3578 = vmatpush2.bf16.msra.mxu0 %v3405
        %3579 = vmatprep.subr.bf16.mxu0 %v3398
        %3580 = vmatpush2.bf16.msra.mxu0 %v3397
        %3581 = vmatprep.subr.bf16.mxu0 %v3390
        %3582 = vmatpush2.bf16.msra.mxu0 %v3389
        %3583 = vmatprep.subr.bf16.mxu0 %v3382
        %3584 = vmatpush2.bf16.msra.mxu0 %v3381
        %3585 = vmatprep.subr.bf16.mxu0 %v3374
        %3586 = vmatpush2.bf16.msra.mxu0 %v3373
        %3587 = vmatprep.subr.bf16.mxu0 %v3366
        %3588 = vmatpush2.bf16.msra.mxu0 %v3365
        %3589 = vmatprep.mubr.bf16.mxu0 %v2744
        %3590 = vmatmul.mubr.bf16.gmra.mxu0 %v2743
        %v3591 = vpop.f32.mrf.mxu0
        %v3592 = vadd.f32 %v2880, %v3591
        %v3593 = vpop.f32.mrf.mxu0
        %v3594 = vadd.f32 %v2884, %v3593
        %v3595 = vpop.f32.mrf.mxu0
        %v3596 = vadd.f32 %v2880, %v3595
        %v3597 = vpop.f32.mrf.mxu0
        %v3598 = vadd.f32 %v2884, %v3597
        %3599 = vmatprep.mubr.bf16.mxu0 %v2746
        %3600 = vmatmul.mubr.bf16.gmra.mxu0 %v2745
        %v3601 = vpop.f32.mrf.mxu0
        %v3602 = vadd.f32 %v2880, %v3601
        %v3603 = vpop.f32.mrf.mxu0
        %v3604 = vadd.f32 %v2884, %v3603
        %v3605 = vpop.f32.mrf.mxu0
        %v3606 = vpop.f32.mrf.mxu0
        %3607 = vdwg.mxu0
        %3608 = vmatprep.subr.bf16.mxu0 %v3360
        %3609 = vmatpush1.bf16.msra.mxu0 %v3359
        %3610 = vmatprep.subr.bf16.mxu0 %v3352
        %3611 = vmatpush1.bf16.msra.mxu0 %v3351
        %3612 = vmatprep.subr.bf16.mxu0 %v3344
        %3613 = vmatpush1.bf16.msra.mxu0 %v3343
        %3614 = vmatprep.subr.bf16.mxu0 %v3336
        %3615 = vmatpush1.bf16.msra.mxu0 %v3335
        %3616 = vmatprep.subr.bf16.mxu0 %v3328
        %3617 = vmatpush1.bf16.msra.mxu0 %v3327
        %3618 = vmatprep.subr.bf16.mxu0 %v3320
        %3619 = vmatpush1.bf16.msra.mxu0 %v3319
        %3620 = vmatprep.subr.bf16.mxu0 %v3312
        %3621 = vmatpush1.bf16.msra.mxu0 %v3311
        %3622 = vmatprep.subr.bf16.mxu0 %v3304
        %3623 = vmatpush1.bf16.msra.mxu0 %v3303
        %3624 = vmatprep.subr.bf16.mxu0 %v3424
        %3625 = vmatpush2.bf16.msra.mxu0 %v3423
        %3626 = vmatprep.subr.bf16.mxu0 %v3416
        %3627 = vmatpush2.bf16.msra.mxu0 %v3415
        %3628 = vmatprep.subr.bf16.mxu0 %v3408
        %3629 = vmatpush2.bf16.msra.mxu0 %v3407
        %3630 = vmatprep.subr.bf16.mxu0 %v3400
        %3631 = vmatpush2.bf16.msra.mxu0 %v3399
        %3632 = vmatprep.subr.bf16.mxu0 %v3392
        %3633 = vmatpush2.bf16.msra.mxu0 %v3391
        %3634 = vmatprep.subr.bf16.mxu0 %v3384
        %3635 = vmatpush2.bf16.msra.mxu0 %v3383
        %3636 = vmatprep.subr.bf16.mxu0 %v3376
        %3637 = vmatpush2.bf16.msra.mxu0 %v3375
        %3638 = vmatprep.subr.bf16.mxu0 %v3368
        %3639 = vmatpush2.bf16.msra.mxu0 %v3367
        %3640 = vmatprep.mubr.bf16.mxu0 %v2744
        %3641 = vmatmul.mubr.bf16.gmra.mxu0 %v2743
        %v3642 = vpop.f32.mrf.mxu0
        %v3643 = vadd.f32 %v2888, %v3642
        %v3644 = vpop.f32.mrf.mxu0
        %v3645 = vadd.f32 %v2892, %v3644
        %v3646 = vpop.f32.mrf.mxu0
        %v3647 = vadd.f32 %v2888, %v3646
        %v3648 = vpop.f32.mrf.mxu0
        %v3649 = vadd.f32 %v2892, %v3648
        %3650 = vmatprep.mubr.bf16.mxu0 %v2746
        %3651 = vmatmul.mubr.bf16.gmra.mxu0 %v2745
        %v3652 = vpop.f32.mrf.mxu0
        %v3653 = vadd.f32 %v2888, %v3652
        %v3654 = vpop.f32.mrf.mxu0
        %v3655 = vadd.f32 %v2892, %v3654
        %v3656 = vpop.f32.mrf.mxu0
        %v3657 = vpop.f32.mrf.mxu0
        %3658 = vdwg.mxu0
        %3659 = vmatprep.subr.bf16.mxu0 %v3362
        %3660 = vmatpush1.bf16.msra.mxu0 %v3361
        %3661 = vmatprep.subr.bf16.mxu0 %v3354
        %3662 = vmatpush1.bf16.msra.mxu0 %v3353
        %3663 = vmatprep.subr.bf16.mxu0 %v3346
        %3664 = vmatpush1.bf16.msra.mxu0 %v3345
        %3665 = vmatprep.subr.bf16.mxu0 %v3338
        %3666 = vmatpush1.bf16.msra.mxu0 %v3337
        %3667 = vmatprep.subr.bf16.mxu0 %v3330
        %3668 = vmatpush1.bf16.msra.mxu0 %v3329
        %3669 = vmatprep.subr.bf16.mxu0 %v3322
        %3670 = vmatpush1.bf16.msra.mxu0 %v3321
        %3671 = vmatprep.subr.bf16.mxu0 %v3314
        %3672 = vmatpush1.bf16.msra.mxu0 %v3313
        %3673 = vmatprep.subr.bf16.mxu0 %v3306
        %3674 = vmatpush1.bf16.msra.mxu0 %v3305
        %3675 = vmatprep.subr.bf16.mxu0 %v3426
        %3676 = vmatpush2.bf16.msra.mxu0 %v3425
        %3677 = vmatprep.subr.bf16.mxu0 %v3418
        %3678 = vmatpush2.bf16.msra.mxu0 %v3417
        %3679 = vmatprep.subr.bf16.mxu0 %v3410
        %3680 = vmatpush2.bf16.msra.mxu0 %v3409
        %3681 = vmatprep.subr.bf16.mxu0 %v3402
        %3682 = vmatpush2.bf16.msra.mxu0 %v3401
        %3683 = vmatprep.subr.bf16.mxu0 %v3394
        %3684 = vmatpush2.bf16.msra.mxu0 %v3393
        %3685 = vmatprep.subr.bf16.mxu0 %v3386
        %3686 = vmatpush2.bf16.msra.mxu0 %v3385
        %3687 = vmatprep.subr.bf16.mxu0 %v3378
        %3688 = vmatpush2.bf16.msra.mxu0 %v3377
        %3689 = vmatprep.subr.bf16.mxu0 %v3370
        %3690 = vmatpush2.bf16.msra.mxu0 %v3369
        %3691 = vmatprep.mubr.bf16.mxu0 %v2744
        %3692 = vmatmul.mubr.bf16.gmra.mxu0 %v2743
        %v3693 = vpop.f32.mrf.mxu0
        %v3694 = vadd.f32 %v2896, %v3693
        %v3695 = vpop.f32.mrf.mxu0
        %v3696 = vadd.f32 %v2900, %v3695
        %v3697 = vpop.f32.mrf.mxu0
        %v3698 = vadd.f32 %v2896, %v3697
        %v3699 = vpop.f32.mrf.mxu0
        %v3700 = vadd.f32 %v2900, %v3699
        %3701 = vmatprep.mubr.bf16.mxu0 %v2746
        %3702 = vmatmul.mubr.bf16.gmra.mxu0 %v2745
        %v3703 = vpop.f32.mrf.mxu0
        %v3704 = vadd.f32 %v2896, %v3703
        %v3705 = vpop.f32.mrf.mxu0
        %v3706 = vadd.f32 %v2900, %v3705
        %v3707 = vpop.f32.mrf.mxu0
        %v3708 = vpop.f32.mrf.mxu0
        %3709 = vdwg.mxu0
        %3710 = vmatprep.subr.bf16.mxu0 %v3364
        %3711 = vmatpush1.bf16.msra.mxu0 %v3363
        %3712 = vmatprep.subr.bf16.mxu0 %v3356
        %3713 = vmatpush1.bf16.msra.mxu0 %v3355
        %3714 = vmatprep.subr.bf16.mxu0 %v3348
        %3715 = vmatpush1.bf16.msra.mxu0 %v3347
        %3716 = vmatprep.subr.bf16.mxu0 %v3340
        %3717 = vmatpush1.bf16.msra.mxu0 %v3339
        %3718 = vmatprep.subr.bf16.mxu0 %v3332
        %3719 = vmatpush1.bf16.msra.mxu0 %v3331
        %3720 = vmatprep.subr.bf16.mxu0 %v3324
        %3721 = vmatpush1.bf16.msra.mxu0 %v3323
        %3722 = vmatprep.subr.bf16.mxu0 %v3316
        %3723 = vmatpush1.bf16.msra.mxu0 %v3315
        %3724 = vmatprep.subr.bf16.mxu0 %v3308
        %3725 = vmatpush1.bf16.msra.mxu0 %v3307
        %3726 = vmatprep.subr.bf16.mxu0 %v3428
        %3727 = vmatpush2.bf16.msra.mxu0 %v3427
        %3728 = vmatprep.subr.bf16.mxu0 %v3420
        %3729 = vmatpush2.bf16.msra.mxu0 %v3419
        %3730 = vmatprep.subr.bf16.mxu0 %v3412
        %3731 = vmatpush2.bf16.msra.mxu0 %v3411
        %3732 = vmatprep.subr.bf16.mxu0 %v3404
        %3733 = vmatpush2.bf16.msra.mxu0 %v3403
        %3734 = vmatprep.subr.bf16.mxu0 %v3396
        %3735 = vmatpush2.bf16.msra.mxu0 %v3395
        %3736 = vmatprep.subr.bf16.mxu0 %v3388
        %3737 = vmatpush2.bf16.msra.mxu0 %v3387
        %3738 = vmatprep.subr.bf16.mxu0 %v3380
        %3739 = vmatpush2.bf16.msra.mxu0 %v3379
        %3740 = vmatprep.subr.bf16.mxu0 %v3372
        %3741 = vmatpush2.bf16.msra.mxu0 %v3371
        %3742 = vmatprep.mubr.bf16.mxu0 %v2744
        %3743 = vmatmul.mubr.bf16.gmra.mxu0 %v2743
        %v3744 = vpop.f32.mrf.mxu0
        %v3745 = vadd.f32 %v2904, %v3744
        %v3746 = vpop.f32.mrf.mxu0
        %v3747 = vadd.f32 %v2908, %v3746
        %v3748 = vpop.f32.mrf.mxu0
        %v3749 = vadd.f32 %v2904, %v3748
        %v3750 = vpop.f32.mrf.mxu0
        %v3751 = vadd.f32 %v2908, %v3750
        %3752 = vmatprep.mubr.bf16.mxu0 %v2746
        %3753 = vmatmul.mubr.bf16.gmra.mxu0 %v2745
        %v3754 = vpop.f32.mrf.mxu0
        %v3755 = vadd.f32 %v2904, %v3754
        %v3756 = vpop.f32.mrf.mxu0
        %v3757 = vadd.f32 %v2908, %v3756
        %v3758 = vpop.f32.mrf.mxu0
        %v3759 = vpop.f32.mrf.mxu0
        %3760 = vdwg.mxu0
        %v3761 = vmul.f32 %v3592, 0.5
        %v3762 = vmul.f32 %v3594, 0.5
        %v3763 = vmul.f32 %v3643, 0.5
        %v3764 = vmul.f32 %v3645, 0.5
        %v3765 = vmul.f32 %v3694, 0.5
        %v3766 = vmul.f32 %v3696, 0.5
        %v3767 = vmul.f32 %v3745, 0.5
        %v3768 = vmul.f32 %v3747, 0.5
        %v3769 = vmul.f32 %v3596, 0.5
        %v3770 = vmul.f32 %v3598, 0.5
        %v3771 = vmul.f32 %v3647, 0.5
        %v3772 = vmul.f32 %v3649, 0.5
        %v3773 = vmul.f32 %v3698, 0.5
        %v3774 = vmul.f32 %v3700, 0.5
        %v3775 = vmul.f32 %v3749, 0.5
        %v3776 = vmul.f32 %v3751, 0.5
        %v3777 = vmul.f32 %v3602, 0.5
        %v3778 = vmul.f32 %v3604, 0.5
        %v3779 = vmul.f32 %v3653, 0.5
        %v3780 = vmul.f32 %v3655, 0.5
        %v3781 = vmul.f32 %v3704, 0.5
        %v3782 = vmul.f32 %v3706, 0.5
        %v3783 = vmul.f32 %v3755, 0.5
        %v3784 = vmul.f32 %v3757, 0.5
        %v3785 = vmul.f32 %v3592, 0.70710677
        %v3786 = vmul.f32 %v3594, 0.70710677
        %v3787 = vmul.f32 %v3643, 0.70710677
        %v3788 = vmul.f32 %v3645, 0.70710677
        %v3789 = vmul.f32 %v3694, 0.70710677
        %v3790 = vmul.f32 %v3696, 0.70710677
        %v3791 = vmul.f32 %v3745, 0.70710677
        %v3792 = vmul.f32 %v3747, 0.70710677
        %v3793 = vmul.f32 %v3596, 0.70710677
        %v3794 = vmul.f32 %v3598, 0.70710677
        %v3795 = vmul.f32 %v3647, 0.70710677
        %v3796 = vmul.f32 %v3649, 0.70710677
        %v3797 = vmul.f32 %v3698, 0.70710677
        %v3798 = vmul.f32 %v3700, 0.70710677
        %v3799 = vmul.f32 %v3749, 0.70710677
        %v3800 = vmul.f32 %v3751, 0.70710677
        %v3801 = vmul.f32 %v3602, 0.70710677
        %v3802 = vmul.f32 %v3604, 0.70710677
        %v3803 = vmul.f32 %v3653, 0.70710677
        %v3804 = vmul.f32 %v3655, 0.70710677
        %v3805 = vmul.f32 %v3704, 0.70710677
        %v3806 = vmul.f32 %v3706, 0.70710677
        %v3807 = vmul.f32 %v3755, 0.70710677
        %v3808 = vmul.f32 %v3757, 0.70710677
        %v3809 = verf.f32.pop %v3785
        %v3810 = verf.f32.pop %v3786
        %v3811 = verf.f32.pop %v3787
        %v3812 = verf.f32.pop %v3788
        %v3813 = verf.f32.pop %v3789
        %v3814 = verf.f32.pop %v3790
        %v3815 = verf.f32.pop %v3791
        %v3816 = verf.f32.pop %v3792
        %v3817 = verf.f32.pop %v3793
        %v3818 = verf.f32.pop %v3794
        %v3819 = verf.f32.pop %v3795
        %v3820 = verf.f32.pop %v3796
        %v3821 = verf.f32.pop %v3797
        %v3822 = verf.f32.pop %v3798
        %v3823 = verf.f32.pop %v3799
        %v3824 = verf.f32.pop %v3800
        %v3825 = verf.f32.pop %v3801
        %v3826 = verf.f32.pop %v3802
        %v3827 = verf.f32.pop %v3803
        %v3828 = verf.f32.pop %v3804
        %v3829 = verf.f32.pop %v3805
        %v3830 = verf.f32.pop %v3806
        %v3831 = verf.f32.pop %v3807
        %v3832 = verf.f32.pop %v3808
        %v3833 = vadd.f32 %v3809, 1.0
        %v3834 = vadd.f32 %v3810, 1.0
        %v3835 = vadd.f32 %v3811, 1.0
        %v3836 = vadd.f32 %v3812, 1.0
        %v3837 = vadd.f32 %v3813, 1.0
        %v3838 = vadd.f32 %v3814, 1.0
        %v3839 = vadd.f32 %v3815, 1.0
        %v3840 = vadd.f32 %v3816, 1.0
        %v3841 = vadd.f32 %v3817, 1.0
        %v3842 = vadd.f32 %v3818, 1.0
        %v3843 = vadd.f32 %v3819, 1.0
        %v3844 = vadd.f32 %v3820, 1.0
        %v3845 = vadd.f32 %v3821, 1.0
        %v3846 = vadd.f32 %v3822, 1.0
        %v3847 = vadd.f32 %v3823, 1.0
        %v3848 = vadd.f32 %v3824, 1.0
        %v3849 = vadd.f32 %v3825, 1.0
        %v3850 = vadd.f32 %v3826, 1.0
        %v3851 = vadd.f32 %v3827, 1.0
        %v3852 = vadd.f32 %v3828, 1.0
        %v3853 = vadd.f32 %v3829, 1.0
        %v3854 = vadd.f32 %v3830, 1.0
        %v3855 = vadd.f32 %v3831, 1.0
        %v3856 = vadd.f32 %v3832, 1.0
        %v3857 = vmul.f32 %v3761, %v3833
        %v3858 = vmul.f32 %v3762, %v3834
        %v3859 = vmul.f32 %v3763, %v3835
        %v3860 = vmul.f32 %v3764, %v3836
        %v3861 = vmul.f32 %v3765, %v3837
        %v3862 = vmul.f32 %v3766, %v3838
        %v3863 = vmul.f32 %v3767, %v3839
        %v3864 = vmul.f32 %v3768, %v3840
        %v3865 = vmul.f32 %v3769, %v3841
        %v3866 = vmul.f32 %v3770, %v3842
        %v3867 = vmul.f32 %v3771, %v3843
        %v3868 = vmul.f32 %v3772, %v3844
        %v3869 = vmul.f32 %v3773, %v3845
        %v3870 = vmul.f32 %v3774, %v3846
        %v3871 = vmul.f32 %v3775, %v3847
        %v3872 = vmul.f32 %v3776, %v3848
        %v3873 = vmul.f32 %v3777, %v3849
        %v3874 = vmul.f32 %v3778, %v3850
        %v3875 = vmul.f32 %v3779, %v3851
        %v3876 = vmul.f32 %v3780, %v3852
        %v3877 = vmul.f32 %v3781, %v3853
        %v3878 = vmul.f32 %v3782, %v3854
        %v3879 = vmul.f32 %v3783, %v3855
        %v3880 = vmul.f32 %v3784, %v3856
        %v3881 = vpack.c.bf16 %v3865, %v3857
        %v3882 = vpack.c.bf16 %v3866, %v3858
        %v3883 = vpack.c.bf16 %v3867, %v3859
        %v3884 = vpack.c.bf16 %v3868, %v3860
        %v3885 = vpack.c.bf16 %v3869, %v3861
        %v3886 = vpack.c.bf16 %v3870, %v3862
        %v3887 = vpack.c.bf16 %v3871, %v3863
        %v3888 = vpack.c.bf16 %v3872, %v3864
        %v3889 = vpack.c.bf16 %v3873, %v3873
        %v3890 = vpack.c.bf16 %v3874, %v3874
        %v3891 = vpack.c.bf16 %v3875, %v3875
        %v3892 = vpack.c.bf16 %v3876, %v3876
        %v3893 = vpack.c.bf16 %v3877, %v3877
        %v3894 = vpack.c.bf16 %v3878, %v3878
        %v3895 = vpack.c.bf16 %v3879, %v3879
        %v3896 = vpack.c.bf16 %v3880, %v3880
        %v3897 = vld [vmem:[%s801] sm:$0xff]
        %v3898 = vld [vmem:[%s801 + $0x8] sm:$0xff]
        %v3899 = vld [vmem:[%s801 + $0x10] sm:$0xff]
        %v3900 = vld [vmem:[%s801 + $0x18] sm:$0xff]
        %v3901 = vld [vmem:[%s801 + $0x20] sm:$0xff]
        %v3902 = vld [vmem:[%s801 + $0x28] sm:$0xff]
        %v3903 = vld [vmem:[%s801 + $0x30] sm:$0xff]
        %v3904 = vld [vmem:[%s801 + $0x38] sm:$0xff]
        %v3905 = vld [vmem:[%s801 + $0x40] sm:$0xff]
        %v3906 = vld [vmem:[%s801 + $0x48] sm:$0xff]
        %v3907 = vld [vmem:[%s801 + $0x50] sm:$0xff]
        %v3908 = vld [vmem:[%s801 + $0x58] sm:$0xff]
        %v3909 = vld [vmem:[%s801 + $0x60] sm:$0xff]
        %v3910 = vld [vmem:[%s801 + $0x68] sm:$0xff]
        %v3911 = vld [vmem:[%s801 + $0x70] sm:$0xff]
        %v3912 = vld [vmem:[%s801 + $0x78] sm:$0xff]
        %v3913 = vld [vmem:[%s801 + $0x80] sm:$0xff]
        %v3914 = vld [vmem:[%s801 + $0x88] sm:$0xff]
        %v3915 = vld [vmem:[%s801 + $0x90] sm:$0xff]
        %v3916 = vld [vmem:[%s801 + $0x98] sm:$0xff]
        %v3917 = vld [vmem:[%s801 + $0xa0] sm:$0xff]
        %v3918 = vld [vmem:[%s801 + $0xa8] sm:$0xff]
        %v3919 = vld [vmem:[%s801 + $0xb0] sm:$0xff]
        %v3920 = vld [vmem:[%s801 + $0xb8] sm:$0xff]
        %v3921 = vld [vmem:[%s801 + $0xc0] sm:$0xff]
        %v3922 = vld [vmem:[%s801 + $0xc8] sm:$0xff]
        %v3923 = vld [vmem:[%s801 + $0xd0] sm:$0xff]
        %v3924 = vld [vmem:[%s801 + $0xd8] sm:$0xff]
        %v3925 = vld [vmem:[%s801 + $0xe0] sm:$0xff]
        %v3926 = vld [vmem:[%s801 + $0xe8] sm:$0xff]
        %v3927 = vld [vmem:[%s801 + $0xf0] sm:$0xff]
        %v3928 = vld [vmem:[%s801 + $0xf8] sm:$0xff]
        %v3929 = vld [vmem:[%s801 + $0x100] sm:$0xff]
        %v3930 = vld [vmem:[%s801 + $0x108] sm:$0xff]
        %v3931 = vld [vmem:[%s801 + $0x110] sm:$0xff]
        %v3932 = vld [vmem:[%s801 + $0x118] sm:$0xff]
        %v3933 = vld [vmem:[%s801 + $0x120] sm:$0xff]
        %v3934 = vld [vmem:[%s801 + $0x128] sm:$0xff]
        %v3935 = vld [vmem:[%s801 + $0x130] sm:$0xff]
        %v3936 = vld [vmem:[%s801 + $0x138] sm:$0xff]
        %v3937 = vld [vmem:[%s801 + $0x140] sm:$0xff]
        %v3938 = vld [vmem:[%s801 + $0x148] sm:$0xff]
        %v3939 = vld [vmem:[%s801 + $0x150] sm:$0xff]
        %v3940 = vld [vmem:[%s801 + $0x158] sm:$0xff]
        %v3941 = vld [vmem:[%s801 + $0x160] sm:$0xff]
        %v3942 = vld [vmem:[%s801 + $0x168] sm:$0xff]
        %v3943 = vld [vmem:[%s801 + $0x170] sm:$0xff]
        %v3944 = vld [vmem:[%s801 + $0x178] sm:$0xff]
        %v3945 = vld [vmem:[%s801 + $0x180] sm:$0xff]
        %v3946 = vld [vmem:[%s801 + $0x188] sm:$0xff]
        %v3947 = vld [vmem:[%s801 + $0x190] sm:$0xff]
        %v3948 = vld [vmem:[%s801 + $0x198] sm:$0xff]
        %v3949 = vld [vmem:[%s801 + $0x1a0] sm:$0xff]
        %v3950 = vld [vmem:[%s801 + $0x1a8] sm:$0xff]
        %v3951 = vld [vmem:[%s801 + $0x1b0] sm:$0xff]
        %v3952 = vld [vmem:[%s801 + $0x1b8] sm:$0xff]
        %v3953 = vld [vmem:[%s801 + $0x1c0] sm:$0xff]
        %v3954 = vld [vmem:[%s801 + $0x1c8] sm:$0xff]
        %v3955 = vld [vmem:[%s801 + $0x1d0] sm:$0xff]
        %v3956 = vld [vmem:[%s801 + $0x1d8] sm:$0xff]
        %v3957 = vld [vmem:[%s801 + $0x1e0] sm:$0xff]
        %v3958 = vld [vmem:[%s801 + $0x1e8] sm:$0xff]
        %v3959 = vld [vmem:[%s801 + $0x1f0] sm:$0xff]
        %v3960 = vld [vmem:[%s801 + $0x1f8] sm:$0xff]
        %v3961 = vld [vmem:[%s801 + $0x200] sm:$0xff]
        %v3962 = vld [vmem:[%s801 + $0x208] sm:$0xff]
        %v3963 = vld [vmem:[%s801 + $0x210] sm:$0xff]
        %v3964 = vld [vmem:[%s801 + $0x218] sm:$0xff]
        %v3965 = vld [vmem:[%s801 + $0x220] sm:$0xff]
        %v3966 = vld [vmem:[%s801 + $0x228] sm:$0xff]
        %v3967 = vld [vmem:[%s801 + $0x230] sm:$0xff]
        %v3968 = vld [vmem:[%s801 + $0x238] sm:$0xff]
        %v3969 = vld [vmem:[%s801 + $0x240] sm:$0xff]
        %v3970 = vld [vmem:[%s801 + $0x248] sm:$0xff]
        %v3971 = vld [vmem:[%s801 + $0x250] sm:$0xff]
        %v3972 = vld [vmem:[%s801 + $0x258] sm:$0xff]
        %v3973 = vld [vmem:[%s801 + $0x260] sm:$0xff]
        %v3974 = vld [vmem:[%s801 + $0x268] sm:$0xff]
        %v3975 = vld [vmem:[%s801 + $0x270] sm:$0xff]
        %v3976 = vld [vmem:[%s801 + $0x278] sm:$0xff]
        %v3977 = vld [vmem:[%s801 + $0x280] sm:$0xff]
        %v3978 = vld [vmem:[%s801 + $0x288] sm:$0xff]
        %v3979 = vld [vmem:[%s801 + $0x290] sm:$0xff]
        %v3980 = vld [vmem:[%s801 + $0x298] sm:$0xff]
        %v3981 = vld [vmem:[%s801 + $0x2a0] sm:$0xff]
        %v3982 = vld [vmem:[%s801 + $0x2a8] sm:$0xff]
        %v3983 = vld [vmem:[%s801 + $0x2b0] sm:$0xff]
        %v3984 = vld [vmem:[%s801 + $0x2b8] sm:$0xff]
        %v3985 = vld [vmem:[%s801 + $0x2c0] sm:$0xff]
        %v3986 = vld [vmem:[%s801 + $0x2c8] sm:$0xff]
        %v3987 = vld [vmem:[%s801 + $0x2d0] sm:$0xff]
        %v3988 = vld [vmem:[%s801 + $0x2d8] sm:$0xff]
        %v3989 = vld [vmem:[%s801 + $0x2e0] sm:$0xff]
        %v3990 = vld [vmem:[%s801 + $0x2e8] sm:$0xff]
        %v3991 = vld [vmem:[%s801 + $0x2f0] sm:$0xff]
        %v3992 = vld [vmem:[%s801 + $0x2f8] sm:$0xff]
        %v3993 = vld [vmem:[%s801 + $0x300] sm:$0xff]
        %v3994 = vld [vmem:[%s801 + $0x308] sm:$0xff]
        %v3995 = vld [vmem:[%s801 + $0x310] sm:$0xff]
        %v3996 = vld [vmem:[%s801 + $0x318] sm:$0xff]
        %v3997 = vld [vmem:[%s801 + $0x320] sm:$0xff]
        %v3998 = vld [vmem:[%s801 + $0x328] sm:$0xff]
        %v3999 = vld [vmem:[%s801 + $0x330] sm:$0xff]
        %v4000 = vld [vmem:[%s801 + $0x338] sm:$0xff]
        %v4001 = vld [vmem:[%s801 + $0x340] sm:$0xff]
        %v4002 = vld [vmem:[%s801 + $0x348] sm:$0xff]
        %v4003 = vld [vmem:[%s801 + $0x350] sm:$0xff]
        %v4004 = vld [vmem:[%s801 + $0x358] sm:$0xff]
        %v4005 = vld [vmem:[%s801 + $0x360] sm:$0xff]
        %v4006 = vld [vmem:[%s801 + $0x368] sm:$0xff]
        %v4007 = vld [vmem:[%s801 + $0x370] sm:$0xff]
        %v4008 = vld [vmem:[%s801 + $0x378] sm:$0xff]
        %v4009 = vld [vmem:[%s801 + $0x380] sm:$0xff]
        %v4010 = vld [vmem:[%s801 + $0x388] sm:$0xff]
        %v4011 = vld [vmem:[%s801 + $0x390] sm:$0xff]
        %v4012 = vld [vmem:[%s801 + $0x398] sm:$0xff]
        %v4013 = vld [vmem:[%s801 + $0x3a0] sm:$0xff]
        %v4014 = vld [vmem:[%s801 + $0x3a8] sm:$0xff]
        %v4015 = vld [vmem:[%s801 + $0x3b0] sm:$0xff]
        %v4016 = vld [vmem:[%s801 + $0x3b8] sm:$0xff]
        %v4017 = vld [vmem:[%s801 + $0x3c0] sm:$0xff]
        %v4018 = vld [vmem:[%s801 + $0x3c8] sm:$0xff]
        %v4019 = vld [vmem:[%s801 + $0x3d0] sm:$0xff]
        %v4020 = vld [vmem:[%s801 + $0x3d8] sm:$0xff]
        %v4021 = vld [vmem:[%s801 + $0x3e0] sm:$0xff]
        %v4022 = vld [vmem:[%s801 + $0x3e8] sm:$0xff]
        %v4023 = vld [vmem:[%s801 + $0x3f0] sm:$0xff]
        %v4024 = vld [vmem:[%s801 + $0x3f8] sm:$0xff]
        %v4025 = vld [vmem:[%s649] sm:$0x3]
        %v4027 = vlaneseq
        %v4028 = vshrl.u32 %v4027, 7
        %v4029 = vsub.s32 0, %v4028
        %v4030 = vrot.slane %v4025, %v4029
        %v4031 = vlaneseq
        %v4032 = vshrl.u32 %v4031, 7
        %v4033 = vsub.s32 1, %v4032
        %v4034 = vrot.slane %v4025, %v4033
        %v4165 = vunpack.c.l.b16 %v3897
        %v4166 = vunpack.c.h.b16 %v3897
        %v4167 = vunpack.c.l.b16 %v3898
        %v4168 = vunpack.c.h.b16 %v3898
        %v4169 = vunpack.c.l.b16 %v3899
        %v4170 = vunpack.c.h.b16 %v3899
        %v4171 = vunpack.c.l.b16 %v3900
        %v4172 = vunpack.c.h.b16 %v3900
        %v4173 = vunpack.c.l.b16 %v3901
        %v4174 = vunpack.c.h.b16 %v3901
        %v4175 = vunpack.c.l.b16 %v3902
        %v4176 = vunpack.c.h.b16 %v3902
        %v4177 = vunpack.c.l.b16 %v3903
        %v4178 = vunpack.c.h.b16 %v3903
        %v4179 = vunpack.c.l.b16 %v3904
        %v4180 = vunpack.c.h.b16 %v3904
        %v4181 = vunpack.c.l.b16 %v3905
        %v4182 = vunpack.c.h.b16 %v3905
        %v4183 = vunpack.c.l.b16 %v3906
        %v4184 = vunpack.c.h.b16 %v3906
        %v4185 = vunpack.c.l.b16 %v3907
        %v4186 = vunpack.c.h.b16 %v3907
        %v4187 = vunpack.c.l.b16 %v3908
        %v4188 = vunpack.c.h.b16 %v3908
        %v4189 = vunpack.c.l.b16 %v3909
        %v4190 = vunpack.c.h.b16 %v3909
        %v4191 = vunpack.c.l.b16 %v3910
        %v4192 = vunpack.c.h.b16 %v3910
        %v4193 = vunpack.c.l.b16 %v3911
        %v4194 = vunpack.c.h.b16 %v3911
        %v4195 = vunpack.c.l.b16 %v3912
        %v4196 = vunpack.c.h.b16 %v3912
        %v4197 = vunpack.c.l.b16 %v3913
        %v4198 = vunpack.c.h.b16 %v3913
        %v4199 = vunpack.c.l.b16 %v3914
        %v4200 = vunpack.c.h.b16 %v3914
        %v4201 = vunpack.c.l.b16 %v3915
        %v4202 = vunpack.c.h.b16 %v3915
        %v4203 = vunpack.c.l.b16 %v3916
        %v4204 = vunpack.c.h.b16 %v3916
        %v4205 = vunpack.c.l.b16 %v3917
        %v4206 = vunpack.c.h.b16 %v3917
        %v4207 = vunpack.c.l.b16 %v3918
        %v4208 = vunpack.c.h.b16 %v3918
        %v4209 = vunpack.c.l.b16 %v3919
        %v4210 = vunpack.c.h.b16 %v3919
        %v4211 = vunpack.c.l.b16 %v3920
        %v4212 = vunpack.c.h.b16 %v3920
        %v4213 = vunpack.c.l.b16 %v3921
        %v4214 = vunpack.c.h.b16 %v3921
        %v4215 = vunpack.c.l.b16 %v3922
        %v4216 = vunpack.c.h.b16 %v3922
        %v4217 = vunpack.c.l.b16 %v3923
        %v4218 = vunpack.c.h.b16 %v3923
        %v4219 = vunpack.c.l.b16 %v3924
        %v4220 = vunpack.c.h.b16 %v3924
        %v4221 = vunpack.c.l.b16 %v3925
        %v4222 = vunpack.c.h.b16 %v3925
        %v4223 = vunpack.c.l.b16 %v3926
        %v4224 = vunpack.c.h.b16 %v3926
        %v4225 = vunpack.c.l.b16 %v3927
        %v4226 = vunpack.c.h.b16 %v3927
        %v4227 = vunpack.c.l.b16 %v3928
        %v4228 = vunpack.c.h.b16 %v3928
        %v4229 = vunpack.c.l.b16 %v3929
        %v4230 = vunpack.c.h.b16 %v3929
        %v4231 = vunpack.c.l.b16 %v3930
        %v4232 = vunpack.c.h.b16 %v3930
        %v4233 = vunpack.c.l.b16 %v3931
        %v4234 = vunpack.c.h.b16 %v3931
        %v4235 = vunpack.c.l.b16 %v3932
        %v4236 = vunpack.c.h.b16 %v3932
        %v4237 = vunpack.c.l.b16 %v3933
        %v4238 = vunpack.c.h.b16 %v3933
        %v4239 = vunpack.c.l.b16 %v3934
        %v4240 = vunpack.c.h.b16 %v3934
        %v4241 = vunpack.c.l.b16 %v3935
        %v4242 = vunpack.c.h.b16 %v3935
        %v4243 = vunpack.c.l.b16 %v3936
        %v4244 = vunpack.c.h.b16 %v3936
        %v4245 = vunpack.c.l.b16 %v3937
        %v4246 = vunpack.c.h.b16 %v3937
        %v4247 = vunpack.c.l.b16 %v3938
        %v4248 = vunpack.c.h.b16 %v3938
        %v4249 = vunpack.c.l.b16 %v3939
        %v4250 = vunpack.c.h.b16 %v3939
        %v4251 = vunpack.c.l.b16 %v3940
        %v4252 = vunpack.c.h.b16 %v3940
        %v4253 = vunpack.c.l.b16 %v3941
        %v4254 = vunpack.c.h.b16 %v3941
        %v4255 = vunpack.c.l.b16 %v3942
        %v4256 = vunpack.c.h.b16 %v3942
        %v4257 = vunpack.c.l.b16 %v3943
        %v4258 = vunpack.c.h.b16 %v3943
        %v4259 = vunpack.c.l.b16 %v3944
        %v4260 = vunpack.c.h.b16 %v3944
        %v4261 = vunpack.c.l.b16 %v3945
        %v4262 = vunpack.c.h.b16 %v3945
        %v4263 = vunpack.c.l.b16 %v3946
        %v4264 = vunpack.c.h.b16 %v3946
        %v4265 = vunpack.c.l.b16 %v3947
        %v4266 = vunpack.c.h.b16 %v3947
        %v4267 = vunpack.c.l.b16 %v3948
        %v4268 = vunpack.c.h.b16 %v3948
        %v4269 = vunpack.c.l.b16 %v3949
        %v4270 = vunpack.c.h.b16 %v3949
        %v4271 = vunpack.c.l.b16 %v3950
        %v4272 = vunpack.c.h.b16 %v3950
        %v4273 = vunpack.c.l.b16 %v3951
        %v4274 = vunpack.c.h.b16 %v3951
        %v4275 = vunpack.c.l.b16 %v3952
        %v4276 = vunpack.c.h.b16 %v3952
        %v4277 = vunpack.c.l.b16 %v3953
        %v4278 = vunpack.c.h.b16 %v3953
        %v4279 = vunpack.c.l.b16 %v3954
        %v4280 = vunpack.c.h.b16 %v3954
        %v4281 = vunpack.c.l.b16 %v3955
        %v4282 = vunpack.c.h.b16 %v3955
        %v4283 = vunpack.c.l.b16 %v3956
        %v4284 = vunpack.c.h.b16 %v3956
        %v4285 = vunpack.c.l.b16 %v3957
        %v4286 = vunpack.c.h.b16 %v3957
        %v4287 = vunpack.c.l.b16 %v3958
        %v4288 = vunpack.c.h.b16 %v3958
        %v4289 = vunpack.c.l.b16 %v3959
        %v4290 = vunpack.c.h.b16 %v3959
        %v4291 = vunpack.c.l.b16 %v3960
        %v4292 = vunpack.c.h.b16 %v3960
        %v4293 = vunpack.c.l.b16 %v3961
        %v4294 = vunpack.c.h.b16 %v3961
        %v4295 = vunpack.c.l.b16 %v3962
        %v4296 = vunpack.c.h.b16 %v3962
        %v4297 = vunpack.c.l.b16 %v3963
        %v4298 = vunpack.c.h.b16 %v3963
        %v4299 = vunpack.c.l.b16 %v3964
        %v4300 = vunpack.c.h.b16 %v3964
        %v4301 = vunpack.c.l.b16 %v3965
        %v4302 = vunpack.c.h.b16 %v3965
        %v4303 = vunpack.c.l.b16 %v3966
        %v4304 = vunpack.c.h.b16 %v3966
        %v4305 = vunpack.c.l.b16 %v3967
        %v4306 = vunpack.c.h.b16 %v3967
        %v4307 = vunpack.c.l.b16 %v3968
        %v4308 = vunpack.c.h.b16 %v3968
        %v4309 = vunpack.c.l.b16 %v3969
        %v4310 = vunpack.c.h.b16 %v3969
        %v4311 = vunpack.c.l.b16 %v3970
        %v4312 = vunpack.c.h.b16 %v3970
        %v4313 = vunpack.c.l.b16 %v3971
        %v4314 = vunpack.c.h.b16 %v3971
        %v4315 = vunpack.c.l.b16 %v3972
        %v4316 = vunpack.c.h.b16 %v3972
        %v4317 = vunpack.c.l.b16 %v3973
        %v4318 = vunpack.c.h.b16 %v3973
        %v4319 = vunpack.c.l.b16 %v3974
        %v4320 = vunpack.c.h.b16 %v3974
        %v4321 = vunpack.c.l.b16 %v3975
        %v4322 = vunpack.c.h.b16 %v3975
        %v4323 = vunpack.c.l.b16 %v3976
        %v4324 = vunpack.c.h.b16 %v3976
        %v4325 = vunpack.c.l.b16 %v3977
        %v4326 = vunpack.c.h.b16 %v3977
        %v4327 = vunpack.c.l.b16 %v3978
        %v4328 = vunpack.c.h.b16 %v3978
        %v4329 = vunpack.c.l.b16 %v3979
        %v4330 = vunpack.c.h.b16 %v3979
        %v4331 = vunpack.c.l.b16 %v3980
        %v4332 = vunpack.c.h.b16 %v3980
        %v4333 = vunpack.c.l.b16 %v3981
        %v4334 = vunpack.c.h.b16 %v3981
        %v4335 = vunpack.c.l.b16 %v3982
        %v4336 = vunpack.c.h.b16 %v3982
        %v4337 = vunpack.c.l.b16 %v3983
        %v4338 = vunpack.c.h.b16 %v3983
        %v4339 = vunpack.c.l.b16 %v3984
        %v4340 = vunpack.c.h.b16 %v3984
        %v4341 = vunpack.c.l.b16 %v3985
        %v4342 = vunpack.c.h.b16 %v3985
        %v4343 = vunpack.c.l.b16 %v3986
        %v4344 = vunpack.c.h.b16 %v3986
        %v4345 = vunpack.c.l.b16 %v3987
        %v4346 = vunpack.c.h.b16 %v3987
        %v4347 = vunpack.c.l.b16 %v3988
        %v4348 = vunpack.c.h.b16 %v3988
        %v4349 = vunpack.c.l.b16 %v3989
        %v4350 = vunpack.c.h.b16 %v3989
        %v4351 = vunpack.c.l.b16 %v3990
        %v4352 = vunpack.c.h.b16 %v3990
        %v4353 = vunpack.c.l.b16 %v3991
        %v4354 = vunpack.c.h.b16 %v3991
        %v4355 = vunpack.c.l.b16 %v3992
        %v4356 = vunpack.c.h.b16 %v3992
        %v4357 = vunpack.c.l.b16 %v3993
        %v4358 = vunpack.c.h.b16 %v3993
        %v4359 = vunpack.c.l.b16 %v3994
        %v4360 = vunpack.c.h.b16 %v3994
        %v4361 = vunpack.c.l.b16 %v3995
        %v4362 = vunpack.c.h.b16 %v3995
        %v4363 = vunpack.c.l.b16 %v3996
        %v4364 = vunpack.c.h.b16 %v3996
        %v4365 = vunpack.c.l.b16 %v3997
        %v4366 = vunpack.c.h.b16 %v3997
        %v4367 = vunpack.c.l.b16 %v3998
        %v4368 = vunpack.c.h.b16 %v3998
        %v4369 = vunpack.c.l.b16 %v3999
        %v4370 = vunpack.c.h.b16 %v3999
        %v4371 = vunpack.c.l.b16 %v4000
        %v4372 = vunpack.c.h.b16 %v4000
        %v4373 = vunpack.c.l.b16 %v4001
        %v4374 = vunpack.c.h.b16 %v4001
        %v4375 = vunpack.c.l.b16 %v4002
        %v4376 = vunpack.c.h.b16 %v4002
        %v4377 = vunpack.c.l.b16 %v4003
        %v4378 = vunpack.c.h.b16 %v4003
        %v4379 = vunpack.c.l.b16 %v4004
        %v4380 = vunpack.c.h.b16 %v4004
        %v4381 = vunpack.c.l.b16 %v4005
        %v4382 = vunpack.c.h.b16 %v4005
        %v4383 = vunpack.c.l.b16 %v4006
        %v4384 = vunpack.c.h.b16 %v4006
        %v4385 = vunpack.c.l.b16 %v4007
        %v4386 = vunpack.c.h.b16 %v4007
        %v4387 = vunpack.c.l.b16 %v4008
        %v4388 = vunpack.c.h.b16 %v4008
        %v4389 = vunpack.c.l.b16 %v4009
        %v4390 = vunpack.c.h.b16 %v4009
        %v4391 = vunpack.c.l.b16 %v4010
        %v4392 = vunpack.c.h.b16 %v4010
        %v4393 = vunpack.c.l.b16 %v4011
        %v4394 = vunpack.c.h.b16 %v4011
        %v4395 = vunpack.c.l.b16 %v4012
        %v4396 = vunpack.c.h.b16 %v4012
        %v4397 = vunpack.c.l.b16 %v4013
        %v4398 = vunpack.c.h.b16 %v4013
        %v4399 = vunpack.c.l.b16 %v4014
        %v4400 = vunpack.c.h.b16 %v4014
        %v4401 = vunpack.c.l.b16 %v4015
        %v4402 = vunpack.c.h.b16 %v4015
        %v4403 = vunpack.c.l.b16 %v4016
        %v4404 = vunpack.c.h.b16 %v4016
        %v4405 = vunpack.c.l.b16 %v4017
        %v4406 = vunpack.c.h.b16 %v4017
        %v4407 = vunpack.c.l.b16 %v4018
        %v4408 = vunpack.c.h.b16 %v4018
        %v4409 = vunpack.c.l.b16 %v4019
        %v4410 = vunpack.c.h.b16 %v4019
        %v4411 = vunpack.c.l.b16 %v4020
        %v4412 = vunpack.c.h.b16 %v4020
        %v4413 = vunpack.c.l.b16 %v4021
        %v4414 = vunpack.c.h.b16 %v4021
        %v4415 = vunpack.c.l.b16 %v4022
        %v4416 = vunpack.c.h.b16 %v4022
        %v4417 = vunpack.c.l.b16 %v4023
        %v4418 = vunpack.c.h.b16 %v4023
        %v4419 = vunpack.c.l.b16 %v4024
        %v4420 = vunpack.c.h.b16 %v4024
        %v4421 = vpack.c.b16 %v4167, %v4165
        %v4422 = vpack.c.b16 %v4168, %v4166
        %v4423 = vpack.c.b16 %v4171, %v4169
        %v4424 = vpack.c.b16 %v4172, %v4170
        %v4425 = vpack.c.b16 %v4175, %v4173
        %v4426 = vpack.c.b16 %v4176, %v4174
        %v4427 = vpack.c.b16 %v4179, %v4177
        %v4428 = vpack.c.b16 %v4180, %v4178
        %v4429 = vpack.c.b16 %v4183, %v4181
        %v4430 = vpack.c.b16 %v4184, %v4182
        %v4431 = vpack.c.b16 %v4187, %v4185
        %v4432 = vpack.c.b16 %v4188, %v4186
        %v4433 = vpack.c.b16 %v4191, %v4189
        %v4434 = vpack.c.b16 %v4192, %v4190
        %v4435 = vpack.c.b16 %v4195, %v4193
        %v4436 = vpack.c.b16 %v4196, %v4194
        %v4437 = vpack.c.b16 %v4199, %v4197
        %v4438 = vpack.c.b16 %v4200, %v4198
        %v4439 = vpack.c.b16 %v4203, %v4201
        %v4440 = vpack.c.b16 %v4204, %v4202
        %v4441 = vpack.c.b16 %v4207, %v4205
        %v4442 = vpack.c.b16 %v4208, %v4206
        %v4443 = vpack.c.b16 %v4211, %v4209
        %v4444 = vpack.c.b16 %v4212, %v4210
        %v4445 = vpack.c.b16 %v4215, %v4213
        %v4446 = vpack.c.b16 %v4216, %v4214
        %v4447 = vpack.c.b16 %v4219, %v4217
        %v4448 = vpack.c.b16 %v4220, %v4218
        %v4449 = vpack.c.b16 %v4223, %v4221
        %v4450 = vpack.c.b16 %v4224, %v4222
        %v4451 = vpack.c.b16 %v4227, %v4225
        %v4452 = vpack.c.b16 %v4228, %v4226
        %v4453 = vpack.c.b16 %v4231, %v4229
        %v4454 = vpack.c.b16 %v4232, %v4230
        %v4455 = vpack.c.b16 %v4235, %v4233
        %v4456 = vpack.c.b16 %v4236, %v4234
        %v4457 = vpack.c.b16 %v4239, %v4237
        %v4458 = vpack.c.b16 %v4240, %v4238
        %v4459 = vpack.c.b16 %v4243, %v4241
        %v4460 = vpack.c.b16 %v4244, %v4242
        %v4461 = vpack.c.b16 %v4247, %v4245
        %v4462 = vpack.c.b16 %v4248, %v4246
        %v4463 = vpack.c.b16 %v4251, %v4249
        %v4464 = vpack.c.b16 %v4252, %v4250
        %v4465 = vpack.c.b16 %v4255, %v4253
        %v4466 = vpack.c.b16 %v4256, %v4254
        %v4467 = vpack.c.b16 %v4259, %v4257
        %v4468 = vpack.c.b16 %v4260, %v4258
        %v4469 = vpack.c.b16 %v4263, %v4261
        %v4470 = vpack.c.b16 %v4264, %v4262
        %v4471 = vpack.c.b16 %v4267, %v4265
        %v4472 = vpack.c.b16 %v4268, %v4266
        %v4473 = vpack.c.b16 %v4271, %v4269
        %v4474 = vpack.c.b16 %v4272, %v4270
        %v4475 = vpack.c.b16 %v4275, %v4273
        %v4476 = vpack.c.b16 %v4276, %v4274
        %v4477 = vpack.c.b16 %v4279, %v4277
        %v4478 = vpack.c.b16 %v4280, %v4278
        %v4479 = vpack.c.b16 %v4283, %v4281
        %v4480 = vpack.c.b16 %v4284, %v4282
        %v4481 = vpack.c.b16 %v4287, %v4285
        %v4482 = vpack.c.b16 %v4288, %v4286
        %v4483 = vpack.c.b16 %v4291, %v4289
        %v4484 = vpack.c.b16 %v4292, %v4290
        %v4485 = vpack.c.b16 %v4295, %v4293
        %v4486 = vpack.c.b16 %v4296, %v4294
        %v4487 = vpack.c.b16 %v4299, %v4297
        %v4488 = vpack.c.b16 %v4300, %v4298
        %v4489 = vpack.c.b16 %v4303, %v4301
        %v4490 = vpack.c.b16 %v4304, %v4302
        %v4491 = vpack.c.b16 %v4307, %v4305
        %v4492 = vpack.c.b16 %v4308, %v4306
        %v4493 = vpack.c.b16 %v4311, %v4309
        %v4494 = vpack.c.b16 %v4312, %v4310
        %v4495 = vpack.c.b16 %v4315, %v4313
        %v4496 = vpack.c.b16 %v4316, %v4314
        %v4497 = vpack.c.b16 %v4319, %v4317
        %v4498 = vpack.c.b16 %v4320, %v4318
        %v4499 = vpack.c.b16 %v4323, %v4321
        %v4500 = vpack.c.b16 %v4324, %v4322
        %v4501 = vpack.c.b16 %v4327, %v4325
        %v4502 = vpack.c.b16 %v4328, %v4326
        %v4503 = vpack.c.b16 %v4331, %v4329
        %v4504 = vpack.c.b16 %v4332, %v4330
        %v4505 = vpack.c.b16 %v4335, %v4333
        %v4506 = vpack.c.b16 %v4336, %v4334
        %v4507 = vpack.c.b16 %v4339, %v4337
        %v4508 = vpack.c.b16 %v4340, %v4338
        %v4509 = vpack.c.b16 %v4343, %v4341
        %v4510 = vpack.c.b16 %v4344, %v4342
        %v4511 = vpack.c.b16 %v4347, %v4345
        %v4512 = vpack.c.b16 %v4348, %v4346
        %v4513 = vpack.c.b16 %v4351, %v4349
        %v4514 = vpack.c.b16 %v4352, %v4350
        %v4515 = vpack.c.b16 %v4355, %v4353
        %v4516 = vpack.c.b16 %v4356, %v4354
        %v4517 = vpack.c.b16 %v4359, %v4357
        %v4518 = vpack.c.b16 %v4360, %v4358
        %v4519 = vpack.c.b16 %v4363, %v4361
        %v4520 = vpack.c.b16 %v4364, %v4362
        %v4521 = vpack.c.b16 %v4367, %v4365
        %v4522 = vpack.c.b16 %v4368, %v4366
        %v4523 = vpack.c.b16 %v4371, %v4369
        %v4524 = vpack.c.b16 %v4372, %v4370
        %v4525 = vpack.c.b16 %v4375, %v4373
        %v4526 = vpack.c.b16 %v4376, %v4374
        %v4527 = vpack.c.b16 %v4379, %v4377
        %v4528 = vpack.c.b16 %v4380, %v4378
        %v4529 = vpack.c.b16 %v4383, %v4381
        %v4530 = vpack.c.b16 %v4384, %v4382
        %v4531 = vpack.c.b16 %v4387, %v4385
        %v4532 = vpack.c.b16 %v4388, %v4386
        %v4533 = vpack.c.b16 %v4391, %v4389
        %v4534 = vpack.c.b16 %v4392, %v4390
        %v4535 = vpack.c.b16 %v4395, %v4393
        %v4536 = vpack.c.b16 %v4396, %v4394
        %v4537 = vpack.c.b16 %v4399, %v4397
        %v4538 = vpack.c.b16 %v4400, %v4398
        %v4539 = vpack.c.b16 %v4403, %v4401
        %v4540 = vpack.c.b16 %v4404, %v4402
        %v4541 = vpack.c.b16 %v4407, %v4405
        %v4542 = vpack.c.b16 %v4408, %v4406
        %v4543 = vpack.c.b16 %v4411, %v4409
        %v4544 = vpack.c.b16 %v4412, %v4410
        %v4545 = vpack.c.b16 %v4415, %v4413
        %v4546 = vpack.c.b16 %v4416, %v4414
        %v4547 = vpack.c.b16 %v4419, %v4417
        %v4548 = vpack.c.b16 %v4420, %v4418
        %4677 = vmatprep.subr.bf16.mxu0 %v4436
        %4678 = vmatpush1.bf16.msra.mxu0 %v4435
        %4679 = vmatprep.subr.bf16.mxu0 %v4434
        %4680 = vmatpush1.bf16.msra.mxu0 %v4433
        %4681 = vmatprep.subr.bf16.mxu0 %v4432
        %4682 = vmatpush1.bf16.msra.mxu0 %v4431
        %4683 = vmatprep.subr.bf16.mxu0 %v4430
        %4684 = vmatpush1.bf16.msra.mxu0 %v4429
        %4685 = vmatprep.subr.bf16.mxu0 %v4428
        %4686 = vmatpush1.bf16.msra.mxu0 %v4427
        %4687 = vmatprep.subr.bf16.mxu0 %v4426
        %4688 = vmatpush1.bf16.msra.mxu0 %v4425
        %4689 = vmatprep.subr.bf16.mxu0 %v4424
        %4690 = vmatpush1.bf16.msra.mxu0 %v4423
        %4691 = vmatprep.subr.bf16.mxu0 %v4422
        %4692 = vmatpush1.bf16.msra.mxu0 %v4421
        %4693 = vmatprep.subr.bf16.mxu0 %v4452
        %4694 = vmatpush2.bf16.msra.mxu0 %v4451
        %4695 = vmatprep.subr.bf16.mxu0 %v4450
        %4696 = vmatpush2.bf16.msra.mxu0 %v4449
        %4697 = vmatprep.subr.bf16.mxu0 %v4448
        %4698 = vmatpush2.bf16.msra.mxu0 %v4447
        %4699 = vmatprep.subr.bf16.mxu0 %v4446
        %4700 = vmatpush2.bf16.msra.mxu0 %v4445
        %4701 = vmatprep.subr.bf16.mxu0 %v4444
        %4702 = vmatpush2.bf16.msra.mxu0 %v4443
        %4703 = vmatprep.subr.bf16.mxu0 %v4442
        %4704 = vmatpush2.bf16.msra.mxu0 %v4441
        %4705 = vmatprep.subr.bf16.mxu0 %v4440
        %4706 = vmatpush2.bf16.msra.mxu0 %v4439
        %4707 = vmatprep.subr.bf16.mxu0 %v4438
        %4708 = vmatpush2.bf16.msra.mxu0 %v4437
        %4709 = vmatprep.mubr.bf16.mxu0 %v3882
        %4710 = vmatmul.mubr.bf16.gmra.mxu0 %v3881
        %v4711 = vpop.f32.mrf.mxu0
        %v4712 = vadd.f32 %v4030, %v4711
        %v4713 = vpop.f32.mrf.mxu0
        %v4714 = vadd.f32 %v4034, %v4713
        %v4715 = vpop.f32.mrf.mxu0
        %v4716 = vadd.f32 %v4030, %v4715
        %v4717 = vpop.f32.mrf.mxu0
        %v4718 = vadd.f32 %v4034, %v4717
        %4719 = vmatprep.mubr.bf16.mxu0 %v3890
        %4720 = vmatmul.mubr.bf16.gmra.mxu0 %v3889
        %v4721 = vpop.f32.mrf.mxu0
        %v4722 = vadd.f32 %v4030, %v4721
        %v4723 = vpop.f32.mrf.mxu0
        %v4724 = vadd.f32 %v4034, %v4723
        %v4725 = vpop.f32.mrf.mxu0
        %v4726 = vpop.f32.mrf.mxu0
        %4727 = vdwg.mxu0
        %4728 = vmatprep.subr.bf16.mxu0 %v4468
        %4729 = vmatpush1.bf16.msra.mxu0 %v4467
        %4730 = vmatprep.subr.bf16.mxu0 %v4466
        %4731 = vmatpush1.bf16.msra.mxu0 %v4465
        %4732 = vmatprep.subr.bf16.mxu0 %v4464
        %4733 = vmatpush1.bf16.msra.mxu0 %v4463
        %4734 = vmatprep.subr.bf16.mxu0 %v4462
        %4735 = vmatpush1.bf16.msra.mxu0 %v4461
        %4736 = vmatprep.subr.bf16.mxu0 %v4460
        %4737 = vmatpush1.bf16.msra.mxu0 %v4459
        %4738 = vmatprep.subr.bf16.mxu0 %v4458
        %4739 = vmatpush1.bf16.msra.mxu0 %v4457
        %4740 = vmatprep.subr.bf16.mxu0 %v4456
        %4741 = vmatpush1.bf16.msra.mxu0 %v4455
        %4742 = vmatprep.subr.bf16.mxu0 %v4454
        %4743 = vmatpush1.bf16.msra.mxu0 %v4453
        %4744 = vmatprep.subr.bf16.mxu0 %v4484
        %4745 = vmatpush2.bf16.msra.mxu0 %v4483
        %4746 = vmatprep.subr.bf16.mxu0 %v4482
        %4747 = vmatpush2.bf16.msra.mxu0 %v4481
        %4748 = vmatprep.subr.bf16.mxu0 %v4480
        %4749 = vmatpush2.bf16.msra.mxu0 %v4479
        %4750 = vmatprep.subr.bf16.mxu0 %v4478
        %4751 = vmatpush2.bf16.msra.mxu0 %v4477
        %4752 = vmatprep.subr.bf16.mxu0 %v4476
        %4753 = vmatpush2.bf16.msra.mxu0 %v4475
        %4754 = vmatprep.subr.bf16.mxu0 %v4474
        %4755 = vmatpush2.bf16.msra.mxu0 %v4473
        %4756 = vmatprep.subr.bf16.mxu0 %v4472
        %4757 = vmatpush2.bf16.msra.mxu0 %v4471
        %4758 = vmatprep.subr.bf16.mxu0 %v4470
        %4759 = vmatpush2.bf16.msra.mxu0 %v4469
        %4760 = vmatprep.mubr.bf16.mxu0 %v3884
        %4761 = vmatmul.mubr.bf16.gmra.mxu0 %v3883
        %v4762 = vpop.f32.mrf.mxu0
        %v4763 = vadd.f32 %v4712, %v4762
        %v4764 = vpop.f32.mrf.mxu0
        %v4765 = vadd.f32 %v4714, %v4764
        %v4766 = vpop.f32.mrf.mxu0
        %v4767 = vadd.f32 %v4716, %v4766
        %v4768 = vpop.f32.mrf.mxu0
        %v4769 = vadd.f32 %v4718, %v4768
        %4770 = vmatprep.mubr.bf16.mxu0 %v3892
        %4771 = vmatmul.mubr.bf16.gmra.mxu0 %v3891
        %v4772 = vpop.f32.mrf.mxu0
        %v4773 = vadd.f32 %v4722, %v4772
        %v4774 = vpop.f32.mrf.mxu0
        %v4775 = vadd.f32 %v4724, %v4774
        %v4776 = vpop.f32.mrf.mxu0
        %v4777 = vpop.f32.mrf.mxu0
        %4778 = vdwg.mxu0
        %4779 = vmatprep.subr.bf16.mxu0 %v4500
        %4780 = vmatpush1.bf16.msra.mxu0 %v4499
        %4781 = vmatprep.subr.bf16.mxu0 %v4498
        %4782 = vmatpush1.bf16.msra.mxu0 %v4497
        %4783 = vmatprep.subr.bf16.mxu0 %v4496
        %4784 = vmatpush1.bf16.msra.mxu0 %v4495
        %4785 = vmatprep.subr.bf16.mxu0 %v4494
        %4786 = vmatpush1.bf16.msra.mxu0 %v4493
        %4787 = vmatprep.subr.bf16.mxu0 %v4492
        %4788 = vmatpush1.bf16.msra.mxu0 %v4491
        %4789 = vmatprep.subr.bf16.mxu0 %v4490
        %4790 = vmatpush1.bf16.msra.mxu0 %v4489
        %4791 = vmatprep.subr.bf16.mxu0 %v4488
        %4792 = vmatpush1.bf16.msra.mxu0 %v4487
        %4793 = vmatprep.subr.bf16.mxu0 %v4486
        %4794 = vmatpush1.bf16.msra.mxu0 %v4485
        %4795 = vmatprep.subr.bf16.mxu0 %v4516
        %4796 = vmatpush2.bf16.msra.mxu0 %v4515
        %4797 = vmatprep.subr.bf16.mxu0 %v4514
        %4798 = vmatpush2.bf16.msra.mxu0 %v4513
        %4799 = vmatprep.subr.bf16.mxu0 %v4512
        %4800 = vmatpush2.bf16.msra.mxu0 %v4511
        %4801 = vmatprep.subr.bf16.mxu0 %v4510
        %4802 = vmatpush2.bf16.msra.mxu0 %v4509
        %4803 = vmatprep.subr.bf16.mxu0 %v4508
        %4804 = vmatpush2.bf16.msra.mxu0 %v4507
        %4805 = vmatprep.subr.bf16.mxu0 %v4506
        %4806 = vmatpush2.bf16.msra.mxu0 %v4505
        %4807 = vmatprep.subr.bf16.mxu0 %v4504
        %4808 = vmatpush2.bf16.msra.mxu0 %v4503
        %4809 = vmatprep.subr.bf16.mxu0 %v4502
        %4810 = vmatpush2.bf16.msra.mxu0 %v4501
        %4811 = vmatprep.mubr.bf16.mxu0 %v3886
        %4812 = vmatmul.mubr.bf16.gmra.mxu0 %v3885
        %v4813 = vpop.f32.mrf.mxu0
        %v4814 = vadd.f32 %v4763, %v4813
        %v4815 = vpop.f32.mrf.mxu0
        %v4816 = vadd.f32 %v4765, %v4815
        %v4817 = vpop.f32.mrf.mxu0
        %v4818 = vadd.f32 %v4767, %v4817
        %v4819 = vpop.f32.mrf.mxu0
        %v4820 = vadd.f32 %v4769, %v4819
        %4821 = vmatprep.mubr.bf16.mxu0 %v3894
        %4822 = vmatmul.mubr.bf16.gmra.mxu0 %v3893
        %v4823 = vpop.f32.mrf.mxu0
        %v4824 = vadd.f32 %v4773, %v4823
        %v4825 = vpop.f32.mrf.mxu0
        %v4826 = vadd.f32 %v4775, %v4825
        %v4827 = vpop.f32.mrf.mxu0
        %v4828 = vpop.f32.mrf.mxu0
        %4829 = vdwg.mxu0
        %4830 = vmatprep.subr.bf16.mxu0 %v4532
        %4831 = vmatpush1.bf16.msra.mxu0 %v4531
        %4832 = vmatprep.subr.bf16.mxu0 %v4530
        %4833 = vmatpush1.bf16.msra.mxu0 %v4529
        %4834 = vmatprep.subr.bf16.mxu0 %v4528
        %4835 = vmatpush1.bf16.msra.mxu0 %v4527
        %4836 = vmatprep.subr.bf16.mxu0 %v4526
        %4837 = vmatpush1.bf16.msra.mxu0 %v4525
        %4838 = vmatprep.subr.bf16.mxu0 %v4524
        %4839 = vmatpush1.bf16.msra.mxu0 %v4523
        %4840 = vmatprep.subr.bf16.mxu0 %v4522
        %4841 = vmatpush1.bf16.msra.mxu0 %v4521
        %4842 = vmatprep.subr.bf16.mxu0 %v4520
        %4843 = vmatpush1.bf16.msra.mxu0 %v4519
        %4844 = vmatprep.subr.bf16.mxu0 %v4518
        %4845 = vmatpush1.bf16.msra.mxu0 %v4517
        %4846 = vmatprep.subr.bf16.mxu0 %v4548
        %4847 = vmatpush2.bf16.msra.mxu0 %v4547
        %4848 = vmatprep.subr.bf16.mxu0 %v4546
        %4849 = vmatpush2.bf16.msra.mxu0 %v4545
        %4850 = vmatprep.subr.bf16.mxu0 %v4544
        %4851 = vmatpush2.bf16.msra.mxu0 %v4543
        %4852 = vmatprep.subr.bf16.mxu0 %v4542
        %4853 = vmatpush2.bf16.msra.mxu0 %v4541
        %4854 = vmatprep.subr.bf16.mxu0 %v4540
        %4855 = vmatpush2.bf16.msra.mxu0 %v4539
        %4856 = vmatprep.subr.bf16.mxu0 %v4538
        %4857 = vmatpush2.bf16.msra.mxu0 %v4537
        %4858 = vmatprep.subr.bf16.mxu0 %v4536
        %4859 = vmatpush2.bf16.msra.mxu0 %v4535
        %4860 = vmatprep.subr.bf16.mxu0 %v4534
        %4861 = vmatpush2.bf16.msra.mxu0 %v4533
        %4862 = vmatprep.mubr.bf16.mxu0 %v3888
        %4863 = vmatmul.mubr.bf16.gmra.mxu0 %v3887
        %v4864 = vpop.f32.mrf.mxu0
        %v4865 = vadd.f32 %v4814, %v4864
        %v4866 = vpop.f32.mrf.mxu0
        %v4867 = vadd.f32 %v4816, %v4866
        %v4868 = vpop.f32.mrf.mxu0
        %v4869 = vadd.f32 %v4818, %v4868
        %v4870 = vpop.f32.mrf.mxu0
        %v4871 = vadd.f32 %v4820, %v4870
        %4872 = vmatprep.mubr.bf16.mxu0 %v3896
        %4873 = vmatmul.mubr.bf16.gmra.mxu0 %v3895
        %v4874 = vpop.f32.mrf.mxu0
        %v4875 = vadd.f32 %v4824, %v4874
        %v4876 = vpop.f32.mrf.mxu0
        %v4877 = vadd.f32 %v4826, %v4876
        %v4878 = vpop.f32.mrf.mxu0
        %v4879 = vpop.f32.mrf.mxu0
        %4880 = vdwg.mxu0
        %v4881 = vadd.f32 %v2653, %v4865
        %v4882 = vadd.f32 %v2654, %v4867
        %v4883 = vadd.f32 %v2655, %v4869
        %v4884 = vadd.f32 %v2656, %v4871
        %v4885 = vadd.f32 %v2657, %v4875
        %v4886 = vadd.f32 %v2658, %v4877
        %4887 = vst [vmem:[#allocation2] sm:$0xff] %v4881
        %4888 = vst [vmem:[#allocation2 + $0x8] sm:$0xff] %v4882
        %4889 = vst [vmem:[#allocation2 + $0x10] sm:$0xff] %v4883
        %4890 = vst [vmem:[#allocation2 + $0x18] sm:$0xff] %v4884
        %4891 = vst [vmem:[#allocation2 + $0x20] sm:$0xff] %v4885
        %4892 = vst [vmem:[#allocation2 + $0x28] sm:$0xff] %v4886
        %p4893 = scmp.eq.s32.totalorder %s38, 1
        // Predicated region
        $region105: #{phikon_forward.3} parent=79 // pred_check
          %p4894 = pneg %p4893
        $region106: #{phikon_forward.3} parent=79 // pred_check_branch
          %4896 = sbr.rel (%p4894) target = $region108
        $region107: #{phikon_forward.3} parent=79 // pred_region
          %v4897 = vld [vmem:[#allocation9] sm:$0x3]
          %v4898 = vld [vmem:[#allocation11] sm:$0x3]
          %v4899 = vadd.f32 %v4881, %v4882
          %4900 = vadd.xlane.f32.xlu0 %v4899
          %v4901 = vpop.xlane.xlu0 %4900
          %v4902 = vadd.f32 %v4883, %v4884
          %4903 = vadd.xlane.f32.xlu0 %v4902
          %v4904 = vpop.xlane.xlu0 %4903
          %v4905 = vadd.f32 %v4885, %v4886
          %4906 = vadd.xlane.f32.xlu0 %v4905
          %v4907 = vpop.xlane.xlu0 %4906
          %v4908 = vmul.f32 %v4901, %v841
          %v4909 = vmul.f32 %v4904, %v841
          %v4910 = vmul.f32 %v4907, %v841
          %v4911 = vsub.f32 %v4881, %v4908
          %v4912 = vsub.f32 %v4882, %v4908
          %v4913 = vsub.f32 %v4883, %v4909
          %v4914 = vsub.f32 %v4884, %v4909
          %v4915 = vsub.f32 %v4885, %v4910
          %v4916 = vsub.f32 %v4886, %v4910
          %v4917 = vmul.f32 %v4911, %v4911
          %v4918 = vmul.f32 %v4912, %v4912
          %v4919 = vmul.f32 %v4913, %v4913
          %v4920 = vmul.f32 %v4914, %v4914
          %v4921 = vmul.f32 %v4915, %v4915
          %v4922 = vmul.f32 %v4916, %v4916
          %v4923 = vadd.f32 %v4917, %v4918
          %4924 = vadd.xlane.f32.xlu0 %v4923
          %v4925 = vpop.xlane.xlu0 %4924
          %v4926 = vadd.f32 %v4919, %v4920
          %4927 = vadd.xlane.f32.xlu0 %v4926
          %v4928 = vpop.xlane.xlu0 %4927
          %v4929 = vadd.f32 %v4921, %v4922
          %4930 = vadd.xlane.f32.xlu0 %v4929
          %v4931 = vpop.xlane.xlu0 %4930
          %v4932 = vmul.f32 %v4925, %v841
          %v4933 = vmul.f32 %v4928, %v841
          %v4934 = vmul.f32 %v4931, %v841
          %v4935 = vadd.f32 %v4932, 1e-12
          %v4936 = vadd.f32 %v4933, 1e-12
          %v4937 = vadd.f32 %v4934, 1e-12
          %v4938 = vrsqrt.pop %v4935
          %v4939 = vrsqrt.pop %v4936
          %v4940 = vrsqrt.pop %v4937
          %v4941 = vmul.f32 %v4911, %v4938
          %v4942 = vmul.f32 %v4912, %v4938
          %v4943 = vmul.f32 %v4913, %v4939
          %v4944 = vmul.f32 %v4914, %v4939
          %v4945 = vmul.f32 %v4915, %v4940
          %v4946 = vmul.f32 %v4916, %v4940
          %v4948 = vlaneseq
          %v4949 = vshrl.u32 %v4948, 7
          %v4950 = vsub.s32 0, %v4949
          %v4951 = vrot.slane %v4897, %v4950
          %v4952 = vlaneseq
          %v4953 = vshrl.u32 %v4952, 7
          %v4954 = vsub.s32 1, %v4953
          %v4955 = vrot.slane %v4897, %v4954
          %v4958 = vmul.f32 %v4941, %v4951
          %v4959 = vmul.f32 %v4942, %v4955
          %v4960 = vmul.f32 %v4943, %v4951
          %v4961 = vmul.f32 %v4944, %v4955
          %v4962 = vmul.f32 %v4945, %v4951
          %v4963 = vmul.f32 %v4946, %v4955
          %v4965 = vlaneseq
          %v4966 = vshrl.u32 %v4965, 7
          %v4967 = vsub.s32 0, %v4966
          %v4968 = vrot.slane %v4898, %v4967
          %v4969 = vlaneseq
          %v4970 = vshrl.u32 %v4969, 7
          %v4971 = vsub.s32 1, %v4970
          %v4972 = vrot.slane %v4898, %v4971
          %v4975 = vadd.f32 %v4958, %v4968
          %v4976 = vadd.f32 %v4959, %v4972
          %v4977 = vadd.f32 %v4960, %v4968
          %v4978 = vadd.f32 %v4961, %v4972
          %v4979 = vadd.f32 %v4962, %v4968
          %v4980 = vadd.f32 %v4963, %v4972
          %4981 = vst [vmem:[%s806] sm:$0xff] %v4975
          %4982 = vst [vmem:[%s806 + $0x8] sm:$0xff] %v4976
          %4983 = vst [vmem:[%s806 + $0x10] sm:$0xff] %v4977
          %4984 = vst [vmem:[%s806 + $0x18] sm:$0xff] %v4978
          %4985 = vst [vmem:[%s806 + $0x20] sm:$0xff] %v4979
          %4986 = vst [vmem:[%s806 + $0x28] sm:$0xff] %v4980
        $region108: #{phikon_forward.3} parent=79 // pred_fallthru
          _
        %p4987 = scmp.lt.s32.totalorder %s37, 1
        %s4988 = scalar_select %p4987, %s37, 1
        %s4989 = smul.addr %s4988, 6
        %s4990 = smul.addr %s4989, 8
        %s4991 = scalar_lea.vmem %s15, %s4990
        // Predicated region
        $region109: #{phikon_forward.3} parent=79 // pred_check
          %p4992 = pneg %p443
        $region110: #{phikon_forward.3} parent=79 // pred_check_branch
          %4994 = sbr.rel (%p4992) target = $region112
        $region111: #{phikon_forward.3} parent=79 // pred_region
          _
        $region112: #{phikon_forward.3} parent=79 // pred_fallthru
          _
      $region80: #{phikon_forward.3} parent=5 // pred_fallthru
        _
      %p4995 = scmp.le.s32.totalorder 2, %s28
      // Predicated region
      $region113: #{phikon_forward.3} parent=5 // pred_check
        %p4996 = pneg %p4995
      $region114: #{phikon_forward.3} parent=5 // pred_check_branch
        %4998 = sbr.rel (%p4996) target = $region116
      $region115: #{phikon_forward.3} parent=5 // pred_region
        %s4999 = ssub.s32 %s28, 2
        // Predicated region
        $region117: #{phikon_forward.3} parent=115 // pred_check
          %p5000 = pneg %p449
        $region118: #{phikon_forward.3} parent=115 // pred_check_branch
          %5002 = sbr.rel (%p5000) target = $region120
        $region119: #{phikon_forward.3} parent=115 // pred_region
          %p5003 = scmp.lt.s32.totalorder %s39, 1
          %s5004 = scalar_select %p5003, %s39, 1
          %s5005 = smul.addr %s5004, 6
          %s5006 = smul.addr %s5005, 8
          %s5007 = scalar_lea.vmem %s15, %s5006
        $region120: #{phikon_forward.3} parent=115 // pred_fallthru
          _
      $region116: #{phikon_forward.3} parent=5 // pred_fallthru
        _
    $region6: #{phikon_forward.3} parent=1 // loop_footer
      %s32 = sadd.s32 1, %s28
    $region7: #{phikon_forward.3} parent=1 // loop_footer_branch
      %27 = sbr.rel target = $region3
    $region8: #{phikon_forward.3} parent=1 // loop_exit
      _
    %5008 = vsyncpa [#allocation5], 1
    %s5009 = scalar_lea.sflag [#allocation5], 1
    %5010 = vsyncpa %s5009, 1
    %5011 = vsyncpa [#allocation7], 1
    %s5012 = scalar_lea.sflag [#allocation7], 1
    %5013 = vsyncpa %s5012, 1
    %5014 = vsyncpa [#allocation10], 1

</llo_original>
